<compile_context>
chip_gen: v7x
topology: tpu7x:2x2x1
jax: 0.10.0
libtpu: 0.0.40
codegen_flags: <defaults>
</compile_context>

<pallas_src>
import jax
import jax.numpy as jnp
from jax.experimental import pallas as pl
from jax.experimental.pallas import tpu as pltpu

EPS = 1e-5
# 48 MiB: above v5e/v6e scoped defaults (16/32 MiB), below v7x's 64 MiB
# physical VMEM per TensorCore.  Generation-aware retuning is a production
# concern (pltpu.get_tpu_info()); per-step blocks here are far smaller anyway.
VMEM_LIMIT_BYTES = 48 * 1024 * 1024


# ---------------------------------------------------------------------------
# In-kernel helpers
# ---------------------------------------------------------------------------
def _conv3x3_im2col(src_f32, w_ref, pad_scr, patch_scr):
    """3x3 same-padding conv of one (H, W, Cin) image as a single MXU matmul.

    src_f32:   (H, W, Cin) f32 value.
    w_ref:     (9*Cin, Cout) bf16 VMEM ref, rows ordered (dy, dx, cin).
    pad_scr:   (H+2, W+16, Cin) f32 VMEM scratch. The image lives at rows
               [1, H+1) and cols [8, 8+W) (sublane-tile-aligned store).  Only
               the halo cells the taps read (rows 0 / H+1, cols 7 / W+8) need
               zeros, so we zero two border rows + two 8-wide column bands per
               step instead of the whole scratch.
    patch_scr: (H, W, 9*Cin) bf16 VMEM scratch (im2col patch, tap-major lanes);
               taps are cast f32->bf16 during the copy.

    Returns the (H*W, Cout) f32 conv output (bf16 MXU inputs, f32 accumulate).
    """
    H, W, Cin = src_f32.shape
    Wp = W + 16

    # Halo zeroing (per step; safe under a megacore-split "parallel" grid).
    zrow = jnp.zeros((1, Wp, Cin), pad_scr.dtype)
    zcol = jnp.zeros((H, 8, Cin), pad_scr.dtype)
    pad_scr[0:1, :, :] = zrow
    pad_scr[H + 1:H + 2, :, :] = zrow
    pad_scr[1:H + 1, 0:8, :] = zcol
    pad_scr[1:H + 1, W + 8:W + 16, :] = zcol

    # Interior: fully overwritten every step.
    pad_scr[1:H + 1, 8:8 + W, :] = src_f32

    k = 0
    for dy in range(3):
        for dx in range(3):
            # tap (dy, dx): out[h, w] <- padded[h + dy, w + dx]  (col off 8-1=7)
            patch_scr[:, :, k * Cin:(k + 1) * Cin] = (
                pad_scr[dy:dy + H, 7 + dx:7 + dx + W, :].astype(patch_scr.dtype))
            k += 1

    # W is a multiple of 8 (sublane) at the shapes we run, so collapsing
    # (H, W) -> (H*W,) keeps the (8,128) tiling aligned (free view, no copy).
    patch = patch_scr[...].reshape(H * W, 9 * Cin)
    return jnp.dot(patch, w_ref[...], preferred_element_type=jnp.float32)


# ---------------------------------------------------------------------------
# Kernels (grid = (N,), one image per grid step, "parallel")
# ---------------------------------------------------------------------------
def conv_stats_kernel(x_ref, w_ref, y_ref, sum_ref, ssq_ref, pad_scr, patch_scr):
    """conv1(x) -> pre-BN output (bf16) + per-tile BN partial stats (f32)."""
    H, W = x_ref.shape[1], x_ref.shape[2]
    Cout = w_ref.shape[1]
    acc = _conv3x3_im2col(x_ref[0], w_ref, pad_scr, patch_scr)      # (H*W, Cout)
    y_ref[...] = acc.reshape(1, H, W, Cout).astype(y_ref.dtype)
    sum_ref[...] = jnp.sum(acc, axis=0, keepdims=True).reshape(1, 1, Cout)
    ssq_ref[...] = jnp.sum(acc * acc, axis=0, keepdims=True).reshape(1, 1, Cout)


def bn_relu_conv_stats_kernel(y1_ref, scale_ref, shift_ref, w_ref,
                              y2_ref, sum_ref, ssq_ref, pad_scr, patch_scr):
    """mid = relu(bn1(y1)) fused with conv2 (+ BN2 partial stats).

    `mid` stays in VMEM; it never touches HBM (and is never padded in HBM)."""
    H, W = y1_ref.shape[1], y1_ref.shape[2]
    Cout = w_ref.shape[1]
    mid = jnp.maximum(
        y1_ref[0].astype(jnp.float32) * scale_ref[...] + shift_ref[...], 0.0)
    acc = _conv3x3_im2col(mid, w_ref, pad_scr, patch_scr)
    y2_ref[...] = acc.reshape(1, H, W, Cout).astype(y2_ref.dtype)
    sum_ref[...] = jnp.sum(acc, axis=0, keepdims=True).reshape(1, 1, Cout)
    ssq_ref[...] = jnp.sum(acc * acc, axis=0, keepdims=True).reshape(1, 1, Cout)


def bn_add_relu_kernel(y2_ref, res_ref, scale_ref, shift_ref, out_ref):
    """out = relu(bn2(y2) + residual) on a lane-dense (1, rows, lane) block."""
    out_ref[...] = jnp.maximum(
        y2_ref[...].astype(jnp.float32) * scale_ref[...] + shift_ref[...]
        + res_ref[...], 0.0)


# ---------------------------------------------------------------------------
# Wrapper (NCHW in / NCHW out, matching the PyTorch module)
# ---------------------------------------------------------------------------
def _bn_affine(sums, sumsqs, gamma, beta, count):
    """Fold training-mode BN (batch mean, biased variance) into scale/shift."""
    mean = jnp.sum(sums, axis=(0, 1)) / count                  # (C,)
    # TODO(synk): E[x^2] - mean^2 cancels in f32 for very large N*H*W; use a
    # shifted / Welford-style accumulation for production batch sizes.
    var = jnp.sum(sumsqs, axis=(0, 1)) / count - mean * mean   # biased variance
    scale = gamma * jax.lax.rsqrt(var + EPS)
    shift = beta - mean * scale
    return scale.astype(jnp.float32), shift.astype(jnp.float32)


def _lane_fold(H, W, C):
    """Fold trailing spatial dims into the lane axis until it is >= 128."""
    rows, lane = H, W * C
    while lane < 128 and rows % 2 == 0:
        rows //= 2
        lane *= 2
    return rows, lane


def residual_block_forward(x_nchw, params):
    w1, g1, b1, w2, g2, b2 = params
    N, Cin, H, W = x_nchw.shape
    Cmid, Cout = w1.shape[0], w2.shape[0]
    count = N * H * W

    x = jnp.transpose(x_nchw, (0, 2, 3, 1)).astype(jnp.float32)        # NHWC

    # PyTorch conv weight (Cout, Cin, 3, 3) -> (9*Cin, Cout), rows ordered
    # (dy, dx, cin) to match the im2col patch; bf16 MXU inputs.
    w1k = jnp.transpose(w1, (2, 3, 1, 0)).reshape(9 * Cin, Cmid).astype(jnp.bfloat16)
    w2k = jnp.transpose(w2, (2, 3, 1, 0)).reshape(9 * Cmid, Cout).astype(jnp.bfloat16)

    cp = pltpu.CompilerParams(dimension_semantics=("parallel",),
                              vmem_limit_bytes=VMEM_LIMIT_BYTES)

    def img_spec(C):
        return pl.BlockSpec((1, H, W, C), lambda n: (n, 0, 0, 0))

    def bcast_spec(shape):
        nd = len(shape)
        return pl.BlockSpec(shape, lambda n: (0,) * nd)

    def stat_spec(C):
        return pl.BlockSpec((1, 1, C), lambda n: (n, 0, 0))

    # --- pass 1: conv1 + BN1 partial statistics ---------------------------
    y1, s1, q1 = pl.pallas_call(
        conv_stats_kernel,
        grid=(N,),
        in_specs=[img_spec(Cin), bcast_spec((9 * Cin, Cmid))],
        out_specs=(img_spec(Cmid), stat_spec(Cmid), stat_spec(Cmid)),
        out_shape=(jax.ShapeDtypeStruct((N, H, W, Cmid), jnp.bfloat16),
                   jax.ShapeDtypeStruct((N, 1, Cmid), jnp.float32),
                   jax.ShapeDtypeStruct((N, 1, Cmid), jnp.float32)),
        scratch_shapes=[pltpu.VMEM((H + 2, W + 16, Cin), jnp.float32),
                        pltpu.VMEM((H, W, 9 * Cin), jnp.bfloat16)],
        compiler_params=cp,
    )(x, w1k)

    scale1, shift1 = _bn_affine(s1, q1, g1, b1, count)   # tiny (C,)-sized JAX glue

    # --- pass 2: BN1 + ReLU fused with conv2 + BN2 partial statistics -----
    y2, s2, q2 = pl.pallas_call(
        bn_relu_conv_stats_kernel,
        grid=(N,),
        in_specs=[img_spec(Cmid), bcast_spec((1, Cmid)), bcast_spec((1, Cmid)),
                  bcast_spec((9 * Cmid, Cout))],
        out_specs=(img_spec(Cout), stat_spec(Cout), stat_spec(Cout)),
        out_shape=(jax.ShapeDtypeStruct((N, H, W, Cout), jnp.bfloat16),
                   jax.ShapeDtypeStruct((N, 1, Cout), jnp.float32),
                   jax.ShapeDtypeStruct((N, 1, Cout), jnp.float32)),
        scratch_shapes=[pltpu.VMEM((H + 2, W + 16, Cmid), jnp.float32),
                        pltpu.VMEM((H, W, 9 * Cmid), jnp.bfloat16)],
        compiler_params=cp,
    )(y1, scale1.reshape(1, Cmid), shift1.reshape(1, Cmid), w2k)

    scale2, shift2 = _bn_affine(s2, q2, g2, b2, count)

    # --- pass 3: BN2 + residual add + ReLU (lane-dense elementwise) ---------
    # Present each image as (rows, lane) with lane >= 128 when possible so the
    # stores are unmasked vst instead of C/128-masked vst.msk.  The reshapes
    # below are bit-contiguous (free) and the residual requires Cin == Cout.
    rows, lane = _lane_fold(H, W, Cout)
    y2f = y2.reshape(N, rows, lane)
    xf = x.reshape(N, rows, lane)
    reps = lane // Cout
    scale2t = jnp.tile(scale2, reps).reshape(1, 1, lane)
    shift2t = jnp.tile(shift2, reps).reshape(1, 1, lane)

    out = pl.pallas_call(
        bn_add_relu_kernel,
        grid=(N,),
        in_specs=[pl.BlockSpec((1, rows, lane), lambda n: (n, 0, 0)),
                  pl.BlockSpec((1, rows, lane), lambda n: (n, 0, 0)),
                  bcast_spec((1, 1, lane)), bcast_spec((1, 1, lane))],
        out_specs=pl.BlockSpec((1, rows, lane), lambda n: (n, 0, 0)),
        out_shape=jax.ShapeDtypeStruct((N, rows, lane), jnp.float32),
        compiler_params=cp,
    )(y2f, xf, scale2t, shift2t)

    out = out.reshape(N, H, W, Cout)
    return jnp.transpose(out, (0, 3, 1, 2))


# ---------------------------------------------------------------------------
# Pure-JAX f32 reference (PyTorch semantics) for the correctness check
# ---------------------------------------------------------------------------
def residual_block_ref(x_nchw, params):
    w1, g1, b1, w2, g2, b2 = params

    def conv(x, w):
        return jax.lax.conv_general_dilated(
            x, w, window_strides=(1, 1), padding=((1, 1), (1, 1)),
            dimension_numbers=("NCHW", "OIHW", "NCHW"))

    def bn(x, g, b):
        m = jnp.mean(x, axis=(0, 2, 3), keepdims=True)
        v = jnp.mean((x - m) ** 2, axis=(0, 2, 3), keepdims=True)
        return ((x - m) * jax.lax.rsqrt(v + EPS) * g.reshape(1, -1, 1, 1)
                + b.reshape(1, -1, 1, 1))

    out = jnp.maximum(bn(conv(x_nchw, w1), g1, b1), 0.0)
    out = bn(conv(out, w2), g2, b2)
    return jnp.maximum(out + x_nchw, 0.0)


# ---------------------------------------------------------------------------
if __name__ == "__main__":
    # ResidualBlock(in_channels=4, out_channels=4, stride=1, downsample=None)
    N, C, H, W = 2, 4, 16, 16
    key = jax.random.PRNGKey(0)
    kx, k1, k2 = jax.random.split(key, 3)

    x = jax.random.normal(kx, (N, C, H, W), dtype=jnp.float32)
    w1 = 0.1 * jax.random.normal(k1, (C, C, 3, 3), dtype=jnp.float32)
    w2 = 0.1 * jax.random.normal(k2, (C, C, 3, 3), dtype=jnp.float32)
    g1 = jnp.ones((C,), jnp.float32)
    b1 = jnp.zeros((C,), jnp.float32)
    g2 = jnp.ones((C,), jnp.float32)
    b2 = jnp.zeros((C,), jnp.float32)
    params = (w1, g1, b1, w2, g2, b2)

    out = jax.block_until_ready(jax.jit(residual_block_forward)(x, params))
    ref = jax.block_until_ready(residual_block_ref(x, params))

    assert out.shape == (N, C, H, W), out.shape
    # bf16 MXU inputs + bf16 inter-pass intermediates (f32 stats/normalization)
    # vs. the all-f32 reference: errors stay at the ~1e-2 level after two BN
    # normalizations; 5e-2 leaves margin.
    max_err = float(jnp.max(jnp.abs(out - ref)))
    assert jnp.allclose(out, ref, atol=5e-2, rtol=5e-2), max_err

    print("KERNEL_OK")
</pallas_src>

<mosaic_0001>
module attributes {stable_mosaic.version = 11 : i64} {
  func.func @conv_stats_kernel(%arg0: i32, %arg1: memref<1x16x16x4xf32, #tpu.memory_space<vmem>>, %arg2: memref<36x4xbf16, #tpu.memory_space<vmem>>, %arg3: memref<1x16x16x4xbf16, #tpu.memory_space<vmem>>, %arg4: memref<1x1x4xf32, #tpu.memory_space<vmem>>, %arg5: memref<1x1x4xf32, #tpu.memory_space<vmem>>, %arg6: memref<18x32x4xf32, #tpu.memory_space<vmem>>, %arg7: memref<16x16x36xbf16, #tpu.memory_space<vmem>>) attributes {dimension_semantics = [#tpu.dimension_semantics<parallel>], iteration_bounds = array<i64: 2>, scalar_prefetch = 0 : i64, scratch_operands = 2 : i64, tpu.core_type = #tpu.core_type<tc>, window_params = [{transform_indices = @transform_0, window_bounds = array<i64: 1, 16, 16, 4>}, {pipeline_mode = #tpu.pipeline_mode<synchronous>, transform_indices = @transform_1, window_bounds = array<i64: 36, 4>}, {transform_indices = @transform_2, window_bounds = array<i64: 1, 16, 16, 4>}, {transform_indices = @transform_3, window_bounds = array<i64: 1, 1, 4>}, {transform_indices = @transform_4, window_bounds = array<i64: 1, 1, 4>}]} {
    %c0 = arith.constant 0 : index
    %c0_0 = arith.constant 0 : index
    %c0_1 = arith.constant 0 : index
    %c0_2 = arith.constant 0 : index
    %0 = vector.load %arg1[%c0, %c0_0, %c0_1, %c0_2] : memref<1x16x16x4xf32, #tpu.memory_space<vmem>>, vector<1x16x16x4xf32>
    %1 = vector.shape_cast %0 : vector<1x16x16x4xf32> to vector<16x16x4xf32>
    %cst = arith.constant 0.000000e+00 : f32
    %2 = vector.broadcast %cst : f32 to vector<1x32x4xf32>
    %cst_3 = arith.constant 0.000000e+00 : f32
    %3 = vector.broadcast %cst_3 : f32 to vector<16x8x4xf32>
    %c0_4 = arith.constant 0 : index
    %c0_5 = arith.constant 0 : index
    %c0_6 = arith.constant 0 : index
    %4 = vector.load %arg6[%c0_4, %c0_5, %c0_6] : memref<18x32x4xf32, #tpu.memory_space<vmem>>, vector<1x32x4xf32>
    tpu.vector_store %arg6[%c0_4, %c0_5, %c0_6], %2 {strides = array<i32>} : memref<18x32x4xf32, #tpu.memory_space<vmem>>, vector<1x32x4xf32>,
    %c17 = arith.constant 17 : index
    %c0_7 = arith.constant 0 : index
    %c0_8 = arith.constant 0 : index
    %5 = vector.load %arg6[%c17, %c0_7, %c0_8] : memref<18x32x4xf32, #tpu.memory_space<vmem>>, vector<1x32x4xf32>
    tpu.vector_store %arg6[%c17, %c0_7, %c0_8], %2 {strides = array<i32>} : memref<18x32x4xf32, #tpu.memory_space<vmem>>, vector<1x32x4xf32>,
    %c1 = arith.constant 1 : index
    %c0_9 = arith.constant 0 : index
    %c0_10 = arith.constant 0 : index
    %6 = vector.load %arg6[%c1, %c0_9, %c0_10] : memref<18x32x4xf32, #tpu.memory_space<vmem>>, vector<16x8x4xf32>
    tpu.vector_store %arg6[%c1, %c0_9, %c0_10], %3 {strides = array<i32>} : memref<18x32x4xf32, #tpu.memory_space<vmem>>, vector<16x8x4xf32>,
    %c1_11 = arith.constant 1 : index
    %c24 = arith.constant 24 : index
    %c0_12 = arith.constant 0 : index
    %7 = vector.load %arg6[%c1_11, %c24, %c0_12] : memref<18x32x4xf32, #tpu.memory_space<vmem>>, vector<16x8x4xf32>
    tpu.vector_store %arg6[%c1_11, %c24, %c0_12], %3 {strides = array<i32>} : memref<18x32x4xf32, #tpu.memory_space<vmem>>, vector<16x8x4xf32>,
    %c1_13 = arith.constant 1 : index
    %c8 = arith.constant 8 : index
    %c0_14 = arith.constant 0 : index
    %8 = vector.load %arg6[%c1_13, %c8, %c0_14] : memref<18x32x4xf32, #tpu.memory_space<vmem>>, vector<16x16x4xf32>
    tpu.vector_store %arg6[%c1_13, %c8, %c0_14], %1 {strides = array<i32>} : memref<18x32x4xf32, #tpu.memory_space<vmem>>, vector<16x16x4xf32>,
    %c0_15 = arith.constant 0 : index
    %c7 = arith.constant 7 : index
    %c0_16 = arith.constant 0 : index
    %9 = vector.load %arg6[%c0_15, %c7, %c0_16] : memref<18x32x4xf32, #tpu.memory_space<vmem>>, vector<16x16x4xf32>
    %10 = arith.truncf %9 : vector<16x16x4xf32> to vector<16x16x4xbf16>
    %c0_17 = arith.constant 0 : index
    %c0_18 = arith.constant 0 : index
    %c0_19 = arith.constant 0 : index
    %11 = vector.load %arg7[%c0_17, %c0_18, %c0_19] : memref<16x16x36xbf16, #tpu.memory_space<vmem>>, vector<16x16x4xbf16>
    tpu.vector_store %arg7[%c0_17, %c0_18, %c0_19], %10 {strides = array<i32>} : memref<16x16x36xbf16, #tpu.memory_space<vmem>>, vector<16x16x4xbf16>,
    %c0_20 = arith.constant 0 : index
    %c8_21 = arith.constant 8 : index
    %c0_22 = arith.constant 0 : index
    %12 = vector.load %arg6[%c0_20, %c8_21, %c0_22] : memref<18x32x4xf32, #tpu.memory_space<vmem>>, vector<16x16x4xf32>
    %13 = arith.truncf %12 : vector<16x16x4xf32> to vector<16x16x4xbf16>
    %c0_23 = arith.constant 0 : index
    %c0_24 = arith.constant 0 : index
    %c4 = arith.constant 4 : index
    %14 = vector.load %arg7[%c0_23, %c0_24, %c4] : memref<16x16x36xbf16, #tpu.memory_space<vmem>>, vector<16x16x4xbf16>
    tpu.vector_store %arg7[%c0_23, %c0_24, %c4], %13 {strides = array<i32>} : memref<16x16x36xbf16, #tpu.memory_space<vmem>>, vector<16x16x4xbf16>,
    %c0_25 = arith.constant 0 : index
    %c9 = arith.constant 9 : index
    %c0_26 = arith.constant 0 : index
    %15 = vector.load %arg6[%c0_25, %c9, %c0_26] : memref<18x32x4xf32, #tpu.memory_space<vmem>>, vector<16x16x4xf32>
    %16 = arith.truncf %15 : vector<16x16x4xf32> to vector<16x16x4xbf16>
    %c0_27 = arith.constant 0 : index
    %c0_28 = arith.constant 0 : index
    %c8_29 = arith.constant 8 : index
    %17 = vector.load %arg7[%c0_27, %c0_28, %c8_29] : memref<16x16x36xbf16, #tpu.memory_space<vmem>>, vector<16x16x4xbf16>
    tpu.vector_store %arg7[%c0_27, %c0_28, %c8_29], %16 {strides = array<i32>} : memref<16x16x36xbf16, #tpu.memory_space<vmem>>, vector<16x16x4xbf16>,
    %c1_30 = arith.constant 1 : index
    %c7_31 = arith.constant 7 : index
    %c0_32 = arith.constant 0 : index
    %18 = vector.load %arg6[%c1_30, %c7_31, %c0_32] : memref<18x32x4xf32, #tpu.memory_space<vmem>>, vector<16x16x4xf32>
    %19 = arith.truncf %18 : vector<16x16x4xf32> to vector<16x16x4xbf16>
    %c0_33 = arith.constant 0 : index
    %c0_34 = arith.constant 0 : index
    %c12 = arith.constant 12 : index
    %20 = vector.load %arg7[%c0_33, %c0_34, %c12] : memref<16x16x36xbf16, #tpu.memory_space<vmem>>, vector<16x16x4xbf16>
    tpu.vector_store %arg7[%c0_33, %c0_34, %c12], %19 {strides = array<i32>} : memref<16x16x36xbf16, #tpu.memory_space<vmem>>, vector<16x16x4xbf16>,
    %c1_35 = arith.constant 1 : index
    %c8_36 = arith.constant 8 : index
    %c0_37 = arith.constant 0 : index
    %21 = vector.load %arg6[%c1_35, %c8_36, %c0_37] : memref<18x32x4xf32, #tpu.memory_space<vmem>>, vector<16x16x4xf32>
    %22 = arith.truncf %21 : vector<16x16x4xf32> to vector<16x16x4xbf16>
    %c0_38 = arith.constant 0 : index
    %c0_39 = arith.constant 0 : index
    %c16 = arith.constant 16 : index
    %23 = vector.load %arg7[%c0_38, %c0_39, %c16] : memref<16x16x36xbf16, #tpu.memory_space<vmem>>, vector<16x16x4xbf16>
    tpu.vector_store %arg7[%c0_38, %c0_39, %c16], %22 {strides = array<i32>} : memref<16x16x36xbf16, #tpu.memory_space<vmem>>, vector<16x16x4xbf16>,
    %c1_40 = arith.constant 1 : index
    %c9_41 = arith.constant 9 : index
    %c0_42 = arith.constant 0 : index
    %24 = vector.load %arg6[%c1_40, %c9_41, %c0_42] : memref<18x32x4xf32, #tpu.memory_space<vmem>>, vector<16x16x4xf32>
    %25 = arith.truncf %24 : vector<16x16x4xf32> to vector<16x16x4xbf16>
    %c0_43 = arith.constant 0 : index
    %c0_44 = arith.constant 0 : index
    %c20 = arith.constant 20 : index
    %26 = vector.load %arg7[%c0_43, %c0_44, %c20] : memref<16x16x36xbf16, #tpu.memory_space<vmem>>, vector<16x16x4xbf16>
    tpu.vector_store %arg7[%c0_43, %c0_44, %c20], %25 {strides = array<i32>} : memref<16x16x36xbf16, #tpu.memory_space<vmem>>, vector<16x16x4xbf16>,
    %c2 = arith.constant 2 : index
    %c7_45 = arith.constant 7 : index
    %c0_46 = arith.constant 0 : index
    %27 = vector.load %arg6[%c2, %c7_45, %c0_46] : memref<18x32x4xf32, #tpu.memory_space<vmem>>, vector<16x16x4xf32>
    %28 = arith.truncf %27 : vector<16x16x4xf32> to vector<16x16x4xbf16>
    %c0_47 = arith.constant 0 : index
    %c0_48 = arith.constant 0 : index
    %c24_49 = arith.constant 24 : index
    %29 = vector.load %arg7[%c0_47, %c0_48, %c24_49] : memref<16x16x36xbf16, #tpu.memory_space<vmem>>, vector<16x16x4xbf16>
    tpu.vector_store %arg7[%c0_47, %c0_48, %c24_49], %28 {strides = array<i32>} : memref<16x16x36xbf16, #tpu.memory_space<vmem>>, vector<16x16x4xbf16>,
    %c2_50 = arith.constant 2 : index
    %c8_51 = arith.constant 8 : index
    %c0_52 = arith.constant 0 : index
    %30 = vector.load %arg6[%c2_50, %c8_51, %c0_52] : memref<18x32x4xf32, #tpu.memory_space<vmem>>, vector<16x16x4xf32>
    %31 = arith.truncf %30 : vector<16x16x4xf32> to vector<16x16x4xbf16>
    %c0_53 = arith.constant 0 : index
    %c0_54 = arith.constant 0 : index
    %c28 = arith.constant 28 : index
    %32 = vector.load %arg7[%c0_53, %c0_54, %c28] : memref<16x16x36xbf16, #tpu.memory_space<vmem>>, vector<16x16x4xbf16>
    tpu.vector_store %arg7[%c0_53, %c0_54, %c28], %31 {strides = array<i32>} : memref<16x16x36xbf16, #tpu.memory_space<vmem>>, vector<16x16x4xbf16>,
    %c2_55 = arith.constant 2 : index
    %c9_56 = arith.constant 9 : index
    %c0_57 = arith.constant 0 : index
    %33 = vector.load %arg6[%c2_55, %c9_56, %c0_57] : memref<18x32x4xf32, #tpu.memory_space<vmem>>, vector<16x16x4xf32>
    %34 = arith.truncf %33 : vector<16x16x4xf32> to vector<16x16x4xbf16>
    %c0_58 = arith.constant 0 : index
    %c0_59 = arith.constant 0 : index
    %c32 = arith.constant 32 : index
    %35 = vector.load %arg7[%c0_58, %c0_59, %c32] : memref<16x16x36xbf16, #tpu.memory_space<vmem>>, vector<16x16x4xbf16>
    tpu.vector_store %arg7[%c0_58, %c0_59, %c32], %34 {strides = array<i32>} : memref<16x16x36xbf16, #tpu.memory_space<vmem>>, vector<16x16x4xbf16>,
    %c0_60 = arith.constant 0 : index
    %c0_61 = arith.constant 0 : index
    %c0_62 = arith.constant 0 : index
    %36 = vector.load %arg7[%c0_60, %c0_61, %c0_62] : memref<16x16x36xbf16, #tpu.memory_space<vmem>>, vector<16x16x36xbf16>
    %37 = vector.shape_cast %36 : vector<16x16x36xbf16> to vector<256x36xbf16>
    %c0_63 = arith.constant 0 : index
    %c0_64 = arith.constant 0 : index
    %38 = vector.load %arg2[%c0_63, %c0_64] : memref<36x4xbf16, #tpu.memory_space<vmem>>, vector<36x4xbf16>
    %cst_65 = arith.constant dense<0.000000e+00> : vector<256x4xf32>
    %39 = tpu.matmul %37, %38, %cst_65 {dimension_numbers = #tpu.dot_dimension_numbers<[1], [0], [0], [1], [0, 0, 1, 1], [], []>} : vector<256x36xbf16>, vector<36x4xbf16>, vector<256x4xf32> -> vector<256x4xf32>
    %40 = vector.shape_cast %39 : vector<256x4xf32> to vector<1x16x16x4xf32>
    %41 = arith.truncf %40 : vector<1x16x16x4xf32> to vector<1x16x16x4xbf16>
    %c0_66 = arith.constant 0 : index
    %c0_67 = arith.constant 0 : index
    %c0_68 = arith.constant 0 : index
    %c0_69 = arith.constant 0 : index
    %42 = vector.load %arg3[%c0_66, %c0_67, %c0_68, %c0_69] : memref<1x16x16x4xbf16, #tpu.memory_space<vmem>>, vector<1x16x16x4xbf16>
    tpu.vector_store %arg3[%c0_66, %c0_67, %c0_68, %c0_69], %41 {strides = array<i32>} : memref<1x16x16x4xbf16, #tpu.memory_space<vmem>>, vector<1x16x16x4xbf16>,
    %cst_70 = arith.constant dense<0.000000e+00> : vector<4xf32>
    %43 = vector.multi_reduction <add>, %39, %cst_70 [0] : vector<256x4xf32> to vector<4xf32>
    %44 = vector.shape_cast %43 : vector<4xf32> to vector<1x4xf32>
    %45 = vector.shape_cast %44 : vector<1x4xf32> to vector<1x1x4xf32>
    %c0_71 = arith.constant 0 : index
    %c0_72 = arith.constant 0 : index
    %c0_73 = arith.constant 0 : index
    %46 = vector.load %arg4[%c0_71, %c0_72, %c0_73] : memref<1x1x4xf32, #tpu.memory_space<vmem>>, vector<1x1x4xf32>
    tpu.vector_store %arg4[%c0_71, %c0_72, %c0_73], %45 {strides = array<i32>} : memref<1x1x4xf32, #tpu.memory_space<vmem>>, vector<1x1x4xf32>,
    %47 = arith.mulf %39, %39 : vector<256x4xf32>
    %cst_74 = arith.constant dense<0.000000e+00> : vector<4xf32>
    %48 = vector.multi_reduction <add>, %47, %cst_74 [0] : vector<256x4xf32> to vector<4xf32>
    %49 = vector.shape_cast %48 : vector<4xf32> to vector<1x4xf32>
    %50 = vector.shape_cast %49 : vector<1x4xf32> to vector<1x1x4xf32>
    %c0_75 = arith.constant 0 : index
    %c0_76 = arith.constant 0 : index
    %c0_77 = arith.constant 0 : index
    %51 = vector.load %arg5[%c0_75, %c0_76, %c0_77] : memref<1x1x4xf32, #tpu.memory_space<vmem>>, vector<1x1x4xf32>
    tpu.vector_store %arg5[%c0_75, %c0_76, %c0_77], %50 {strides = array<i32>} : memref<1x1x4xf32, #tpu.memory_space<vmem>>, vector<1x1x4xf32>,
    return
  }
  func.func @transform_0(%arg0: i32) -> (i32, i32, i32, i32) {
    %c0_i32 = arith.constant 0 : i32
    %c0_i32_0 = arith.constant 0 : i32
    %c0_i32_1 = arith.constant 0 : i32
    %c0_i32_2 = arith.constant 0 : i32
    return %arg0, %c0_i32, %c0_i32_0, %c0_i32_1 : i32, i32, i32, i32
  }
  func.func @transform_1(%arg0: i32) -> (i32, i32) {
    %c0_i32 = arith.constant 0 : i32
    %c0_i32_0 = arith.constant 0 : i32
    %c0_i32_1 = arith.constant 0 : i32
    return %c0_i32, %c0_i32_0 : i32, i32
  }
  func.func @transform_2(%arg0: i32) -> (i32, i32, i32, i32) {
    %c0_i32 = arith.constant 0 : i32
    %c0_i32_0 = arith.constant 0 : i32
    %c0_i32_1 = arith.constant 0 : i32
    %c0_i32_2 = arith.constant 0 : i32
    return %arg0, %c0_i32, %c0_i32_0, %c0_i32_1 : i32, i32, i32, i32
  }
  func.func @transform_3(%arg0: i32) -> (i32, i32, i32) {
    %c0_i32 = arith.constant 0 : i32
    %c0_i32_0 = arith.constant 0 : i32
    %c0_i32_1 = arith.constant 0 : i32
    return %arg0, %c0_i32, %c0_i32_0 : i32, i32, i32
  }
  func.func @transform_4(%arg0: i32) -> (i32, i32, i32) {
    %c0_i32 = arith.constant 0 : i32
    %c0_i32_0 = arith.constant 0 : i32
    %c0_i32_1 = arith.constant 0 : i32
    return %arg0, %c0_i32, %c0_i32_0 : i32, i32, i32
  }
}

module attributes {stable_mosaic.version = 11 : i64} {
  func.func @bn_relu_conv_stats_kernel(%arg0: i32, %arg1: memref<1x16x16x4xbf16, #tpu.memory_space<vmem>>, %arg2: memref<1x4xf32, #tpu.memory_space<vmem>>, %arg3: memref<1x4xf32, #tpu.memory_space<vmem>>, %arg4: memref<36x4xbf16, #tpu.memory_space<vmem>>, %arg5: memref<1x16x16x4xbf16, #tpu.memory_space<vmem>>, %arg6: memref<1x1x4xf32, #tpu.memory_space<vmem>>, %arg7: memref<1x1x4xf32, #tpu.memory_space<vmem>>, %arg8: memref<18x32x4xf32, #tpu.memory_space<vmem>>, %arg9: memref<16x16x36xbf16, #tpu.memory_space<vmem>>) attributes {dimension_semantics = [#tpu.dimension_semantics<parallel>], iteration_bounds = array<i64: 2>, scalar_prefetch = 0 : i64, scratch_operands = 2 : i64, tpu.core_type = #tpu.core_type<tc>, window_params = [{transform_indices = @transform_0, window_bounds = array<i64: 1, 16, 16, 4>}, {pipeline_mode = #tpu.pipeline_mode<synchronous>, transform_indices = @transform_1, window_bounds = array<i64: 1, 4>}, {pipeline_mode = #tpu.pipeline_mode<synchronous>, transform_indices = @transform_2, window_bounds = array<i64: 1, 4>}, {pipeline_mode = #tpu.pipeline_mode<synchronous>, transform_indices = @transform_3, window_bounds = array<i64: 36, 4>}, {transform_indices = @transform_4, window_bounds = array<i64: 1, 16, 16, 4>}, {transform_indices = @transform_5, window_bounds = array<i64: 1, 1, 4>}, {transform_indices = @transform_6, window_bounds = array<i64: 1, 1, 4>}]} {
    %c0 = arith.constant 0 : index
    %c0_0 = arith.constant 0 : index
    %c0_1 = arith.constant 0 : index
    %c0_2 = arith.constant 0 : index
    %0 = vector.load %arg1[%c0, %c0_0, %c0_1, %c0_2] : memref<1x16x16x4xbf16, #tpu.memory_space<vmem>>, vector<1x16x16x4xbf16>
    %1 = vector.shape_cast %0 : vector<1x16x16x4xbf16> to vector<16x16x4xbf16>
    %2 = arith.extf %1 : vector<16x16x4xbf16> to vector<16x16x4xf32>
    %c0_3 = arith.constant 0 : index
    %c0_4 = arith.constant 0 : index
    %3 = vector.load %arg2[%c0_3, %c0_4] : memref<1x4xf32, #tpu.memory_space<vmem>>, vector<1x4xf32>
    %4 = vector.shape_cast %3 : vector<1x4xf32> to vector<1x1x4xf32>
    %5 = vector.broadcast %4 : vector<1x1x4xf32> to vector<16x16x4xf32>
    %6 = arith.mulf %2, %5 : vector<16x16x4xf32>
    %c0_5 = arith.constant 0 : index
    %c0_6 = arith.constant 0 : index
    %7 = vector.load %arg3[%c0_5, %c0_6] : memref<1x4xf32, #tpu.memory_space<vmem>>, vector<1x4xf32>
    %8 = vector.shape_cast %7 : vector<1x4xf32> to vector<1x1x4xf32>
    %9 = vector.broadcast %8 : vector<1x1x4xf32> to vector<16x16x4xf32>
    %10 = arith.addf %6, %9 : vector<16x16x4xf32>
    %cst = arith.constant 0.000000e+00 : f32
    %11 = vector.broadcast %cst : f32 to vector<16x16x4xf32>
    %12 = arith.maximumf %10, %11 : vector<16x16x4xf32>
    %cst_7 = arith.constant 0.000000e+00 : f32
    %13 = vector.broadcast %cst_7 : f32 to vector<1x32x4xf32>
    %cst_8 = arith.constant 0.000000e+00 : f32
    %14 = vector.broadcast %cst_8 : f32 to vector<16x8x4xf32>
    %c0_9 = arith.constant 0 : index
    %c0_10 = arith.constant 0 : index
    %c0_11 = arith.constant 0 : index
    %15 = vector.load %arg8[%c0_9, %c0_10, %c0_11] : memref<18x32x4xf32, #tpu.memory_space<vmem>>, vector<1x32x4xf32>
    tpu.vector_store %arg8[%c0_9, %c0_10, %c0_11], %13 {strides = array<i32>} : memref<18x32x4xf32, #tpu.memory_space<vmem>>, vector<1x32x4xf32>,
    %c17 = arith.constant 17 : index
    %c0_12 = arith.constant 0 : index
    %c0_13 = arith.constant 0 : index
    %16 = vector.load %arg8[%c17, %c0_12, %c0_13] : memref<18x32x4xf32, #tpu.memory_space<vmem>>, vector<1x32x4xf32>
    tpu.vector_store %arg8[%c17, %c0_12, %c0_13], %13 {strides = array<i32>} : memref<18x32x4xf32, #tpu.memory_space<vmem>>, vector<1x32x4xf32>,
    %c1 = arith.constant 1 : index
    %c0_14 = arith.constant 0 : index
    %c0_15 = arith.constant 0 : index
    %17 = vector.load %arg8[%c1, %c0_14, %c0_15] : memref<18x32x4xf32, #tpu.memory_space<vmem>>, vector<16x8x4xf32>
    tpu.vector_store %arg8[%c1, %c0_14, %c0_15], %14 {strides = array<i32>} : memref<18x32x4xf32, #tpu.memory_space<vmem>>, vector<16x8x4xf32>,
    %c1_16 = arith.constant 1 : index
    %c24 = arith.constant 24 : index
    %c0_17 = arith.constant 0 : index
    %18 = vector.load %arg8[%c1_16, %c24, %c0_17] : memref<18x32x4xf32, #tpu.memory_space<vmem>>, vector<16x8x4xf32>
    tpu.vector_store %arg8[%c1_16, %c24, %c0_17], %14 {strides = array<i32>} : memref<18x32x4xf32, #tpu.memory_space<vmem>>, vector<16x8x4xf32>,
    %c1_18 = arith.constant 1 : index
    %c8 = arith.constant 8 : index
    %c0_19 = arith.constant 0 : index
    %19 = vector.load %arg8[%c1_18, %c8, %c0_19] : memref<18x32x4xf32, #tpu.memory_space<vmem>>, vector<16x16x4xf32>
    tpu.vector_store %arg8[%c1_18, %c8, %c0_19], %12 {strides = array<i32>} : memref<18x32x4xf32, #tpu.memory_space<vmem>>, vector<16x16x4xf32>,
    %c0_20 = arith.constant 0 : index
    %c7 = arith.constant 7 : index
    %c0_21 = arith.constant 0 : index
    %20 = vector.load %arg8[%c0_20, %c7, %c0_21] : memref<18x32x4xf32, #tpu.memory_space<vmem>>, vector<16x16x4xf32>
    %21 = arith.truncf %20 : vector<16x16x4xf32> to vector<16x16x4xbf16>
    %c0_22 = arith.constant 0 : index
    %c0_23 = arith.constant 0 : index
    %c0_24 = arith.constant 0 : index
    %22 = vector.load %arg9[%c0_22, %c0_23, %c0_24] : memref<16x16x36xbf16, #tpu.memory_space<vmem>>, vector<16x16x4xbf16>
    tpu.vector_store %arg9[%c0_22, %c0_23, %c0_24], %21 {strides = array<i32>} : memref<16x16x36xbf16, #tpu.memory_space<vmem>>, vector<16x16x4xbf16>,
    %c0_25 = arith.constant 0 : index
    %c8_26 = arith.constant 8 : index
    %c0_27 = arith.constant 0 : index
    %23 = vector.load %arg8[%c0_25, %c8_26, %c0_27] : memref<18x32x4xf32, #tpu.memory_space<vmem>>, vector<16x16x4xf32>
    %24 = arith.truncf %23 : vector<16x16x4xf32> to vector<16x16x4xbf16>
    %c0_28 = arith.constant 0 : index
    %c0_29 = arith.constant 0 : index
    %c4 = arith.constant 4 : index
    %25 = vector.load %arg9[%c0_28, %c0_29, %c4] : memref<16x16x36xbf16, #tpu.memory_space<vmem>>, vector<16x16x4xbf16>
    tpu.vector_store %arg9[%c0_28, %c0_29, %c4], %24 {strides = array<i32>} : memref<16x16x36xbf16, #tpu.memory_space<vmem>>, vector<16x16x4xbf16>,
    %c0_30 = arith.constant 0 : index
    %c9 = arith.constant 9 : index
    %c0_31 = arith.constant 0 : index
    %26 = vector.load %arg8[%c0_30, %c9, %c0_31] : memref<18x32x4xf32, #tpu.memory_space<vmem>>, vector<16x16x4xf32>
    %27 = arith.truncf %26 : vector<16x16x4xf32> to vector<16x16x4xbf16>
    %c0_32 = arith.constant 0 : index
    %c0_33 = arith.constant 0 : index
    %c8_34 = arith.constant 8 : index
    %28 = vector.load %arg9[%c0_32, %c0_33, %c8_34] : memref<16x16x36xbf16, #tpu.memory_space<vmem>>, vector<16x16x4xbf16>
    tpu.vector_store %arg9[%c0_32, %c0_33, %c8_34], %27 {strides = array<i32>} : memref<16x16x36xbf16, #tpu.memory_space<vmem>>, vector<16x16x4xbf16>,
    %c1_35 = arith.constant 1 : index
    %c7_36 = arith.constant 7 : index
    %c0_37 = arith.constant 0 : index
    %29 = vector.load %arg8[%c1_35, %c7_36, %c0_37] : memref<18x32x4xf32, #tpu.memory_space<vmem>>, vector<16x16x4xf32>
    %30 = arith.truncf %29 : vector<16x16x4xf32> to vector<16x16x4xbf16>
    %c0_38 = arith.constant 0 : index
    %c0_39 = arith.constant 0 : index
    %c12 = arith.constant 12 : index
    %31 = vector.load %arg9[%c0_38, %c0_39, %c12] : memref<16x16x36xbf16, #tpu.memory_space<vmem>>, vector<16x16x4xbf16>
    tpu.vector_store %arg9[%c0_38, %c0_39, %c12], %30 {strides = array<i32>} : memref<16x16x36xbf16, #tpu.memory_space<vmem>>, vector<16x16x4xbf16>,
    %c1_40 = arith.constant 1 : index
    %c8_41 = arith.constant 8 : index
    %c0_42 = arith.constant 0 : index
    %32 = vector.load %arg8[%c1_40, %c8_41, %c0_42] : memref<18x32x4xf32, #tpu.memory_space<vmem>>, vector<16x16x4xf32>
    %33 = arith.truncf %32 : vector<16x16x4xf32> to vector<16x16x4xbf16>
    %c0_43 = arith.constant 0 : index
    %c0_44 = arith.constant 0 : index
    %c16 = arith.constant 16 : index
    %34 = vector.load %arg9[%c0_43, %c0_44, %c16] : memref<16x16x36xbf16, #tpu.memory_space<vmem>>, vector<16x16x4xbf16>
    tpu.vector_store %arg9[%c0_43, %c0_44, %c16], %33 {strides = array<i32>} : memref<16x16x36xbf16, #tpu.memory_space<vmem>>, vector<16x16x4xbf16>,
    %c1_45 = arith.constant 1 : index
    %c9_46 = arith.constant 9 : index
    %c0_47 = arith.constant 0 : index
    %35 = vector.load %arg8[%c1_45, %c9_46, %c0_47] : memref<18x32x4xf32, #tpu.memory_space<vmem>>, vector<16x16x4xf32>
    %36 = arith.truncf %35 : vector<16x16x4xf32> to vector<16x16x4xbf16>
    %c0_48 = arith.constant 0 : index
    %c0_49 = arith.constant 0 : index
    %c20 = arith.constant 20 : index
    %37 = vector.load %arg9[%c0_48, %c0_49, %c20] : memref<16x16x36xbf16, #tpu.memory_space<vmem>>, vector<16x16x4xbf16>
    tpu.vector_store %arg9[%c0_48, %c0_49, %c20], %36 {strides = array<i32>} : memref<16x16x36xbf16, #tpu.memory_space<vmem>>, vector<16x16x4xbf16>,
    %c2 = arith.constant 2 : index
    %c7_50 = arith.constant 7 : index
    %c0_51 = arith.constant 0 : index
    %38 = vector.load %arg8[%c2, %c7_50, %c0_51] : memref<18x32x4xf32, #tpu.memory_space<vmem>>, vector<16x16x4xf32>
    %39 = arith.truncf %38 : vector<16x16x4xf32> to vector<16x16x4xbf16>
    %c0_52 = arith.constant 0 : index
    %c0_53 = arith.constant 0 : index
    %c24_54 = arith.constant 24 : index
    %40 = vector.load %arg9[%c0_52, %c0_53, %c24_54] : memref<16x16x36xbf16, #tpu.memory_space<vmem>>, vector<16x16x4xbf16>
    tpu.vector_store %arg9[%c0_52, %c0_53, %c24_54], %39 {strides = array<i32>} : memref<16x16x36xbf16, #tpu.memory_space<vmem>>, vector<16x16x4xbf16>,
    %c2_55 = arith.constant 2 : index
    %c8_56 = arith.constant 8 : index
    %c0_57 = arith.constant 0 : index
    %41 = vector.load %arg8[%c2_55, %c8_56, %c0_57] : memref<18x32x4xf32, #tpu.memory_space<vmem>>, vector<16x16x4xf32>
    %42 = arith.truncf %41 : vector<16x16x4xf32> to vector<16x16x4xbf16>
    %c0_58 = arith.constant 0 : index
    %c0_59 = arith.constant 0 : index
    %c28 = arith.constant 28 : index
    %43 = vector.load %arg9[%c0_58, %c0_59, %c28] : memref<16x16x36xbf16, #tpu.memory_space<vmem>>, vector<16x16x4xbf16>
    tpu.vector_store %arg9[%c0_58, %c0_59, %c28], %42 {strides = array<i32>} : memref<16x16x36xbf16, #tpu.memory_space<vmem>>, vector<16x16x4xbf16>,
    %c2_60 = arith.constant 2 : index
    %c9_61 = arith.constant 9 : index
    %c0_62 = arith.constant 0 : index
    %44 = vector.load %arg8[%c2_60, %c9_61, %c0_62] : memref<18x32x4xf32, #tpu.memory_space<vmem>>, vector<16x16x4xf32>
    %45 = arith.truncf %44 : vector<16x16x4xf32> to vector<16x16x4xbf16>
    %c0_63 = arith.constant 0 : index
    %c0_64 = arith.constant 0 : index
    %c32 = arith.constant 32 : index
    %46 = vector.load %arg9[%c0_63, %c0_64, %c32] : memref<16x16x36xbf16, #tpu.memory_space<vmem>>, vector<16x16x4xbf16>
    tpu.vector_store %arg9[%c0_63, %c0_64, %c32], %45 {strides = array<i32>} : memref<16x16x36xbf16, #tpu.memory_space<vmem>>, vector<16x16x4xbf16>,
    %c0_65 = arith.constant 0 : index
    %c0_66 = arith.constant 0 : index
    %c0_67 = arith.constant 0 : index
    %47 = vector.load %arg9[%c0_65, %c0_66, %c0_67] : memref<16x16x36xbf16, #tpu.memory_space<vmem>>, vector<16x16x36xbf16>
    %48 = vector.shape_cast %47 : vector<16x16x36xbf16> to vector<256x36xbf16>
    %c0_68 = arith.constant 0 : index
    %c0_69 = arith.constant 0 : index
    %49 = vector.load %arg4[%c0_68, %c0_69] : memref<36x4xbf16, #tpu.memory_space<vmem>>, vector<36x4xbf16>
    %cst_70 = arith.constant dense<0.000000e+00> : vector<256x4xf32>
    %50 = tpu.matmul %48, %49, %cst_70 {dimension_numbers = #tpu.dot_dimension_numbers<[1], [0], [0], [1], [0, 0, 1, 1], [], []>} : vector<256x36xbf16>, vector<36x4xbf16>, vector<256x4xf32> -> vector<256x4xf32>
    %51 = vector.shape_cast %50 : vector<256x4xf32> to vector<1x16x16x4xf32>
    %52 = arith.truncf %51 : vector<1x16x16x4xf32> to vector<1x16x16x4xbf16>
    %c0_71 = arith.constant 0 : index
    %c0_72 = arith.constant 0 : index
    %c0_73 = arith.constant 0 : index
    %c0_74 = arith.constant 0 : index
    %53 = vector.load %arg5[%c0_71, %c0_72, %c0_73, %c0_74] : memref<1x16x16x4xbf16, #tpu.memory_space<vmem>>, vector<1x16x16x4xbf16>
    tpu.vector_store %arg5[%c0_71, %c0_72, %c0_73, %c0_74], %52 {strides = array<i32>} : memref<1x16x16x4xbf16, #tpu.memory_space<vmem>>, vector<1x16x16x4xbf16>,
    %cst_75 = arith.constant dense<0.000000e+00> : vector<4xf32>
    %54 = vector.multi_reduction <add>, %50, %cst_75 [0] : vector<256x4xf32> to vector<4xf32>
    %55 = vector.shape_cast %54 : vector<4xf32> to vector<1x4xf32>
    %56 = vector.shape_cast %55 : vector<1x4xf32> to vector<1x1x4xf32>
    %c0_76 = arith.constant 0 : index
    %c0_77 = arith.constant 0 : index
    %c0_78 = arith.constant 0 : index
    %57 = vector.load %arg6[%c0_76, %c0_77, %c0_78] : memref<1x1x4xf32, #tpu.memory_space<vmem>>, vector<1x1x4xf32>
    tpu.vector_store %arg6[%c0_76, %c0_77, %c0_78], %56 {strides = array<i32>} : memref<1x1x4xf32, #tpu.memory_space<vmem>>, vector<1x1x4xf32>,
    %58 = arith.mulf %50, %50 : vector<256x4xf32>
    %cst_79 = arith.constant dense<0.000000e+00> : vector<4xf32>
    %59 = vector.multi_reduction <add>, %58, %cst_79 [0] : vector<256x4xf32> to vector<4xf32>
    %60 = vector.shape_cast %59 : vector<4xf32> to vector<1x4xf32>
    %61 = vector.shape_cast %60 : vector<1x4xf32> to vector<1x1x4xf32>
    %c0_80 = arith.constant 0 : index
    %c0_81 = arith.constant 0 : index
    %c0_82 = arith.constant 0 : index
    %62 = vector.load %arg7[%c0_80, %c0_81, %c0_82] : memref<1x1x4xf32, #tpu.memory_space<vmem>>, vector<1x1x4xf32>
    tpu.vector_store %arg7[%c0_80, %c0_81, %c0_82], %61 {strides = array<i32>} : memref<1x1x4xf32, #tpu.memory_space<vmem>>, vector<1x1x4xf32>,
    return
  }
  func.func @transform_0(%arg0: i32) -> (i32, i32, i32, i32) {
    %c0_i32 = arith.constant 0 : i32
    %c0_i32_0 = arith.constant 0 : i32
    %c0_i32_1 = arith.constant 0 : i32
    %c0_i32_2 = arith.constant 0 : i32
    return %arg0, %c0_i32, %c0_i32_0, %c0_i32_1 : i32, i32, i32, i32
  }
  func.func @transform_1(%arg0: i32) -> (i32, i32) {
    %c0_i32 = arith.constant 0 : i32
    %c0_i32_0 = arith.constant 0 : i32
    %c0_i32_1 = arith.constant 0 : i32
    return %c0_i32, %c0_i32_0 : i32, i32
  }
  func.func @transform_2(%arg0: i32) -> (i32, i32) {
    %c0_i32 = arith.constant 0 : i32
    %c0_i32_0 = arith.constant 0 : i32
    %c0_i32_1 = arith.constant 0 : i32
    return %c0_i32, %c0_i32_0 : i32, i32
  }
  func.func @transform_3(%arg0: i32) -> (i32, i32) {
    %c0_i32 = arith.constant 0 : i32
    %c0_i32_0 = arith.constant 0 : i32
    %c0_i32_1 = arith.constant 0 : i32
    return %c0_i32, %c0_i32_0 : i32, i32
  }
  func.func @transform_4(%arg0: i32) -> (i32, i32, i32, i32) {
    %c0_i32 = arith.constant 0 : i32
    %c0_i32_0 = arith.constant 0 : i32
    %c0_i32_1 = arith.constant 0 : i32
    %c0_i32_2 = arith.constant 0 : i32
    return %arg0, %c0_i32, %c0_i32_0, %c0_i32_1 : i32, i32, i32, i32
  }
  func.func @transform_5(%arg0: i32) -> (i32, i32, i32) {
    %c0_i32 = arith.constant 0 : i32
    %c0_i32_0 = arith.constant 0 : i32
    %c0_i32_1 = arith.constant 0 : i32
    return %arg0, %c0_i32, %c0_i32_0 : i32, i32, i32
  }
  func.func @transform_6(%arg0: i32) -> (i32, i32, i32) {
    %c0_i32 = arith.constant 0 : i32
    %c0_i32_0 = arith.constant 0 : i32
    %c0_i32_1 = arith.constant 0 : i32
    return %arg0, %c0_i32, %c0_i32_0 : i32, i32, i32
  }
}

module attributes {stable_mosaic.version = 11 : i64} {
  func.func @bn_add_relu_kernel(%arg0: i32, %arg1: memref<1x8x128xbf16, #tpu.memory_space<vmem>>, %arg2: memref<1x8x128xf32, #tpu.memory_space<vmem>>, %arg3: memref<1x1x128xf32, #tpu.memory_space<vmem>>, %arg4: memref<1x1x128xf32, #tpu.memory_space<vmem>>, %arg5: memref<1x8x128xf32, #tpu.memory_space<vmem>>) attributes {dimension_semantics = [#tpu.dimension_semantics<parallel>], iteration_bounds = array<i64: 2>, scalar_prefetch = 0 : i64, scratch_operands = 0 : i64, tpu.core_type = #tpu.core_type<tc>, window_params = [{transform_indices = @transform_0, window_bounds = array<i64: 1, 8, 128>}, {transform_indices = @transform_1, window_bounds = array<i64: 1, 8, 128>}, {pipeline_mode = #tpu.pipeline_mode<synchronous>, transform_indices = @transform_2, window_bounds = array<i64: 1, 1, 128>}, {pipeline_mode = #tpu.pipeline_mode<synchronous>, transform_indices = @transform_3, window_bounds = array<i64: 1, 1, 128>}, {transform_indices = @transform_4, window_bounds = array<i64: 1, 8, 128>}]} {
    %c0 = arith.constant 0 : index
    %c0_0 = arith.constant 0 : index
    %c0_1 = arith.constant 0 : index
    %0 = vector.load %arg1[%c0, %c0_0, %c0_1] : memref<1x8x128xbf16, #tpu.memory_space<vmem>>, vector<1x8x128xbf16>
    %1 = arith.extf %0 : vector<1x8x128xbf16> to vector<1x8x128xf32>
    %c0_2 = arith.constant 0 : index
    %c0_3 = arith.constant 0 : index
    %c0_4 = arith.constant 0 : index
    %2 = vector.load %arg3[%c0_2, %c0_3, %c0_4] : memref<1x1x128xf32, #tpu.memory_space<vmem>>, vector<1x1x128xf32>
    %3 = vector.broadcast %2 : vector<1x1x128xf32> to vector<1x8x128xf32>
    %4 = arith.mulf %1, %3 : vector<1x8x128xf32>
    %c0_5 = arith.constant 0 : index
    %c0_6 = arith.constant 0 : index
    %c0_7 = arith.constant 0 : index
    %5 = vector.load %arg4[%c0_5, %c0_6, %c0_7] : memref<1x1x128xf32, #tpu.memory_space<vmem>>, vector<1x1x128xf32>
    %6 = vector.broadcast %5 : vector<1x1x128xf32> to vector<1x8x128xf32>
    %7 = arith.addf %4, %6 : vector<1x8x128xf32>
    %c0_8 = arith.constant 0 : index
    %c0_9 = arith.constant 0 : index
    %c0_10 = arith.constant 0 : index
    %8 = vector.load %arg2[%c0_8, %c0_9, %c0_10] : memref<1x8x128xf32, #tpu.memory_space<vmem>>, vector<1x8x128xf32>
    %9 = arith.addf %7, %8 : vector<1x8x128xf32>
    %cst = arith.constant 0.000000e+00 : f32
    %10 = vector.broadcast %cst : f32 to vector<1x8x128xf32>
    %11 = arith.maximumf %9, %10 : vector<1x8x128xf32>
    %c0_11 = arith.constant 0 : index
    %c0_12 = arith.constant 0 : index
    %c0_13 = arith.constant 0 : index
    %12 = vector.load %arg5[%c0_11, %c0_12, %c0_13] : memref<1x8x128xf32, #tpu.memory_space<vmem>>, vector<1x8x128xf32>
    tpu.vector_store %arg5[%c0_11, %c0_12, %c0_13], %11 {strides = array<i32>} : memref<1x8x128xf32, #tpu.memory_space<vmem>>, vector<1x8x128xf32>,
    return
  }
  func.func @transform_0(%arg0: i32) -> (i32, i32, i32) {
    %c0_i32 = arith.constant 0 : i32
    %c0_i32_0 = arith.constant 0 : i32
    %c0_i32_1 = arith.constant 0 : i32
    return %arg0, %c0_i32, %c0_i32_0 : i32, i32, i32
  }
  func.func @transform_1(%arg0: i32) -> (i32, i32, i32) {
    %c0_i32 = arith.constant 0 : i32
    %c0_i32_0 = arith.constant 0 : i32
    %c0_i32_1 = arith.constant 0 : i32
    return %arg0, %c0_i32, %c0_i32_0 : i32, i32, i32
  }
  func.func @transform_2(%arg0: i32) -> (i32, i32, i32) {
    %c0_i32 = arith.constant 0 : i32
    %c0_i32_0 = arith.constant 0 : i32
    %c0_i32_1 = arith.constant 0 : i32
    %c0_i32_2 = arith.constant 0 : i32
    return %c0_i32, %c0_i32_0, %c0_i32_1 : i32, i32, i32
  }
  func.func @transform_3(%arg0: i32) -> (i32, i32, i32) {
    %c0_i32 = arith.constant 0 : i32
    %c0_i32_0 = arith.constant 0 : i32
    %c0_i32_1 = arith.constant 0 : i32
    %c0_i32_2 = arith.constant 0 : i32
    return %c0_i32, %c0_i32_0, %c0_i32_1 : i32, i32, i32
  }
  func.func @transform_4(%arg0: i32) -> (i32, i32, i32) {
    %c0_i32 = arith.constant 0 : i32
    %c0_i32_0 = arith.constant 0 : i32
    %c0_i32_1 = arith.constant 0 : i32
    return %arg0, %c0_i32, %c0_i32_0 : i32, i32, i32
  }
}

</mosaic_0001>

<llo_original>
// kernel: tile.18
$region0: #{tile.18}
  #allocation0 [shape = 's32[1]{0}', space=sflag, size = 0x4, scoped, tag = 'scoped memory for tile.18']
  %s0 = inlined_call_operand.vmem [shape: f32[4], index: 0, kind: input, shape index: {}]
  %s1 = inlined_call_operand.vmem [shape: f32[32,4], index: 1, kind: output, shape index: {}]
  // Predicated region
  $region2: #{tile.18} parent=0 // pred_check
    _
  $region3: #{tile.18} parent=0 // pred_check_branch
    %3 = sbr.rel (0) target = $region5
  $region4: #{tile.18} parent=0 // pred_region
    _
  $region5: #{tile.18} parent=0 // pred_fallthru
    _
  %v4 = vld [vmem:[%s0] ss:$0 sm:$0xff]
  %5 = vst [vmem:[%s1] sm:$0xff] %v4
  %s6 = scalar_lea.vmem %s1, 8
  %7 = vst [vmem:[%s6] sm:$0xff] %v4
  %s8 = scalar_lea.vmem %s1, 16
  %9 = vst [vmem:[%s8] sm:$0xff] %v4
  %s10 = scalar_lea.vmem %s1, 24
  %11 = vst [vmem:[%s10] sm:$0xff] %v4

// kernel: tile.19
$region0: #{tile.19}
  %s0 = inlined_call_operand.vmem [shape: f32[32,4], index: 0, kind: input, shape index: {}]
  %s1 = inlined_call_operand.vmem [shape: f32[1,1,128], index: 1, kind: output, shape index: {}]
  $region1: #{tile.19} parent=0
    #allocation0 [shape = 'u8[4096]{0}', space=vmem, size = 0x1000, scoped, tag = 'scoped mem for output reshape']
    %v2 = vld [vmem:[%s0] sm:$0x1]
    %vm3 = vcmask 31744
    %4 = vst.msk [vmem:[#allocation0] sm:$0x1] %vm3, %v2
    %s5 = scalar_lea.vmem %s0, 31
    %v6 = vld [vmem:[%s5] sm:$0x1]
    %7 = vrot.lane.b32.xlu0 %v6, 124
    %v8 = vpop.permute.xlu0 %7
    %vm9 = vcmask 1048544
    %10 = vst.msk [vmem:[#allocation0] sm:$0x1] %vm9, %v8
    %s11 = scalar_lea.vmem %s0, 30
    %v12 = vld [vmem:[%s11] sm:$0x1]
    %13 = vrot.lane.b32.xlu0 %v12, 120
    %v14 = vpop.permute.xlu0 %13
    %vm15 = vcmask 1015744
    %16 = vst.msk [vmem:[#allocation0] sm:$0x1] %vm15, %v14
    %s17 = scalar_lea.vmem %s0, 29
    %v18 = vld [vmem:[%s17] sm:$0x1]
    %19 = vrot.lane.b32.xlu0 %v18, 116
    %v20 = vpop.permute.xlu0 %19
    %vm21 = vcmask 982944
    %22 = vst.msk [vmem:[#allocation0] sm:$0x1] %vm21, %v20
    %s23 = scalar_lea.vmem %s0, 28
    %v24 = vld [vmem:[%s23] sm:$0x1]
    %25 = vrot.lane.b32.xlu0 %v24, 112
    %v26 = vpop.permute.xlu0 %25
    %vm27 = vcmask 950144
    %28 = vst.msk [vmem:[#allocation0] sm:$0x1] %vm27, %v26
    %s29 = scalar_lea.vmem %s0, 27
    %v30 = vld [vmem:[%s29] sm:$0x1]
    %31 = vrot.lane.b32.xlu0 %v30, 108
    %v32 = vpop.permute.xlu0 %31
    %vm33 = vcmask 917344
    %34 = vst.msk [vmem:[#allocation0] sm:$0x1] %vm33, %v32
    %s35 = scalar_lea.vmem %s0, 26
    %v36 = vld [vmem:[%s35] sm:$0x1]
    %37 = vrot.lane.b32.xlu0 %v36, 104
    %v38 = vpop.permute.xlu0 %37
    %vm39 = vcmask 884544
    %40 = vst.msk [vmem:[#allocation0] sm:$0x1] %vm39, %v38
    %s41 = scalar_lea.vmem %s0, 25
    %v42 = vld [vmem:[%s41] sm:$0x1]
    %43 = vrot.lane.b32.xlu0 %v42, 100
    %v44 = vpop.permute.xlu0 %43
    %vm45 = vcmask 851744
    %46 = vst.msk [vmem:[#allocation0] sm:$0x1] %vm45, %v44
    %s47 = scalar_lea.vmem %s0, 24
    %v48 = vld [vmem:[%s47] sm:$0x1]
    %49 = vrot.lane.b32.xlu0 %v48, 96
    %v50 = vpop.permute.xlu0 %49
    %vm51 = vcmask 818944
    %52 = vst.msk [vmem:[#allocation0] sm:$0x1] %vm51, %v50
    %s53 = scalar_lea.vmem %s0, 23
    %v54 = vld [vmem:[%s53] sm:$0x1]
    %55 = vrot.lane.b32.xlu0 %v54, 92
    %v56 = vpop.permute.xlu0 %55
    %vm57 = vcmask 786144
    %58 = vst.msk [vmem:[#allocation0] sm:$0x1] %vm57, %v56
    %s59 = scalar_lea.vmem %s0, 22
    %v60 = vld [vmem:[%s59] sm:$0x1]
    %61 = vrot.lane.b32.xlu0 %v60, 88
    %v62 = vpop.permute.xlu0 %61
    %vm63 = vcmask 753344
    %64 = vst.msk [vmem:[#allocation0] sm:$0x1] %vm63, %v62
    %s65 = scalar_lea.vmem %s0, 21
    %v66 = vld [vmem:[%s65] sm:$0x1]
    %67 = vrot.lane.b32.xlu0 %v66, 84
    %v68 = vpop.permute.xlu0 %67
    %vm69 = vcmask 720544
    %70 = vst.msk [vmem:[#allocation0] sm:$0x1] %vm69, %v68
    %s71 = scalar_lea.vmem %s0, 20
    %v72 = vld [vmem:[%s71] sm:$0x1]
    %73 = vrot.lane.b32.xlu0 %v72, 80
    %v74 = vpop.permute.xlu0 %73
    %vm75 = vcmask 687744
    %76 = vst.msk [vmem:[#allocation0] sm:$0x1] %vm75, %v74
    %s77 = scalar_lea.vmem %s0, 19
    %v78 = vld [vmem:[%s77] sm:$0x1]
    %79 = vrot.lane.b32.xlu0 %v78, 76
    %v80 = vpop.permute.xlu0 %79
    %vm81 = vcmask 654944
    %82 = vst.msk [vmem:[#allocation0] sm:$0x1] %vm81, %v80
    %s83 = scalar_lea.vmem %s0, 18
    %v84 = vld [vmem:[%s83] sm:$0x1]
    %85 = vrot.lane.b32.xlu0 %v84, 72
    %v86 = vpop.permute.xlu0 %85
    %vm87 = vcmask 622144
    %88 = vst.msk [vmem:[#allocation0] sm:$0x1] %vm87, %v86
    %s89 = scalar_lea.vmem %s0, 17
    %v90 = vld [vmem:[%s89] sm:$0x1]
    %91 = vrot.lane.b32.xlu0 %v90, 68
    %v92 = vpop.permute.xlu0 %91
    %vm93 = vcmask 589344
    %94 = vst.msk [vmem:[#allocation0] sm:$0x1] %vm93, %v92
    %s95 = scalar_lea.vmem %s0, 16
    %v96 = vld [vmem:[%s95] sm:$0x1]
    %97 = vrot.lane.b32.xlu0 %v96, 64
    %v98 = vpop.permute.xlu0 %97
    %vm99 = vcmask 556544
    %100 = vst.msk [vmem:[#allocation0] sm:$0x1] %vm99, %v98
    %s101 = scalar_lea.vmem %s0, 15
    %v102 = vld [vmem:[%s101] sm:$0x1]
    %103 = vrot.lane.b32.xlu0 %v102, 60
    %v104 = vpop.permute.xlu0 %103
    %vm105 = vcmask 523744
    %106 = vst.msk [vmem:[#allocation0] sm:$0x1] %vm105, %v104
    %s107 = scalar_lea.vmem %s0, 14
    %v108 = vld [vmem:[%s107] sm:$0x1]
    %109 = vrot.lane.b32.xlu0 %v108, 56
    %v110 = vpop.permute.xlu0 %109
    %vm111 = vcmask 490944
    %112 = vst.msk [vmem:[#allocation0] sm:$0x1] %vm111, %v110
    %s113 = scalar_lea.vmem %s0, 13
    %v114 = vld [vmem:[%s113] sm:$0x1]
    %115 = vrot.lane.b32.xlu0 %v114, 52
    %v116 = vpop.permute.xlu0 %115
    %vm117 = vcmask 458144
    %118 = vst.msk [vmem:[#allocation0] sm:$0x1] %vm117, %v116
    %s119 = scalar_lea.vmem %s0, 12
    %v120 = vld [vmem:[%s119] sm:$0x1]
    %121 = vrot.lane.b32.xlu0 %v120, 48
    %v122 = vpop.permute.xlu0 %121
    %vm123 = vcmask 425344
    %124 = vst.msk [vmem:[#allocation0] sm:$0x1] %vm123, %v122
    %s125 = scalar_lea.vmem %s0, 11
    %v126 = vld [vmem:[%s125] sm:$0x1]
    %127 = vrot.lane.b32.xlu0 %v126, 44
    %v128 = vpop.permute.xlu0 %127
    %vm129 = vcmask 392544
    %130 = vst.msk [vmem:[#allocation0] sm:$0x1] %vm129, %v128
    %s131 = scalar_lea.vmem %s0, 10
    %v132 = vld [vmem:[%s131] sm:$0x1]
    %133 = vrot.lane.b32.xlu0 %v132, 40
    %v134 = vpop.permute.xlu0 %133
    %vm135 = vcmask 359744
    %136 = vst.msk [vmem:[#allocation0] sm:$0x1] %vm135, %v134
    %s137 = scalar_lea.vmem %s0, 9
    %v138 = vld [vmem:[%s137] sm:$0x1]
    %139 = vrot.lane.b32.xlu0 %v138, 36
    %v140 = vpop.permute.xlu0 %139
    %vm141 = vcmask 326944
    %142 = vst.msk [vmem:[#allocation0] sm:$0x1] %vm141, %v140
    %s143 = scalar_lea.vmem %s0, 8
    %v144 = vld [vmem:[%s143] sm:$0x1]
    %145 = vrot.lane.b32.xlu0 %v144, 32
    %v146 = vpop.permute.xlu0 %145
    %vm147 = vcmask 294144
    %148 = vst.msk [vmem:[#allocation0] sm:$0x1] %vm147, %v146
    %s149 = scalar_lea.vmem %s0, 7
    %v150 = vld [vmem:[%s149] sm:$0x1]
    %151 = vrot.lane.b32.xlu0 %v150, 28
    %v152 = vpop.permute.xlu0 %151
    %vm153 = vcmask 261344
    %154 = vst.msk [vmem:[#allocation0] sm:$0x1] %vm153, %v152
    %s155 = scalar_lea.vmem %s0, 6
    %v156 = vld [vmem:[%s155] sm:$0x1]
    %157 = vrot.lane.b32.xlu0 %v156, 24
    %v158 = vpop.permute.xlu0 %157
    %vm159 = vcmask 228544
    %160 = vst.msk [vmem:[#allocation0] sm:$0x1] %vm159, %v158
    %s161 = scalar_lea.vmem %s0, 5
    %v162 = vld [vmem:[%s161] sm:$0x1]
    %163 = vrot.lane.b32.xlu0 %v162, 20
    %v164 = vpop.permute.xlu0 %163
    %vm165 = vcmask 195744
    %166 = vst.msk [vmem:[#allocation0] sm:$0x1] %vm165, %v164
    %s167 = scalar_lea.vmem %s0, 4
    %v168 = vld [vmem:[%s167] sm:$0x1]
    %169 = vrot.lane.b32.xlu0 %v168, 16
    %v170 = vpop.permute.xlu0 %169
    %vm171 = vcmask 162944
    %172 = vst.msk [vmem:[#allocation0] sm:$0x1] %vm171, %v170
    %s173 = scalar_lea.vmem %s0, 3
    %v174 = vld [vmem:[%s173] sm:$0x1]
    %175 = vrot.lane.b32.xlu0 %v174, 12
    %v176 = vpop.permute.xlu0 %175
    %vm177 = vcmask 130144
    %178 = vst.msk [vmem:[#allocation0] sm:$0x1] %vm177, %v176
    %s179 = scalar_lea.vmem %s0, 2
    %v180 = vld [vmem:[%s179] sm:$0x1]
    %181 = vrot.lane.b32.xlu0 %v180, 8
    %v182 = vpop.permute.xlu0 %181
    %vm183 = vcmask 97344
    %184 = vst.msk [vmem:[#allocation0] sm:$0x1] %vm183, %v182
    %s185 = scalar_lea.vmem %s0, 1
    %v186 = vld [vmem:[%s185] sm:$0x1]
    %187 = vrot.lane.b32.xlu0 %v186, 4
    %v188 = vpop.permute.xlu0 %187
    %vm189 = vcmask 64544
    %190 = vst.msk [vmem:[#allocation0] sm:$0x1] %vm189, %v188
    %s192 = sshllo.u32 0, 1
    %v194 = vld [vmem:[#allocation0] sm:%s192]
    %s195 = sshllo.u32 0, 1
    %196 = vst [vmem:[%s1] sm:%s195] %v194

// kernel: residual_block_forward.5
$region0: #{residual_block_forward.5}
  #allocation0 [shape = 'u32[]', space=smem, size = 0x4, offset = 0x4, fixed_abs, tag = 'smem constant byte address 0x4 - core index']
  #allocation1 [shape = 'u32[144,128]{1,0:T(1,128)}', space=vmem, size = 0x12000, scoped, tag = 'internal scratch']
  %s0 = inlined_call_operand.vmem [shape: bf16[2,8,128], index: 0, kind: input, shape index: {}]
  %s1 = inlined_call_operand.vmem [shape: f32[2,8,128], index: 1, kind: input, shape index: {}]
  %s2 = inlined_call_operand.vmem [shape: f32[1,1,128], index: 2, kind: input, shape index: {}]
  %s3 = inlined_call_operand.vmem [shape: f32[1,1,128], index: 3, kind: input, shape index: {}]
  %s4 = inlined_call_operand.vmem [shape: f32[2,8,128], index: 4, kind: output, shape index: {}]
  %s5 = sld [smem:[#allocation0]]
  $region49: #{residual_block_forward.5} parent=0
    _
  %s7 = ssub.s32 1, %s5
  %s8 = scalar_select 0, %s7, %s5
  loop: start=0, step=1, limit=4
  $region2: #{residual_block_forward.5} parent=0 // loop_pre_header
    _
  $region3: #{residual_block_forward.5} parent=0 // loop_header
    %s10 = sphi 0, %s14
    %p11 = scmp.ge.s32.totalorder %s10, 4
    %s20 = sphi 0, %s22
    %s23 = sphi 0, %s20
    %s24 = sphi 0, %s23
    %s40 = sphi 0, %s24
    %s46 = sphi 0, %s48
    %s49 = sphi 0, %s46
    %s50 = sphi 0, %s49
    %s66 = sphi 0, %s50
    %s70 = sphi 0, %s70
    %s72 = sphi 0, %s70
    %s73 = sphi 0, %s72
    %s87 = sphi 0, %s73
    %s91 = sphi 0, %s91
    %s93 = sphi 0, %s91
    %s94 = sphi 0, %s93
    %s108 = sphi 0, %s94
    %s114 = sphi 0, %s116
    %s117 = sphi 0, %s114
    %s118 = sphi 0, %s117
    %s134 = sphi 0, %s118
  $region4: #{residual_block_forward.5} parent=0 // loop_header_branch
    %13 = sbr.rel (%p11) target = $region8
  $region5: #{residual_block_forward.5} parent=0 // loop_body
    %s15 = ssub.s32 %s10, 1
    %s16 = ssub.s32 %s10, 2
    %s17 = sadd.s32 %s10, 1
    %s18 = ssub.s32 %s10, %s17
    %p19 = scmp.eq.s32.totalorder %s18, 0
    %s21 = sadd.s32 %s20, 1
    %s22 = scalar_select %p19, %s20, %s21
    %p25 = pneg %p19
    %p26 = scmp.eq.s32.totalorder %s10, 1
    %p27 = por %p25, %p26
    %p28 = scmp.ne.s32.totalorder %s20, %s23
    %p29 = scmp.eq.s32.totalorder %s10, 0
    %p30 = por %p28, %p29
    %p31 = scmp.ne.s32.totalorder %s20, %s23
    %p32 = scmp.eq.s32.totalorder %s15, 1
    %p33 = por %p31, %p32
    %p34 = scmp.ne.s32.totalorder %s23, %s24
    %p35 = scmp.eq.s32.totalorder %s15, 0
    %p36 = por %p34, %p35
    %p37 = scmp.ne.s32.totalorder %s23, %s24
    %p38 = scmp.eq.s32.totalorder %s16, 1
    %p39 = por %p37, %p38
    %p41 = scmp.ne.s32.totalorder %s24, %s40
    %p42 = scmp.eq.s32.totalorder %s16, 0
    %p43 = por %p41, %p42
    %s44 = ssub.s32 %s10, %s17
    %p45 = scmp.eq.s32.totalorder %s44, 0
    %s47 = sadd.s32 %s46, 1
    %s48 = scalar_select %p45, %s46, %s47
    %p51 = pneg %p45
    %p52 = scmp.eq.s32.totalorder %s10, 1
    %p53 = por %p51, %p52
    %p54 = scmp.ne.s32.totalorder %s46, %s49
    %p55 = scmp.eq.s32.totalorder %s10, 0
    %p56 = por %p54, %p55
    %p57 = scmp.ne.s32.totalorder %s46, %s49
    %p58 = scmp.eq.s32.totalorder %s15, 1
    %p59 = por %p57, %p58
    %p60 = scmp.ne.s32.totalorder %s49, %s50
    %p61 = scmp.eq.s32.totalorder %s15, 0
    %p62 = por %p60, %p61
    %p63 = scmp.ne.s32.totalorder %s49, %s50
    %p64 = scmp.eq.s32.totalorder %s16, 1
    %p65 = por %p63, %p64
    %p67 = scmp.ne.s32.totalorder %s50, %s66
    %p68 = scmp.eq.s32.totalorder %s16, 0
    %p69 = por %p67, %p68
    %s71 = sadd.s32 %s70, 1
    %p74 = scmp.eq.s32.totalorder %s10, 1
    %p75 = scmp.ne.s32.totalorder %s70, %s72
    %p76 = scmp.eq.s32.totalorder %s10, 0
    %p77 = por %p75, %p76
    %p78 = scmp.ne.s32.totalorder %s70, %s72
    %p79 = scmp.eq.s32.totalorder %s15, 1
    %p80 = por %p78, %p79
    %p81 = scmp.ne.s32.totalorder %s72, %s73
    %p82 = scmp.eq.s32.totalorder %s15, 0
    %p83 = por %p81, %p82
    %p84 = scmp.ne.s32.totalorder %s72, %s73
    %p85 = scmp.eq.s32.totalorder %s16, 1
    %p86 = por %p84, %p85
    %p88 = scmp.ne.s32.totalorder %s73, %s87
    %p89 = scmp.eq.s32.totalorder %s16, 0
    %p90 = por %p88, %p89
    %s92 = sadd.s32 %s91, 1
    %p95 = scmp.eq.s32.totalorder %s10, 1
    %p96 = scmp.ne.s32.totalorder %s91, %s93
    %p97 = scmp.eq.s32.totalorder %s10, 0
    %p98 = por %p96, %p97
    %p99 = scmp.ne.s32.totalorder %s91, %s93
    %p100 = scmp.eq.s32.totalorder %s15, 1
    %p101 = por %p99, %p100
    %p102 = scmp.ne.s32.totalorder %s93, %s94
    %p103 = scmp.eq.s32.totalorder %s15, 0
    %p104 = por %p102, %p103
    %p105 = scmp.ne.s32.totalorder %s93, %s94
    %p106 = scmp.eq.s32.totalorder %s16, 1
    %p107 = por %p105, %p106
    %p109 = scmp.ne.s32.totalorder %s94, %s108
    %p110 = scmp.eq.s32.totalorder %s16, 0
    %p111 = por %p109, %p110
    %s112 = ssub.s32 %s10, %s17
    %p113 = scmp.eq.s32.totalorder %s112, 0
    %s115 = sadd.s32 %s114, 1
    %s116 = scalar_select %p113, %s114, %s115
    %p119 = pneg %p113
    %p120 = scmp.eq.s32.totalorder %s10, 1
    %p121 = por %p119, %p120
    %p122 = scmp.ne.s32.totalorder %s114, %s117
    %p123 = scmp.eq.s32.totalorder %s10, 0
    %p124 = por %p122, %p123
    %p125 = scmp.ne.s32.totalorder %s114, %s117
    %p126 = scmp.eq.s32.totalorder %s15, 1
    %p127 = por %p125, %p126
    %p128 = scmp.ne.s32.totalorder %s117, %s118
    %p129 = scmp.eq.s32.totalorder %s15, 0
    %p130 = por %p128, %p129
    %p131 = scmp.ne.s32.totalorder %s117, %s118
    %p132 = scmp.eq.s32.totalorder %s16, 1
    %p133 = por %p131, %p132
    %p135 = scmp.ne.s32.totalorder %s118, %s134
    %p136 = scmp.eq.s32.totalorder %s16, 0
    %p137 = por %p135, %p136
    %p138 = scmp.le.s32.totalorder 1, %s10
    %p139 = scmp.lt.s32.totalorder %s10, 3
    %p140 = pnand %p138, %p139
    %p141 = pneg %p140
    // Predicated region
    $region9: #{residual_block_forward.5} parent=5 // pred_check
      _
    $region10: #{residual_block_forward.5} parent=5 // pred_check_branch
      %143 = sbr.rel (%p140) target = $region12
    $region11: #{residual_block_forward.5} parent=5 // pred_region
      %s144 = ssub.s32 %s10, 1
      // Predicated region
      $region13: #{residual_block_forward.5} parent=11 // pred_check
        %p145 = pneg %p83
      $region14: #{residual_block_forward.5} parent=11 // pred_check_branch
        %147 = sbr.rel (%p145) target = $region16
      $region15: #{residual_block_forward.5} parent=11 // pred_region
        _
      $region16: #{residual_block_forward.5} parent=11 // pred_fallthru
        _
      // Predicated region
      $region17: #{residual_block_forward.5} parent=11 // pred_check
        %p148 = pneg %p104
      $region18: #{residual_block_forward.5} parent=11 // pred_check_branch
        %150 = sbr.rel (%p148) target = $region20
      $region19: #{residual_block_forward.5} parent=11 // pred_region
        _
      $region20: #{residual_block_forward.5} parent=11 // pred_fallthru
        _
    $region12: #{residual_block_forward.5} parent=5 // pred_fallthru
      _
    %p151 = scmp.lt.s32.totalorder %s10, 2
    // Predicated region
    $region21: #{residual_block_forward.5} parent=5 // pred_check
      %p152 = pneg %p151
    $region22: #{residual_block_forward.5} parent=5 // pred_check_branch
      %154 = sbr.rel (%p152) target = $region24
    $region23: #{residual_block_forward.5} parent=5 // pred_region
      // Predicated region
      $region25: #{residual_block_forward.5} parent=23 // pred_check
        %p155 = pneg %p30
      $region26: #{residual_block_forward.5} parent=23 // pred_check_branch
        %157 = sbr.rel (%p155) target = $region28
      $region27: #{residual_block_forward.5} parent=23 // pred_region
        %p158 = scmp.lt.s32.totalorder %s10, 1
        %s159 = scalar_select %p158, %s10, 1
        %s160 = smul.addr %s159, 4
        %s161 = scalar_lea.vmem %s0, %s160
      $region28: #{residual_block_forward.5} parent=23 // pred_fallthru
        _
      // Predicated region
      $region29: #{residual_block_forward.5} parent=23 // pred_check
        %p162 = pneg %p56
      $region30: #{residual_block_forward.5} parent=23 // pred_check_branch
        %164 = sbr.rel (%p162) target = $region32
      $region31: #{residual_block_forward.5} parent=23 // pred_region
        %p165 = scmp.lt.s32.totalorder %s10, 1
        %s166 = scalar_select %p165, %s10, 1
        %s167 = smul.addr %s166, 8
        %s168 = scalar_lea.vmem %s1, %s167
      $region32: #{residual_block_forward.5} parent=23 // pred_fallthru
        _
    $region24: #{residual_block_forward.5} parent=5 // pred_fallthru
      _
    %p169 = scmp.le.s32.totalorder 1, %s10
    %p170 = scmp.lt.s32.totalorder %s10, 3
    %p171 = pnand %p169, %p170
    %p172 = pneg %p171
    // Predicated region
    $region33: #{residual_block_forward.5} parent=5 // pred_check
      _
    $region34: #{residual_block_forward.5} parent=5 // pred_check_branch
      %174 = sbr.rel (%p171) target = $region36
    $region35: #{residual_block_forward.5} parent=5 // pred_region
      %s175 = ssub.s32 %s10, 1
      %p176 = scmp.lt.s32.totalorder %s15, 1
      %s177 = scalar_select %p176, %s15, 1
      %s178 = smul.addr %s177, 4
      %s179 = scalar_lea.vmem %s0, %s178
      %p180 = pneg %p36
      %p181 = pneg %p33
      %p182 = scmp.lt.s32.totalorder %s15, 1
      %s183 = scalar_select %p182, %s15, 1
      %s184 = smul.addr %s183, 8
      %s185 = scalar_lea.vmem %s1, %s184
      %p186 = pneg %p62
      %p187 = pneg %p59
      %p188 = pneg %p83
      %p189 = pneg %p80
      %p190 = pneg %p104
      %p191 = pneg %p101
      %p192 = pneg %p130
      %p193 = pneg %p127
      %p194 = scmp.lt.s32.totalorder %s15, 1
      %s195 = scalar_select %p194, %s15, 1
      %s196 = smul.addr %s195, 8
      %s197 = scalar_lea.vmem %s4, %s196
      %p198 = scmp.lt.s32.totalorder %s15, 1
      %s199 = scalar_select %p198, %s15, 1
      %s200 = smul.addr %s199, 4
      %s201 = scalar_lea.vmem %s0, %s200
      %p202 = scmp.lt.s32.totalorder %s15, 1
      %s203 = scalar_select %p202, %s15, 1
      %s204 = smul.addr %s203, 8
      %s205 = scalar_lea.vmem %s1, %s204
      %p206 = scmp.lt.s32.totalorder %s15, 1
      %s207 = scalar_select %p206, %s15, 1
      %s208 = smul.addr %s207, 8
      %s209 = scalar_lea.vmem %s4, %s208
      %v210 = vld [vmem:[%s201] sm:$0xf]
      %v211 = vunpack.c.l.bf16 %v210
      %v212 = vld [vmem:[%s2] sm:$0x1]
      %v214 = vlaneseq
      %v215 = vshrl.u32 %v214, 7
      %v216 = vsub.s32 0, %v215
      %v217 = vrot.slane %v212, %v216
      %v219 = vmul.f32 %v211, %v217
      %v220 = vld [vmem:[%s3] sm:$0x1]
      %v222 = vlaneseq
      %v223 = vshrl.u32 %v222, 7
      %v224 = vsub.s32 0, %v223
      %v225 = vrot.slane %v220, %v224
      %v227 = vadd.f32 %v219, %v225
      %v228 = vld [vmem:[%s205] sm:$0xff]
      %v229 = vadd.f32 %v227, %v228
      %v230 = vmax.f32 %v229, 0.0
      %231 = vst [vmem:[%s209] sm:$0xff] %v230
      %p232 = scmp.lt.s32.totalorder %s15, 1
      %s233 = scalar_select %p232, %s15, 1
      %s234 = smul.addr %s233, 8
      %s235 = scalar_lea.vmem %s4, %s234
      // Predicated region
      $region37: #{residual_block_forward.5} parent=35 // pred_check
        %p236 = pneg %p127
      $region38: #{residual_block_forward.5} parent=35 // pred_check_branch
        %238 = sbr.rel (%p236) target = $region40
      $region39: #{residual_block_forward.5} parent=35 // pred_region
        _
      $region40: #{residual_block_forward.5} parent=35 // pred_fallthru
        _
    $region36: #{residual_block_forward.5} parent=5 // pred_fallthru
      _
    %p239 = scmp.le.s32.totalorder 2, %s10
    // Predicated region
    $region41: #{residual_block_forward.5} parent=5 // pred_check
      %p240 = pneg %p239
    $region42: #{residual_block_forward.5} parent=5 // pred_check_branch
      %242 = sbr.rel (%p240) target = $region44
    $region43: #{residual_block_forward.5} parent=5 // pred_region
      %s243 = ssub.s32 %s10, 2
      // Predicated region
      $region45: #{residual_block_forward.5} parent=43 // pred_check
        %p244 = pneg %p133
      $region46: #{residual_block_forward.5} parent=43 // pred_check_branch
        %246 = sbr.rel (%p244) target = $region48
      $region47: #{residual_block_forward.5} parent=43 // pred_region
        %p247 = scmp.lt.s32.totalorder %s16, 1
        %s248 = scalar_select %p247, %s16, 1
        %s249 = smul.addr %s248, 8
        %s250 = scalar_lea.vmem %s4, %s249
      $region48: #{residual_block_forward.5} parent=43 // pred_fallthru
        _
    $region44: #{residual_block_forward.5} parent=5 // pred_fallthru
      _
  $region6: #{residual_block_forward.5} parent=0 // loop_footer
    %s14 = sadd.s32 1, %s10
  $region7: #{residual_block_forward.5} parent=0 // loop_footer_branch
    %9 = sbr.rel target = $region3
  $region8: #{residual_block_forward.5} parent=0 // loop_exit
    _

// kernel: residual_block_forward.3
$region0: #{residual_block_forward.3}
  #allocation0 [shape = 'u32[]', space=smem, size = 0x4, offset = 0x4, fixed_abs, tag = 'smem constant byte address 0x4 - core index']
  #allocation1 [shape = 'u32[144,128]{1,0:T(1,128)}', space=vmem, size = 0x12000, scoped, tag = 'internal scratch']
  #allocation2 [shape = 'f32[18,32,4]{2,1,0:T(8,128)}', space=vmem, size = 0x48000, scoped, tag = 'scratch operand']
  #allocation3 [shape = 'bf16[16,16,36]{2,1,0:T(16,128)(2,1)}', space=vmem, size = 0x10000, scoped, tag = 'scratch operand']
  %s0 = inlined_call_operand.vmem [shape: f32[2,16,16,4], index: 0, kind: input, shape index: {}]
  %s1 = inlined_call_operand.vmem [shape: bf16[36,4], index: 1, kind: input, shape index: {}]
  %s2 = inlined_call_operand.vmem [shape: bf16[2,16,16,4], index: 2, kind: output, shape index: {0}]
  %s3 = inlined_call_operand.vmem [shape: f32[2,1,4], index: 3, kind: output, shape index: {1}]
  %s4 = inlined_call_operand.vmem [shape: f32[2,1,4], index: 4, kind: output, shape index: {2}]
  %5 = xla_tuple %s2, %s3, %s4
  %s6 = sld [smem:[#allocation0]]
  $region57: #{residual_block_forward.3} parent=0
    _
  %s8 = ssub.s32 1, %s6
  %s9 = scalar_select 0, %s8, %s6
  loop: start=0, step=1, limit=4
  $region2: #{residual_block_forward.3} parent=0 // loop_pre_header
    _
  $region3: #{residual_block_forward.3} parent=0 // loop_header
    %s11 = sphi 0, %s15
    %p12 = scmp.ge.s32.totalorder %s11, 4
    %s21 = sphi 0, %s23
    %s24 = sphi 0, %s21
    %s25 = sphi 0, %s24
    %s41 = sphi 0, %s25
    %s45 = sphi 0, %s45
    %s47 = sphi 0, %s45
    %s48 = sphi 0, %s47
    %s62 = sphi 0, %s48
    %s68 = sphi 0, %s70
    %s71 = sphi 0, %s68
    %s72 = sphi 0, %s71
    %s88 = sphi 0, %s72
    %s94 = sphi 0, %s96
    %s97 = sphi 0, %s94
    %s98 = sphi 0, %s97
    %s114 = sphi 0, %s98
    %s120 = sphi 0, %s122
    %s123 = sphi 0, %s120
    %s124 = sphi 0, %s123
    %s140 = sphi 0, %s124
  $region4: #{residual_block_forward.3} parent=0 // loop_header_branch
    %14 = sbr.rel (%p12) target = $region8
  $region5: #{residual_block_forward.3} parent=0 // loop_body
    %s16 = ssub.s32 %s11, 1
    %s17 = ssub.s32 %s11, 2
    %s18 = sadd.s32 %s11, 1
    %s19 = ssub.s32 %s11, %s18
    %p20 = scmp.eq.s32.totalorder %s19, 0
    %s22 = sadd.s32 %s21, 1
    %s23 = scalar_select %p20, %s21, %s22
    %p26 = pneg %p20
    %p27 = scmp.eq.s32.totalorder %s11, 1
    %p28 = por %p26, %p27
    %p29 = scmp.ne.s32.totalorder %s21, %s24
    %p30 = scmp.eq.s32.totalorder %s11, 0
    %p31 = por %p29, %p30
    %p32 = scmp.ne.s32.totalorder %s21, %s24
    %p33 = scmp.eq.s32.totalorder %s16, 1
    %p34 = por %p32, %p33
    %p35 = scmp.ne.s32.totalorder %s24, %s25
    %p36 = scmp.eq.s32.totalorder %s16, 0
    %p37 = por %p35, %p36
    %p38 = scmp.ne.s32.totalorder %s24, %s25
    %p39 = scmp.eq.s32.totalorder %s17, 1
    %p40 = por %p38, %p39
    %p42 = scmp.ne.s32.totalorder %s25, %s41
    %p43 = scmp.eq.s32.totalorder %s17, 0
    %p44 = por %p42, %p43
    %s46 = sadd.s32 %s45, 1
    %p49 = scmp.eq.s32.totalorder %s11, 1
    %p50 = scmp.ne.s32.totalorder %s45, %s47
    %p51 = scmp.eq.s32.totalorder %s11, 0
    %p52 = por %p50, %p51
    %p53 = scmp.ne.s32.totalorder %s45, %s47
    %p54 = scmp.eq.s32.totalorder %s16, 1
    %p55 = por %p53, %p54
    %p56 = scmp.ne.s32.totalorder %s47, %s48
    %p57 = scmp.eq.s32.totalorder %s16, 0
    %p58 = por %p56, %p57
    %p59 = scmp.ne.s32.totalorder %s47, %s48
    %p60 = scmp.eq.s32.totalorder %s17, 1
    %p61 = por %p59, %p60
    %p63 = scmp.ne.s32.totalorder %s48, %s62
    %p64 = scmp.eq.s32.totalorder %s17, 0
    %p65 = por %p63, %p64
    %s66 = ssub.s32 %s11, %s18
    %p67 = scmp.eq.s32.totalorder %s66, 0
    %s69 = sadd.s32 %s68, 1
    %s70 = scalar_select %p67, %s68, %s69
    %p73 = pneg %p67
    %p74 = scmp.eq.s32.totalorder %s11, 1
    %p75 = por %p73, %p74
    %p76 = scmp.ne.s32.totalorder %s68, %s71
    %p77 = scmp.eq.s32.totalorder %s11, 0
    %p78 = por %p76, %p77
    %p79 = scmp.ne.s32.totalorder %s68, %s71
    %p80 = scmp.eq.s32.totalorder %s16, 1
    %p81 = por %p79, %p80
    %p82 = scmp.ne.s32.totalorder %s71, %s72
    %p83 = scmp.eq.s32.totalorder %s16, 0
    %p84 = por %p82, %p83
    %p85 = scmp.ne.s32.totalorder %s71, %s72
    %p86 = scmp.eq.s32.totalorder %s17, 1
    %p87 = por %p85, %p86
    %p89 = scmp.ne.s32.totalorder %s72, %s88
    %p90 = scmp.eq.s32.totalorder %s17, 0
    %p91 = por %p89, %p90
    %s92 = ssub.s32 %s11, %s18
    %p93 = scmp.eq.s32.totalorder %s92, 0
    %s95 = sadd.s32 %s94, 1
    %s96 = scalar_select %p93, %s94, %s95
    %p99 = pneg %p93
    %p100 = scmp.eq.s32.totalorder %s11, 1
    %p101 = por %p99, %p100
    %p102 = scmp.ne.s32.totalorder %s94, %s97
    %p103 = scmp.eq.s32.totalorder %s11, 0
    %p104 = por %p102, %p103
    %p105 = scmp.ne.s32.totalorder %s94, %s97
    %p106 = scmp.eq.s32.totalorder %s16, 1
    %p107 = por %p105, %p106
    %p108 = scmp.ne.s32.totalorder %s97, %s98
    %p109 = scmp.eq.s32.totalorder %s16, 0
    %p110 = por %p108, %p109
    %p111 = scmp.ne.s32.totalorder %s97, %s98
    %p112 = scmp.eq.s32.totalorder %s17, 1
    %p113 = por %p111, %p112
    %p115 = scmp.ne.s32.totalorder %s98, %s114
    %p116 = scmp.eq.s32.totalorder %s17, 0
    %p117 = por %p115, %p116
    %s118 = ssub.s32 %s11, %s18
    %p119 = scmp.eq.s32.totalorder %s118, 0
    %s121 = sadd.s32 %s120, 1
    %s122 = scalar_select %p119, %s120, %s121
    %p125 = pneg %p119
    %p126 = scmp.eq.s32.totalorder %s11, 1
    %p127 = por %p125, %p126
    %p128 = scmp.ne.s32.totalorder %s120, %s123
    %p129 = scmp.eq.s32.totalorder %s11, 0
    %p130 = por %p128, %p129
    %p131 = scmp.ne.s32.totalorder %s120, %s123
    %p132 = scmp.eq.s32.totalorder %s16, 1
    %p133 = por %p131, %p132
    %p134 = scmp.ne.s32.totalorder %s123, %s124
    %p135 = scmp.eq.s32.totalorder %s16, 0
    %p136 = por %p134, %p135
    %p137 = scmp.ne.s32.totalorder %s123, %s124
    %p138 = scmp.eq.s32.totalorder %s17, 1
    %p139 = por %p137, %p138
    %p141 = scmp.ne.s32.totalorder %s124, %s140
    %p142 = scmp.eq.s32.totalorder %s17, 0
    %p143 = por %p141, %p142
    %p144 = scmp.le.s32.totalorder 1, %s11
    %p145 = scmp.lt.s32.totalorder %s11, 3
    %p146 = pnand %p144, %p145
    %p147 = pneg %p146
    // Predicated region
    $region9: #{residual_block_forward.3} parent=5 // pred_check
      _
    $region10: #{residual_block_forward.3} parent=5 // pred_check_branch
      %149 = sbr.rel (%p146) target = $region12
    $region11: #{residual_block_forward.3} parent=5 // pred_region
      %s150 = ssub.s32 %s11, 1
      // Predicated region
      $region13: #{residual_block_forward.3} parent=11 // pred_check
        %p151 = pneg %p58
      $region14: #{residual_block_forward.3} parent=11 // pred_check_branch
        %153 = sbr.rel (%p151) target = $region16
      $region15: #{residual_block_forward.3} parent=11 // pred_region
        _
      $region16: #{residual_block_forward.3} parent=11 // pred_fallthru
        _
    $region12: #{residual_block_forward.3} parent=5 // pred_fallthru
      _
    %p154 = scmp.lt.s32.totalorder %s11, 2
    // Predicated region
    $region17: #{residual_block_forward.3} parent=5 // pred_check
      %p155 = pneg %p154
    $region18: #{residual_block_forward.3} parent=5 // pred_check_branch
      %157 = sbr.rel (%p155) target = $region20
    $region19: #{residual_block_forward.3} parent=5 // pred_region
      // Predicated region
      $region21: #{residual_block_forward.3} parent=19 // pred_check
        %p158 = pneg %p31
      $region22: #{residual_block_forward.3} parent=19 // pred_check_branch
        %160 = sbr.rel (%p158) target = $region24
      $region23: #{residual_block_forward.3} parent=19 // pred_region
        %p161 = scmp.lt.s32.totalorder %s11, 1
        %s162 = scalar_select %p161, %s11, 1
        %s163 = smul.addr %s162, 32
        %s164 = smul.addr %s163, 8
        %s165 = scalar_lea.vmem %s0, %s164
      $region24: #{residual_block_forward.3} parent=19 // pred_fallthru
        _
    $region20: #{residual_block_forward.3} parent=5 // pred_fallthru
      _
    %p166 = scmp.le.s32.totalorder 1, %s11
    %p167 = scmp.lt.s32.totalorder %s11, 3
    %p168 = pnand %p166, %p167
    %p169 = pneg %p168
    // Predicated region
    $region25: #{residual_block_forward.3} parent=5 // pred_check
      _
    $region26: #{residual_block_forward.3} parent=5 // pred_check_branch
      %171 = sbr.rel (%p168) target = $region28
    $region27: #{residual_block_forward.3} parent=5 // pred_region
      %s172 = ssub.s32 %s11, 1
      %p173 = scmp.lt.s32.totalorder %s16, 1
      %s174 = scalar_select %p173, %s16, 1
      %s175 = smul.addr %s174, 32
      %s176 = smul.addr %s175, 8
      %s177 = scalar_lea.vmem %s0, %s176
      %p178 = pneg %p37
      %p179 = pneg %p34
      %p180 = pneg %p58
      %p181 = pneg %p55
      %p182 = pneg %p84
      %p183 = pneg %p81
      %p184 = scmp.lt.s32.totalorder %s16, 1
      %s185 = scalar_select %p184, %s16, 1
      %s186 = smul.addr %s185, 32
      %s187 = smul.addr %s186, 4
      %s188 = scalar_lea.vmem %s2, %s187
      %p189 = pneg %p110
      %p190 = pneg %p107
      %p191 = scmp.lt.s32.totalorder %s16, 1
      %s192 = scalar_select %p191, %s16, 1
      %s193 = scalar_lea.vmem %s3, %s192
      %p194 = pneg %p136
      %p195 = pneg %p133
      %p196 = scmp.lt.s32.totalorder %s16, 1
      %s197 = scalar_select %p196, %s16, 1
      %s198 = scalar_lea.vmem %s4, %s197
      %p199 = scmp.lt.s32.totalorder %s16, 1
      %s200 = scalar_select %p199, %s16, 1
      %s201 = smul.addr %s200, 32
      %s202 = smul.addr %s201, 8
      %s203 = scalar_lea.vmem %s0, %s202
      %p204 = scmp.lt.s32.totalorder %s16, 1
      %s205 = scalar_select %p204, %s16, 1
      %s206 = smul.addr %s205, 32
      %s207 = smul.addr %s206, 4
      %s208 = scalar_lea.vmem %s2, %s207
      %p209 = scmp.lt.s32.totalorder %s16, 1
      %s210 = scalar_select %p209, %s16, 1
      %s211 = scalar_lea.vmem %s3, %s210
      %p212 = scmp.lt.s32.totalorder %s16, 1
      %s213 = scalar_select %p212, %s16, 1
      %s214 = scalar_lea.vmem %s4, %s213
      %v216 = vld [vmem:[%s203] sm:$0xff]
      %v217 = vld [vmem:[%s203 + $0x8] sm:$0xff]
      %v218 = vld [vmem:[%s203 + $0x10] sm:$0xff]
      %v219 = vld [vmem:[%s203 + $0x18] sm:$0xff]
      %v220 = vld [vmem:[%s203 + $0x20] sm:$0xff]
      %v221 = vld [vmem:[%s203 + $0x28] sm:$0xff]
      %v222 = vld [vmem:[%s203 + $0x30] sm:$0xff]
      %v223 = vld [vmem:[%s203 + $0x38] sm:$0xff]
      %v224 = vld [vmem:[%s203 + $0x40] sm:$0xff]
      %v225 = vld [vmem:[%s203 + $0x48] sm:$0xff]
      %v226 = vld [vmem:[%s203 + $0x50] sm:$0xff]
      %v227 = vld [vmem:[%s203 + $0x58] sm:$0xff]
      %v228 = vld [vmem:[%s203 + $0x60] sm:$0xff]
      %v229 = vld [vmem:[%s203 + $0x68] sm:$0xff]
      %v230 = vld [vmem:[%s203 + $0x70] sm:$0xff]
      %v231 = vld [vmem:[%s203 + $0x78] sm:$0xff]
      %v232 = vld [vmem:[%s203 + $0x80] sm:$0xff]
      %v233 = vld [vmem:[%s203 + $0x88] sm:$0xff]
      %v234 = vld [vmem:[%s203 + $0x90] sm:$0xff]
      %v235 = vld [vmem:[%s203 + $0x98] sm:$0xff]
      %v236 = vld [vmem:[%s203 + $0xa0] sm:$0xff]
      %v237 = vld [vmem:[%s203 + $0xa8] sm:$0xff]
      %v238 = vld [vmem:[%s203 + $0xb0] sm:$0xff]
      %v239 = vld [vmem:[%s203 + $0xb8] sm:$0xff]
      %v240 = vld [vmem:[%s203 + $0xc0] sm:$0xff]
      %v241 = vld [vmem:[%s203 + $0xc8] sm:$0xff]
      %v242 = vld [vmem:[%s203 + $0xd0] sm:$0xff]
      %v243 = vld [vmem:[%s203 + $0xd8] sm:$0xff]
      %v244 = vld [vmem:[%s203 + $0xe0] sm:$0xff]
      %v245 = vld [vmem:[%s203 + $0xe8] sm:$0xff]
      %v246 = vld [vmem:[%s203 + $0xf0] sm:$0xff]
      %v247 = vld [vmem:[%s203 + $0xf8] sm:$0xff]
      %vm248 = vcmask 31744
      %249 = vst.msk [vmem:[#allocation2] sm:$0xff] %vm248, 0.0
      %250 = vst.msk [vmem:[#allocation2 + $0x8] sm:$0xff] %vm248, 0.0
      %251 = vst.msk [vmem:[#allocation2 + $0x10] sm:$0xff] %vm248, 0.0
      %252 = vst.msk [vmem:[#allocation2 + $0x18] sm:$0xff] %vm248, 0.0
      %s253 = scalar_lea.vmem [#allocation2], 544
      %254 = vst.msk [vmem:[%s253] sm:$0xff] %vm248, 0.0
      %255 = vst.msk [vmem:[%s253 + $0x8] sm:$0xff] %vm248, 0.0
      %256 = vst.msk [vmem:[%s253 + $0x10] sm:$0xff] %vm248, 0.0
      %257 = vst.msk [vmem:[%s253 + $0x18] sm:$0xff] %vm248, 0.0
      %s258 = scalar_lea.vmem [#allocation2], 32
      %259 = vst.msk [vmem:[%s258] sm:$0xff] %vm248, 0.0
      %260 = vst.msk [vmem:[%s258 + $0x20] sm:$0xff] %vm248, 0.0
      %261 = vst.msk [vmem:[%s258 + $0x40] sm:$0xff] %vm248, 0.0
      %262 = vst.msk [vmem:[%s258 + $0x60] sm:$0xff] %vm248, 0.0
      %263 = vst.msk [vmem:[%s258 + $0x80] sm:$0xff] %vm248, 0.0
      %264 = vst.msk [vmem:[%s258 + $0xa0] sm:$0xff] %vm248, 0.0
      %265 = vst.msk [vmem:[%s258 + $0xc0] sm:$0xff] %vm248, 0.0
      %266 = vst.msk [vmem:[%s258 + $0xe0] sm:$0xff] %vm248, 0.0
      %267 = vst.msk [vmem:[%s258 + $0x100] sm:$0xff] %vm248, 0.0
      %268 = vst.msk [vmem:[%s258 + $0x120] sm:$0xff] %vm248, 0.0
      %269 = vst.msk [vmem:[%s258 + $0x140] sm:$0xff] %vm248, 0.0
      %270 = vst.msk [vmem:[%s258 + $0x160] sm:$0xff] %vm248, 0.0
      %271 = vst.msk [vmem:[%s258 + $0x180] sm:$0xff] %vm248, 0.0
      %272 = vst.msk [vmem:[%s258 + $0x1a0] sm:$0xff] %vm248, 0.0
      %273 = vst.msk [vmem:[%s258 + $0x1c0] sm:$0xff] %vm248, 0.0
      %274 = vst.msk [vmem:[%s258 + $0x1e0] sm:$0xff] %vm248, 0.0
      %275 = vst.msk [vmem:[%s258 + $0x18] sm:$0xff] %vm248, 0.0
      %276 = vst.msk [vmem:[%s258 + $0x38] sm:$0xff] %vm248, 0.0
      %277 = vst.msk [vmem:[%s258 + $0x58] sm:$0xff] %vm248, 0.0
      %278 = vst.msk [vmem:[%s258 + $0x78] sm:$0xff] %vm248, 0.0
      %279 = vst.msk [vmem:[%s258 + $0x98] sm:$0xff] %vm248, 0.0
      %280 = vst.msk [vmem:[%s258 + $0xb8] sm:$0xff] %vm248, 0.0
      %281 = vst.msk [vmem:[%s258 + $0xd8] sm:$0xff] %vm248, 0.0
      %282 = vst.msk [vmem:[%s258 + $0xf8] sm:$0xff] %vm248, 0.0
      %283 = vst.msk [vmem:[%s258 + $0x118] sm:$0xff] %vm248, 0.0
      %284 = vst.msk [vmem:[%s258 + $0x138] sm:$0xff] %vm248, 0.0
      %285 = vst.msk [vmem:[%s258 + $0x158] sm:$0xff] %vm248, 0.0
      %286 = vst.msk [vmem:[%s258 + $0x178] sm:$0xff] %vm248, 0.0
      %287 = vst.msk [vmem:[%s258 + $0x198] sm:$0xff] %vm248, 0.0
      %288 = vst.msk [vmem:[%s258 + $0x1b8] sm:$0xff] %vm248, 0.0
      %289 = vst.msk [vmem:[%s258 + $0x1d8] sm:$0xff] %vm248, 0.0
      %290 = vst.msk [vmem:[%s258 + $0x1f8] sm:$0xff] %vm248, 0.0
      %291 = vst.msk [vmem:[%s258 + $0x8] sm:$0xff] %vm248, %v216
      %292 = vst.msk [vmem:[%s258 + $0x10] sm:$0xff] %vm248, %v217
      %293 = vst.msk [vmem:[%s258 + $0x28] sm:$0xff] %vm248, %v218
      %294 = vst.msk [vmem:[%s258 + $0x30] sm:$0xff] %vm248, %v219
      %295 = vst.msk [vmem:[%s258 + $0x48] sm:$0xff] %vm248, %v220
      %296 = vst.msk [vmem:[%s258 + $0x50] sm:$0xff] %vm248, %v221
      %297 = vst.msk [vmem:[%s258 + $0x68] sm:$0xff] %vm248, %v222
      %298 = vst.msk [vmem:[%s258 + $0x70] sm:$0xff] %vm248, %v223
      %299 = vst.msk [vmem:[%s258 + $0x88] sm:$0xff] %vm248, %v224
      %300 = vst.msk [vmem:[%s258 + $0x90] sm:$0xff] %vm248, %v225
      %301 = vst.msk [vmem:[%s258 + $0xa8] sm:$0xff] %vm248, %v226
      %302 = vst.msk [vmem:[%s258 + $0xb0] sm:$0xff] %vm248, %v227
      %303 = vst.msk [vmem:[%s258 + $0xc8] sm:$0xff] %vm248, %v228
      %304 = vst.msk [vmem:[%s258 + $0xd0] sm:$0xff] %vm248, %v229
      %305 = vst.msk [vmem:[%s258 + $0xe8] sm:$0xff] %vm248, %v230
      %306 = vst.msk [vmem:[%s258 + $0xf0] sm:$0xff] %vm248, %v231
      %307 = vst.msk [vmem:[%s258 + $0x108] sm:$0xff] %vm248, %v232
      %308 = vst.msk [vmem:[%s258 + $0x110] sm:$0xff] %vm248, %v233
      %309 = vst.msk [vmem:[%s258 + $0x128] sm:$0xff] %vm248, %v234
      %310 = vst.msk [vmem:[%s258 + $0x130] sm:$0xff] %vm248, %v235
      %311 = vst.msk [vmem:[%s258 + $0x148] sm:$0xff] %vm248, %v236
      %312 = vst.msk [vmem:[%s258 + $0x150] sm:$0xff] %vm248, %v237
      %313 = vst.msk [vmem:[%s258 + $0x168] sm:$0xff] %vm248, %v238
      %314 = vst.msk [vmem:[%s258 + $0x170] sm:$0xff] %vm248, %v239
      %315 = vst.msk [vmem:[%s258 + $0x188] sm:$0xff] %vm248, %v240
      %316 = vst.msk [vmem:[%s258 + $0x190] sm:$0xff] %vm248, %v241
      %317 = vst.msk [vmem:[%s258 + $0x1a8] sm:$0xff] %vm248, %v242
      %318 = vst.msk [vmem:[%s258 + $0x1b0] sm:$0xff] %vm248, %v243
      %319 = vst.msk [vmem:[%s258 + $0x1c8] sm:$0xff] %vm248, %v244
      %320 = vst.msk [vmem:[%s258 + $0x1d0] sm:$0xff] %vm248, %v245
      %321 = vst.msk [vmem:[%s258 + $0x1e8] sm:$0xff] %vm248, %v246
      %322 = vst.msk [vmem:[%s258 + $0x1f0] sm:$0xff] %vm248, %v247
      %v323 = vld [vmem:[#allocation2 + $0x7] sm:$0xff]
      %v324 = vld [vmem:[#allocation2 + $0xf] sm:$0xff]
      %v325 = vld [vmem:[#allocation2 + $0x27] sm:$0xff]
      %v326 = vld [vmem:[#allocation2 + $0x2f] sm:$0xff]
      %v327 = vld [vmem:[#allocation2 + $0x47] sm:$0xff]
      %v328 = vld [vmem:[#allocation2 + $0x4f] sm:$0xff]
      %v329 = vld [vmem:[#allocation2 + $0x67] sm:$0xff]
      %v330 = vld [vmem:[#allocation2 + $0x6f] sm:$0xff]
      %v331 = vld [vmem:[#allocation2 + $0x87] sm:$0xff]
      %v332 = vld [vmem:[#allocation2 + $0x8f] sm:$0xff]
      %v333 = vld [vmem:[#allocation2 + $0xa7] sm:$0xff]
      %v334 = vld [vmem:[#allocation2 + $0xaf] sm:$0xff]
      %v335 = vld [vmem:[#allocation2 + $0xc7] sm:$0xff]
      %v336 = vld [vmem:[#allocation2 + $0xcf] sm:$0xff]
      %v337 = vld [vmem:[#allocation2 + $0xe7] sm:$0xff]
      %v338 = vld [vmem:[#allocation2 + $0xef] sm:$0xff]
      %v339 = vld [vmem:[#allocation2 + $0x107] sm:$0xff]
      %v340 = vld [vmem:[#allocation2 + $0x10f] sm:$0xff]
      %v341 = vld [vmem:[#allocation2 + $0x127] sm:$0xff]
      %v342 = vld [vmem:[#allocation2 + $0x12f] sm:$0xff]
      %v343 = vld [vmem:[#allocation2 + $0x147] sm:$0xff]
      %v344 = vld [vmem:[#allocation2 + $0x14f] sm:$0xff]
      %v345 = vld [vmem:[#allocation2 + $0x167] sm:$0xff]
      %v346 = vld [vmem:[#allocation2 + $0x16f] sm:$0xff]
      %v347 = vld [vmem:[#allocation2 + $0x187] sm:$0xff]
      %v348 = vld [vmem:[#allocation2 + $0x18f] sm:$0xff]
      %v349 = vld [vmem:[#allocation2 + $0x1a7] sm:$0xff]
      %v350 = vld [vmem:[#allocation2 + $0x1af] sm:$0xff]
      %v351 = vld [vmem:[#allocation2 + $0x1c7] sm:$0xff]
      %v352 = vld [vmem:[#allocation2 + $0x1cf] sm:$0xff]
      %v353 = vld [vmem:[#allocation2 + $0x1e7] sm:$0xff]
      %v354 = vld [vmem:[#allocation2 + $0x1ef] sm:$0xff]
      %v355 = vpack.c.bf16 %v324, %v323
      %v356 = vpack.c.bf16 %v326, %v325
      %v357 = vpack.c.bf16 %v328, %v327
      %v358 = vpack.c.bf16 %v330, %v329
      %v359 = vpack.c.bf16 %v332, %v331
      %v360 = vpack.c.bf16 %v334, %v333
      %v361 = vpack.c.bf16 %v336, %v335
      %v362 = vpack.c.bf16 %v338, %v337
      %v363 = vpack.c.bf16 %v340, %v339
      %v364 = vpack.c.bf16 %v342, %v341
      %v365 = vpack.c.bf16 %v344, %v343
      %v366 = vpack.c.bf16 %v346, %v345
      %v367 = vpack.c.bf16 %v348, %v347
      %v368 = vpack.c.bf16 %v350, %v349
      %v369 = vpack.c.bf16 %v352, %v351
      %v370 = vpack.c.bf16 %v354, %v353
      %371 = vst.msk [vmem:[#allocation3] sm:$0xff] %vm248, %v355
      %372 = vst.msk [vmem:[#allocation3 + $0x8] sm:$0xff] %vm248, %v356
      %373 = vst.msk [vmem:[#allocation3 + $0x10] sm:$0xff] %vm248, %v357
      %374 = vst.msk [vmem:[#allocation3 + $0x18] sm:$0xff] %vm248, %v358
      %375 = vst.msk [vmem:[#allocation3 + $0x20] sm:$0xff] %vm248, %v359
      %376 = vst.msk [vmem:[#allocation3 + $0x28] sm:$0xff] %vm248, %v360
      %377 = vst.msk [vmem:[#allocation3 + $0x30] sm:$0xff] %vm248, %v361
      %378 = vst.msk [vmem:[#allocation3 + $0x38] sm:$0xff] %vm248, %v362
      %379 = vst.msk [vmem:[#allocation3 + $0x40] sm:$0xff] %vm248, %v363
      %380 = vst.msk [vmem:[#allocation3 + $0x48] sm:$0xff] %vm248, %v364
      %381 = vst.msk [vmem:[#allocation3 + $0x50] sm:$0xff] %vm248, %v365
      %382 = vst.msk [vmem:[#allocation3 + $0x58] sm:$0xff] %vm248, %v366
      %383 = vst.msk [vmem:[#allocation3 + $0x60] sm:$0xff] %vm248, %v367
      %384 = vst.msk [vmem:[#allocation3 + $0x68] sm:$0xff] %vm248, %v368
      %385 = vst.msk [vmem:[#allocation3 + $0x70] sm:$0xff] %vm248, %v369
      %386 = vst.msk [vmem:[#allocation3 + $0x78] sm:$0xff] %vm248, %v370
      %v387 = vld [vmem:[#allocation2 + $0x8] sm:$0xff]
      %v388 = vld [vmem:[#allocation2 + $0x10] sm:$0xff]
      %v389 = vld [vmem:[#allocation2 + $0x28] sm:$0xff]
      %v390 = vld [vmem:[#allocation2 + $0x30] sm:$0xff]
      %v391 = vld [vmem:[#allocation2 + $0x48] sm:$0xff]
      %v392 = vld [vmem:[#allocation2 + $0x50] sm:$0xff]
      %v393 = vld [vmem:[#allocation2 + $0x68] sm:$0xff]
      %v394 = vld [vmem:[#allocation2 + $0x70] sm:$0xff]
      %v395 = vld [vmem:[#allocation2 + $0x88] sm:$0xff]
      %v396 = vld [vmem:[#allocation2 + $0x90] sm:$0xff]
      %v397 = vld [vmem:[#allocation2 + $0xa8] sm:$0xff]
      %v398 = vld [vmem:[#allocation2 + $0xb0] sm:$0xff]
      %v399 = vld [vmem:[#allocation2 + $0xc8] sm:$0xff]
      %v400 = vld [vmem:[#allocation2 + $0xd0] sm:$0xff]
      %v401 = vld [vmem:[#allocation2 + $0xe8] sm:$0xff]
      %v402 = vld [vmem:[#allocation2 + $0xf0] sm:$0xff]
      %v403 = vld [vmem:[#allocation2 + $0x108] sm:$0xff]
      %v404 = vld [vmem:[#allocation2 + $0x110] sm:$0xff]
      %v405 = vld [vmem:[#allocation2 + $0x128] sm:$0xff]
      %v406 = vld [vmem:[#allocation2 + $0x130] sm:$0xff]
      %v407 = vld [vmem:[#allocation2 + $0x148] sm:$0xff]
      %v408 = vld [vmem:[#allocation2 + $0x150] sm:$0xff]
      %v409 = vld [vmem:[#allocation2 + $0x168] sm:$0xff]
      %v410 = vld [vmem:[#allocation2 + $0x170] sm:$0xff]
      %v411 = vld [vmem:[#allocation2 + $0x188] sm:$0xff]
      %v412 = vld [vmem:[#allocation2 + $0x190] sm:$0xff]
      %v413 = vld [vmem:[#allocation2 + $0x1a8] sm:$0xff]
      %v414 = vld [vmem:[#allocation2 + $0x1b0] sm:$0xff]
      %v415 = vld [vmem:[#allocation2 + $0x1c8] sm:$0xff]
      %v416 = vld [vmem:[#allocation2 + $0x1d0] sm:$0xff]
      %v417 = vld [vmem:[#allocation2 + $0x1e8] sm:$0xff]
      %v418 = vld [vmem:[#allocation2 + $0x1f0] sm:$0xff]
      %v419 = vpack.c.bf16 %v388, %v387
      %v420 = vpack.c.bf16 %v390, %v389
      %v421 = vpack.c.bf16 %v392, %v391
      %v422 = vpack.c.bf16 %v394, %v393
      %v423 = vpack.c.bf16 %v396, %v395
      %v424 = vpack.c.bf16 %v398, %v397
      %v425 = vpack.c.bf16 %v400, %v399
      %v426 = vpack.c.bf16 %v402, %v401
      %v427 = vpack.c.bf16 %v404, %v403
      %v428 = vpack.c.bf16 %v406, %v405
      %v429 = vpack.c.bf16 %v408, %v407
      %v430 = vpack.c.bf16 %v410, %v409
      %v431 = vpack.c.bf16 %v412, %v411
      %v432 = vpack.c.bf16 %v414, %v413
      %v433 = vpack.c.bf16 %v416, %v415
      %v434 = vpack.c.bf16 %v418, %v417
      %451 = vrot.lane.b32.xlu0 %v419, 4
      %v452 = vpop.permute.xlu0 %451
      %453 = vrot.lane.b32.xlu0 %v420, 4
      %v454 = vpop.permute.xlu0 %453
      %455 = vrot.lane.b32.xlu0 %v421, 4
      %v456 = vpop.permute.xlu0 %455
      %457 = vrot.lane.b32.xlu0 %v422, 4
      %v458 = vpop.permute.xlu0 %457
      %459 = vrot.lane.b32.xlu0 %v423, 4
      %v460 = vpop.permute.xlu0 %459
      %461 = vrot.lane.b32.xlu0 %v424, 4
      %v462 = vpop.permute.xlu0 %461
      %463 = vrot.lane.b32.xlu0 %v425, 4
      %v464 = vpop.permute.xlu0 %463
      %465 = vrot.lane.b32.xlu0 %v426, 4
      %v466 = vpop.permute.xlu0 %465
      %467 = vrot.lane.b32.xlu0 %v427, 4
      %v468 = vpop.permute.xlu0 %467
      %469 = vrot.lane.b32.xlu0 %v428, 4
      %v470 = vpop.permute.xlu0 %469
      %471 = vrot.lane.b32.xlu0 %v429, 4
      %v472 = vpop.permute.xlu0 %471
      %473 = vrot.lane.b32.xlu0 %v430, 4
      %v474 = vpop.permute.xlu0 %473
      %475 = vrot.lane.b32.xlu0 %v431, 4
      %v476 = vpop.permute.xlu0 %475
      %477 = vrot.lane.b32.xlu0 %v432, 4
      %v478 = vpop.permute.xlu0 %477
      %479 = vrot.lane.b32.xlu0 %v433, 4
      %v480 = vpop.permute.xlu0 %479
      %481 = vrot.lane.b32.xlu0 %v434, 4
      %v482 = vpop.permute.xlu0 %481
      %vm499 = vcmask 64544
      %500 = vst.msk [vmem:[#allocation3] sm:$0xff] %vm499, %v452
      %501 = vst.msk [vmem:[#allocation3 + $0x8] sm:$0xff] %vm499, %v454
      %502 = vst.msk [vmem:[#allocation3 + $0x10] sm:$0xff] %vm499, %v456
      %503 = vst.msk [vmem:[#allocation3 + $0x18] sm:$0xff] %vm499, %v458
      %504 = vst.msk [vmem:[#allocation3 + $0x20] sm:$0xff] %vm499, %v460
      %505 = vst.msk [vmem:[#allocation3 + $0x28] sm:$0xff] %vm499, %v462
      %506 = vst.msk [vmem:[#allocation3 + $0x30] sm:$0xff] %vm499, %v464
      %507 = vst.msk [vmem:[#allocation3 + $0x38] sm:$0xff] %vm499, %v466
      %508 = vst.msk [vmem:[#allocation3 + $0x40] sm:$0xff] %vm499, %v468
      %509 = vst.msk [vmem:[#allocation3 + $0x48] sm:$0xff] %vm499, %v470
      %510 = vst.msk [vmem:[#allocation3 + $0x50] sm:$0xff] %vm499, %v472
      %511 = vst.msk [vmem:[#allocation3 + $0x58] sm:$0xff] %vm499, %v474
      %512 = vst.msk [vmem:[#allocation3 + $0x60] sm:$0xff] %vm499, %v476
      %513 = vst.msk [vmem:[#allocation3 + $0x68] sm:$0xff] %vm499, %v478
      %514 = vst.msk [vmem:[#allocation3 + $0x70] sm:$0xff] %vm499, %v480
      %515 = vst.msk [vmem:[#allocation3 + $0x78] sm:$0xff] %vm499, %v482
      %v516 = vld [vmem:[#allocation2 + $0x9] sm:$0xff]
      %v517 = vld [vmem:[#allocation2 + $0x11] sm:$0xff]
      %v518 = vld [vmem:[#allocation2 + $0x29] sm:$0xff]
      %v519 = vld [vmem:[#allocation2 + $0x31] sm:$0xff]
      %v520 = vld [vmem:[#allocation2 + $0x49] sm:$0xff]
      %v521 = vld [vmem:[#allocation2 + $0x51] sm:$0xff]
      %v522 = vld [vmem:[#allocation2 + $0x69] sm:$0xff]
      %v523 = vld [vmem:[#allocation2 + $0x71] sm:$0xff]
      %v524 = vld [vmem:[#allocation2 + $0x89] sm:$0xff]
      %v525 = vld [vmem:[#allocation2 + $0x91] sm:$0xff]
      %v526 = vld [vmem:[#allocation2 + $0xa9] sm:$0xff]
      %v527 = vld [vmem:[#allocation2 + $0xb1] sm:$0xff]
      %v528 = vld [vmem:[#allocation2 + $0xc9] sm:$0xff]
      %v529 = vld [vmem:[#allocation2 + $0xd1] sm:$0xff]
      %v530 = vld [vmem:[#allocation2 + $0xe9] sm:$0xff]
      %v531 = vld [vmem:[#allocation2 + $0xf1] sm:$0xff]
      %v532 = vld [vmem:[#allocation2 + $0x109] sm:$0xff]
      %v533 = vld [vmem:[#allocation2 + $0x111] sm:$0xff]
      %v534 = vld [vmem:[#allocation2 + $0x129] sm:$0xff]
      %v535 = vld [vmem:[#allocation2 + $0x131] sm:$0xff]
      %v536 = vld [vmem:[#allocation2 + $0x149] sm:$0xff]
      %v537 = vld [vmem:[#allocation2 + $0x151] sm:$0xff]
      %v538 = vld [vmem:[#allocation2 + $0x169] sm:$0xff]
      %v539 = vld [vmem:[#allocation2 + $0x171] sm:$0xff]
      %v540 = vld [vmem:[#allocation2 + $0x189] sm:$0xff]
      %v541 = vld [vmem:[#allocation2 + $0x191] sm:$0xff]
      %v542 = vld [vmem:[#allocation2 + $0x1a9] sm:$0xff]
      %v543 = vld [vmem:[#allocation2 + $0x1b1] sm:$0xff]
      %v544 = vld [vmem:[#allocation2 + $0x1c9] sm:$0xff]
      %v545 = vld [vmem:[#allocation2 + $0x1d1] sm:$0xff]
      %v546 = vld [vmem:[#allocation2 + $0x1e9] sm:$0xff]
      %v547 = vld [vmem:[#allocation2 + $0x1f1] sm:$0xff]
      %v548 = vpack.c.bf16 %v517, %v516
      %v549 = vpack.c.bf16 %v519, %v518
      %v550 = vpack.c.bf16 %v521, %v520
      %v551 = vpack.c.bf16 %v523, %v522
      %v552 = vpack.c.bf16 %v525, %v524
      %v553 = vpack.c.bf16 %v527, %v526
      %v554 = vpack.c.bf16 %v529, %v528
      %v555 = vpack.c.bf16 %v531, %v530
      %v556 = vpack.c.bf16 %v533, %v532
      %v557 = vpack.c.bf16 %v535, %v534
      %v558 = vpack.c.bf16 %v537, %v536
      %v559 = vpack.c.bf16 %v539, %v538
      %v560 = vpack.c.bf16 %v541, %v540
      %v561 = vpack.c.bf16 %v543, %v542
      %v562 = vpack.c.bf16 %v545, %v544
      %v563 = vpack.c.bf16 %v547, %v546
      %580 = vrot.lane.b32.xlu0 %v548, 8
      %v581 = vpop.permute.xlu0 %580
      %582 = vrot.lane.b32.xlu0 %v549, 8
      %v583 = vpop.permute.xlu0 %582
      %584 = vrot.lane.b32.xlu0 %v550, 8
      %v585 = vpop.permute.xlu0 %584
      %586 = vrot.lane.b32.xlu0 %v551, 8
      %v587 = vpop.permute.xlu0 %586
      %588 = vrot.lane.b32.xlu0 %v552, 8
      %v589 = vpop.permute.xlu0 %588
      %590 = vrot.lane.b32.xlu0 %v553, 8
      %v591 = vpop.permute.xlu0 %590
      %592 = vrot.lane.b32.xlu0 %v554, 8
      %v593 = vpop.permute.xlu0 %592
      %594 = vrot.lane.b32.xlu0 %v555, 8
      %v595 = vpop.permute.xlu0 %594
      %596 = vrot.lane.b32.xlu0 %v556, 8
      %v597 = vpop.permute.xlu0 %596
      %598 = vrot.lane.b32.xlu0 %v557, 8
      %v599 = vpop.permute.xlu0 %598
      %600 = vrot.lane.b32.xlu0 %v558, 8
      %v601 = vpop.permute.xlu0 %600
      %602 = vrot.lane.b32.xlu0 %v559, 8
      %v603 = vpop.permute.xlu0 %602
      %604 = vrot.lane.b32.xlu0 %v560, 8
      %v605 = vpop.permute.xlu0 %604
      %606 = vrot.lane.b32.xlu0 %v561, 8
      %v607 = vpop.permute.xlu0 %606
      %608 = vrot.lane.b32.xlu0 %v562, 8
      %v609 = vpop.permute.xlu0 %608
      %610 = vrot.lane.b32.xlu0 %v563, 8
      %v611 = vpop.permute.xlu0 %610
      %vm628 = vcmask 97344
      %629 = vst.msk [vmem:[#allocation3] sm:$0xff] %vm628, %v581
      %630 = vst.msk [vmem:[#allocation3 + $0x8] sm:$0xff] %vm628, %v583
      %631 = vst.msk [vmem:[#allocation3 + $0x10] sm:$0xff] %vm628, %v585
      %632 = vst.msk [vmem:[#allocation3 + $0x18] sm:$0xff] %vm628, %v587
      %633 = vst.msk [vmem:[#allocation3 + $0x20] sm:$0xff] %vm628, %v589
      %634 = vst.msk [vmem:[#allocation3 + $0x28] sm:$0xff] %vm628, %v591
      %635 = vst.msk [vmem:[#allocation3 + $0x30] sm:$0xff] %vm628, %v593
      %636 = vst.msk [vmem:[#allocation3 + $0x38] sm:$0xff] %vm628, %v595
      %637 = vst.msk [vmem:[#allocation3 + $0x40] sm:$0xff] %vm628, %v597
      %638 = vst.msk [vmem:[#allocation3 + $0x48] sm:$0xff] %vm628, %v599
      %639 = vst.msk [vmem:[#allocation3 + $0x50] sm:$0xff] %vm628, %v601
      %640 = vst.msk [vmem:[#allocation3 + $0x58] sm:$0xff] %vm628, %v603
      %641 = vst.msk [vmem:[#allocation3 + $0x60] sm:$0xff] %vm628, %v605
      %642 = vst.msk [vmem:[#allocation3 + $0x68] sm:$0xff] %vm628, %v607
      %643 = vst.msk [vmem:[#allocation3 + $0x70] sm:$0xff] %vm628, %v609
      %644 = vst.msk [vmem:[#allocation3 + $0x78] sm:$0xff] %vm628, %v611
      %v645 = vld [vmem:[%s258 + $0x7] sm:$0xff]
      %v646 = vld [vmem:[%s258 + $0xf] sm:$0xff]
      %v647 = vld [vmem:[%s258 + $0x27] sm:$0xff]
      %v648 = vld [vmem:[%s258 + $0x2f] sm:$0xff]
      %v649 = vld [vmem:[%s258 + $0x47] sm:$0xff]
      %v650 = vld [vmem:[%s258 + $0x4f] sm:$0xff]
      %v651 = vld [vmem:[%s258 + $0x67] sm:$0xff]
      %v652 = vld [vmem:[%s258 + $0x6f] sm:$0xff]
      %v653 = vld [vmem:[%s258 + $0x87] sm:$0xff]
      %v654 = vld [vmem:[%s258 + $0x8f] sm:$0xff]
      %v655 = vld [vmem:[%s258 + $0xa7] sm:$0xff]
      %v656 = vld [vmem:[%s258 + $0xaf] sm:$0xff]
      %v657 = vld [vmem:[%s258 + $0xc7] sm:$0xff]
      %v658 = vld [vmem:[%s258 + $0xcf] sm:$0xff]
      %v659 = vld [vmem:[%s258 + $0xe7] sm:$0xff]
      %v660 = vld [vmem:[%s258 + $0xef] sm:$0xff]
      %v661 = vld [vmem:[%s258 + $0x107] sm:$0xff]
      %v662 = vld [vmem:[%s258 + $0x10f] sm:$0xff]
      %v663 = vld [vmem:[%s258 + $0x127] sm:$0xff]
      %v664 = vld [vmem:[%s258 + $0x12f] sm:$0xff]
      %v665 = vld [vmem:[%s258 + $0x147] sm:$0xff]
      %v666 = vld [vmem:[%s258 + $0x14f] sm:$0xff]
      %v667 = vld [vmem:[%s258 + $0x167] sm:$0xff]
      %v668 = vld [vmem:[%s258 + $0x16f] sm:$0xff]
      %v669 = vld [vmem:[%s258 + $0x187] sm:$0xff]
      %v670 = vld [vmem:[%s258 + $0x18f] sm:$0xff]
      %v671 = vld [vmem:[%s258 + $0x1a7] sm:$0xff]
      %v672 = vld [vmem:[%s258 + $0x1af] sm:$0xff]
      %v673 = vld [vmem:[%s258 + $0x1c7] sm:$0xff]
      %v674 = vld [vmem:[%s258 + $0x1cf] sm:$0xff]
      %v675 = vld [vmem:[%s258 + $0x1e7] sm:$0xff]
      %v676 = vld [vmem:[%s258 + $0x1ef] sm:$0xff]
      %v677 = vpack.c.bf16 %v646, %v645
      %v678 = vpack.c.bf16 %v648, %v647
      %v679 = vpack.c.bf16 %v650, %v649
      %v680 = vpack.c.bf16 %v652, %v651
      %v681 = vpack.c.bf16 %v654, %v653
      %v682 = vpack.c.bf16 %v656, %v655
      %v683 = vpack.c.bf16 %v658, %v657
      %v684 = vpack.c.bf16 %v660, %v659
      %v685 = vpack.c.bf16 %v662, %v661
      %v686 = vpack.c.bf16 %v664, %v663
      %v687 = vpack.c.bf16 %v666, %v665
      %v688 = vpack.c.bf16 %v668, %v667
      %v689 = vpack.c.bf16 %v670, %v669
      %v690 = vpack.c.bf16 %v672, %v671
      %v691 = vpack.c.bf16 %v674, %v673
      %v692 = vpack.c.bf16 %v676, %v675
      %709 = vrot.lane.b32.xlu0 %v677, 12
      %v710 = vpop.permute.xlu0 %709
      %711 = vrot.lane.b32.xlu0 %v678, 12
      %v712 = vpop.permute.xlu0 %711
      %713 = vrot.lane.b32.xlu0 %v679, 12
      %v714 = vpop.permute.xlu0 %713
      %715 = vrot.lane.b32.xlu0 %v680, 12
      %v716 = vpop.permute.xlu0 %715
      %717 = vrot.lane.b32.xlu0 %v681, 12
      %v718 = vpop.permute.xlu0 %717
      %719 = vrot.lane.b32.xlu0 %v682, 12
      %v720 = vpop.permute.xlu0 %719
      %721 = vrot.lane.b32.xlu0 %v683, 12
      %v722 = vpop.permute.xlu0 %721
      %723 = vrot.lane.b32.xlu0 %v684, 12
      %v724 = vpop.permute.xlu0 %723
      %725 = vrot.lane.b32.xlu0 %v685, 12
      %v726 = vpop.permute.xlu0 %725
      %727 = vrot.lane.b32.xlu0 %v686, 12
      %v728 = vpop.permute.xlu0 %727
      %729 = vrot.lane.b32.xlu0 %v687, 12
      %v730 = vpop.permute.xlu0 %729
      %731 = vrot.lane.b32.xlu0 %v688, 12
      %v732 = vpop.permute.xlu0 %731
      %733 = vrot.lane.b32.xlu0 %v689, 12
      %v734 = vpop.permute.xlu0 %733
      %735 = vrot.lane.b32.xlu0 %v690, 12
      %v736 = vpop.permute.xlu0 %735
      %737 = vrot.lane.b32.xlu0 %v691, 12
      %v738 = vpop.permute.xlu0 %737
      %739 = vrot.lane.b32.xlu0 %v692, 12
      %v740 = vpop.permute.xlu0 %739
      %vm757 = vcmask 130144
      %758 = vst.msk [vmem:[#allocation3] sm:$0xff] %vm757, %v710
      %759 = vst.msk [vmem:[#allocation3 + $0x8] sm:$0xff] %vm757, %v712
      %760 = vst.msk [vmem:[#allocation3 + $0x10] sm:$0xff] %vm757, %v714
      %761 = vst.msk [vmem:[#allocation3 + $0x18] sm:$0xff] %vm757, %v716
      %762 = vst.msk [vmem:[#allocation3 + $0x20] sm:$0xff] %vm757, %v718
      %763 = vst.msk [vmem:[#allocation3 + $0x28] sm:$0xff] %vm757, %v720
      %764 = vst.msk [vmem:[#allocation3 + $0x30] sm:$0xff] %vm757, %v722
      %765 = vst.msk [vmem:[#allocation3 + $0x38] sm:$0xff] %vm757, %v724
      %766 = vst.msk [vmem:[#allocation3 + $0x40] sm:$0xff] %vm757, %v726
      %767 = vst.msk [vmem:[#allocation3 + $0x48] sm:$0xff] %vm757, %v728
      %768 = vst.msk [vmem:[#allocation3 + $0x50] sm:$0xff] %vm757, %v730
      %769 = vst.msk [vmem:[#allocation3 + $0x58] sm:$0xff] %vm757, %v732
      %770 = vst.msk [vmem:[#allocation3 + $0x60] sm:$0xff] %vm757, %v734
      %771 = vst.msk [vmem:[#allocation3 + $0x68] sm:$0xff] %vm757, %v736
      %772 = vst.msk [vmem:[#allocation3 + $0x70] sm:$0xff] %vm757, %v738
      %773 = vst.msk [vmem:[#allocation3 + $0x78] sm:$0xff] %vm757, %v740
      %v774 = vld [vmem:[%s258 + $0x8] sm:$0xff]
      %v775 = vld [vmem:[%s258 + $0x10] sm:$0xff]
      %v776 = vld [vmem:[%s258 + $0x28] sm:$0xff]
      %v777 = vld [vmem:[%s258 + $0x30] sm:$0xff]
      %v778 = vld [vmem:[%s258 + $0x48] sm:$0xff]
      %v779 = vld [vmem:[%s258 + $0x50] sm:$0xff]
      %v780 = vld [vmem:[%s258 + $0x68] sm:$0xff]
      %v781 = vld [vmem:[%s258 + $0x70] sm:$0xff]
      %v782 = vld [vmem:[%s258 + $0x88] sm:$0xff]
      %v783 = vld [vmem:[%s258 + $0x90] sm:$0xff]
      %v784 = vld [vmem:[%s258 + $0xa8] sm:$0xff]
      %v785 = vld [vmem:[%s258 + $0xb0] sm:$0xff]
      %v786 = vld [vmem:[%s258 + $0xc8] sm:$0xff]
      %v787 = vld [vmem:[%s258 + $0xd0] sm:$0xff]
      %v788 = vld [vmem:[%s258 + $0xe8] sm:$0xff]
      %v789 = vld [vmem:[%s258 + $0xf0] sm:$0xff]
      %v790 = vld [vmem:[%s258 + $0x108] sm:$0xff]
      %v791 = vld [vmem:[%s258 + $0x110] sm:$0xff]
      %v792 = vld [vmem:[%s258 + $0x128] sm:$0xff]
      %v793 = vld [vmem:[%s258 + $0x130] sm:$0xff]
      %v794 = vld [vmem:[%s258 + $0x148] sm:$0xff]
      %v795 = vld [vmem:[%s258 + $0x150] sm:$0xff]
      %v796 = vld [vmem:[%s258 + $0x168] sm:$0xff]
      %v797 = vld [vmem:[%s258 + $0x170] sm:$0xff]
      %v798 = vld [vmem:[%s258 + $0x188] sm:$0xff]
      %v799 = vld [vmem:[%s258 + $0x190] sm:$0xff]
      %v800 = vld [vmem:[%s258 + $0x1a8] sm:$0xff]
      %v801 = vld [vmem:[%s258 + $0x1b0] sm:$0xff]
      %v802 = vld [vmem:[%s258 + $0x1c8] sm:$0xff]
      %v803 = vld [vmem:[%s258 + $0x1d0] sm:$0xff]
      %v804 = vld [vmem:[%s258 + $0x1e8] sm:$0xff]
      %v805 = vld [vmem:[%s258 + $0x1f0] sm:$0xff]
      %v806 = vpack.c.bf16 %v775, %v774
      %v807 = vpack.c.bf16 %v777, %v776
      %v808 = vpack.c.bf16 %v779, %v778
      %v809 = vpack.c.bf16 %v781, %v780
      %v810 = vpack.c.bf16 %v783, %v782
      %v811 = vpack.c.bf16 %v785, %v784
      %v812 = vpack.c.bf16 %v787, %v786
      %v813 = vpack.c.bf16 %v789, %v788
      %v814 = vpack.c.bf16 %v791, %v790
      %v815 = vpack.c.bf16 %v793, %v792
      %v816 = vpack.c.bf16 %v795, %v794
      %v817 = vpack.c.bf16 %v797, %v796
      %v818 = vpack.c.bf16 %v799, %v798
      %v819 = vpack.c.bf16 %v801, %v800
      %v820 = vpack.c.bf16 %v803, %v802
      %v821 = vpack.c.bf16 %v805, %v804
      %838 = vrot.lane.b32.xlu0 %v806, 16
      %v839 = vpop.permute.xlu0 %838
      %840 = vrot.lane.b32.xlu0 %v807, 16
      %v841 = vpop.permute.xlu0 %840
      %842 = vrot.lane.b32.xlu0 %v808, 16
      %v843 = vpop.permute.xlu0 %842
      %844 = vrot.lane.b32.xlu0 %v809, 16
      %v845 = vpop.permute.xlu0 %844
      %846 = vrot.lane.b32.xlu0 %v810, 16
      %v847 = vpop.permute.xlu0 %846
      %848 = vrot.lane.b32.xlu0 %v811, 16
      %v849 = vpop.permute.xlu0 %848
      %850 = vrot.lane.b32.xlu0 %v812, 16
      %v851 = vpop.permute.xlu0 %850
      %852 = vrot.lane.b32.xlu0 %v813, 16
      %v853 = vpop.permute.xlu0 %852
      %854 = vrot.lane.b32.xlu0 %v814, 16
      %v855 = vpop.permute.xlu0 %854
      %856 = vrot.lane.b32.xlu0 %v815, 16
      %v857 = vpop.permute.xlu0 %856
      %858 = vrot.lane.b32.xlu0 %v816, 16
      %v859 = vpop.permute.xlu0 %858
      %860 = vrot.lane.b32.xlu0 %v817, 16
      %v861 = vpop.permute.xlu0 %860
      %862 = vrot.lane.b32.xlu0 %v818, 16
      %v863 = vpop.permute.xlu0 %862
      %864 = vrot.lane.b32.xlu0 %v819, 16
      %v865 = vpop.permute.xlu0 %864
      %866 = vrot.lane.b32.xlu0 %v820, 16
      %v867 = vpop.permute.xlu0 %866
      %868 = vrot.lane.b32.xlu0 %v821, 16
      %v869 = vpop.permute.xlu0 %868
      %vm886 = vcmask 162944
      %887 = vst.msk [vmem:[#allocation3] sm:$0xff] %vm886, %v839
      %888 = vst.msk [vmem:[#allocation3 + $0x8] sm:$0xff] %vm886, %v841
      %889 = vst.msk [vmem:[#allocation3 + $0x10] sm:$0xff] %vm886, %v843
      %890 = vst.msk [vmem:[#allocation3 + $0x18] sm:$0xff] %vm886, %v845
      %891 = vst.msk [vmem:[#allocation3 + $0x20] sm:$0xff] %vm886, %v847
      %892 = vst.msk [vmem:[#allocation3 + $0x28] sm:$0xff] %vm886, %v849
      %893 = vst.msk [vmem:[#allocation3 + $0x30] sm:$0xff] %vm886, %v851
      %894 = vst.msk [vmem:[#allocation3 + $0x38] sm:$0xff] %vm886, %v853
      %895 = vst.msk [vmem:[#allocation3 + $0x40] sm:$0xff] %vm886, %v855
      %896 = vst.msk [vmem:[#allocation3 + $0x48] sm:$0xff] %vm886, %v857
      %897 = vst.msk [vmem:[#allocation3 + $0x50] sm:$0xff] %vm886, %v859
      %898 = vst.msk [vmem:[#allocation3 + $0x58] sm:$0xff] %vm886, %v861
      %899 = vst.msk [vmem:[#allocation3 + $0x60] sm:$0xff] %vm886, %v863
      %900 = vst.msk [vmem:[#allocation3 + $0x68] sm:$0xff] %vm886, %v865
      %901 = vst.msk [vmem:[#allocation3 + $0x70] sm:$0xff] %vm886, %v867
      %902 = vst.msk [vmem:[#allocation3 + $0x78] sm:$0xff] %vm886, %v869
      %v903 = vld [vmem:[%s258 + $0x9] sm:$0xff]
      %v904 = vld [vmem:[%s258 + $0x11] sm:$0xff]
      %v905 = vld [vmem:[%s258 + $0x29] sm:$0xff]
      %v906 = vld [vmem:[%s258 + $0x31] sm:$0xff]
      %v907 = vld [vmem:[%s258 + $0x49] sm:$0xff]
      %v908 = vld [vmem:[%s258 + $0x51] sm:$0xff]
      %v909 = vld [vmem:[%s258 + $0x69] sm:$0xff]
      %v910 = vld [vmem:[%s258 + $0x71] sm:$0xff]
      %v911 = vld [vmem:[%s258 + $0x89] sm:$0xff]
      %v912 = vld [vmem:[%s258 + $0x91] sm:$0xff]
      %v913 = vld [vmem:[%s258 + $0xa9] sm:$0xff]
      %v914 = vld [vmem:[%s258 + $0xb1] sm:$0xff]
      %v915 = vld [vmem:[%s258 + $0xc9] sm:$0xff]
      %v916 = vld [vmem:[%s258 + $0xd1] sm:$0xff]
      %v917 = vld [vmem:[%s258 + $0xe9] sm:$0xff]
      %v918 = vld [vmem:[%s258 + $0xf1] sm:$0xff]
      %v919 = vld [vmem:[%s258 + $0x109] sm:$0xff]
      %v920 = vld [vmem:[%s258 + $0x111] sm:$0xff]
      %v921 = vld [vmem:[%s258 + $0x129] sm:$0xff]
      %v922 = vld [vmem:[%s258 + $0x131] sm:$0xff]
      %v923 = vld [vmem:[%s258 + $0x149] sm:$0xff]
      %v924 = vld [vmem:[%s258 + $0x151] sm:$0xff]
      %v925 = vld [vmem:[%s258 + $0x169] sm:$0xff]
      %v926 = vld [vmem:[%s258 + $0x171] sm:$0xff]
      %v927 = vld [vmem:[%s258 + $0x189] sm:$0xff]
      %v928 = vld [vmem:[%s258 + $0x191] sm:$0xff]
      %v929 = vld [vmem:[%s258 + $0x1a9] sm:$0xff]
      %v930 = vld [vmem:[%s258 + $0x1b1] sm:$0xff]
      %v931 = vld [vmem:[%s258 + $0x1c9] sm:$0xff]
      %v932 = vld [vmem:[%s258 + $0x1d1] sm:$0xff]
      %v933 = vld [vmem:[%s258 + $0x1e9] sm:$0xff]
      %v934 = vld [vmem:[%s258 + $0x1f1] sm:$0xff]
      %v935 = vpack.c.bf16 %v904, %v903
      %v936 = vpack.c.bf16 %v906, %v905
      %v937 = vpack.c.bf16 %v908, %v907
      %v938 = vpack.c.bf16 %v910, %v909
      %v939 = vpack.c.bf16 %v912, %v911
      %v940 = vpack.c.bf16 %v914, %v913
      %v941 = vpack.c.bf16 %v916, %v915
      %v942 = vpack.c.bf16 %v918, %v917
      %v943 = vpack.c.bf16 %v920, %v919
      %v944 = vpack.c.bf16 %v922, %v921
      %v945 = vpack.c.bf16 %v924, %v923
      %v946 = vpack.c.bf16 %v926, %v925
      %v947 = vpack.c.bf16 %v928, %v927
      %v948 = vpack.c.bf16 %v930, %v929
      %v949 = vpack.c.bf16 %v932, %v931
      %v950 = vpack.c.bf16 %v934, %v933
      %967 = vrot.lane.b32.xlu0 %v935, 20
      %v968 = vpop.permute.xlu0 %967
      %969 = vrot.lane.b32.xlu0 %v936, 20
      %v970 = vpop.permute.xlu0 %969
      %971 = vrot.lane.b32.xlu0 %v937, 20
      %v972 = vpop.permute.xlu0 %971
      %973 = vrot.lane.b32.xlu0 %v938, 20
      %v974 = vpop.permute.xlu0 %973
      %975 = vrot.lane.b32.xlu0 %v939, 20
      %v976 = vpop.permute.xlu0 %975
      %977 = vrot.lane.b32.xlu0 %v940, 20
      %v978 = vpop.permute.xlu0 %977
      %979 = vrot.lane.b32.xlu0 %v941, 20
      %v980 = vpop.permute.xlu0 %979
      %981 = vrot.lane.b32.xlu0 %v942, 20
      %v982 = vpop.permute.xlu0 %981
      %983 = vrot.lane.b32.xlu0 %v943, 20
      %v984 = vpop.permute.xlu0 %983
      %985 = vrot.lane.b32.xlu0 %v944, 20
      %v986 = vpop.permute.xlu0 %985
      %987 = vrot.lane.b32.xlu0 %v945, 20
      %v988 = vpop.permute.xlu0 %987
      %989 = vrot.lane.b32.xlu0 %v946, 20
      %v990 = vpop.permute.xlu0 %989
      %991 = vrot.lane.b32.xlu0 %v947, 20
      %v992 = vpop.permute.xlu0 %991
      %993 = vrot.lane.b32.xlu0 %v948, 20
      %v994 = vpop.permute.xlu0 %993
      %995 = vrot.lane.b32.xlu0 %v949, 20
      %v996 = vpop.permute.xlu0 %995
      %997 = vrot.lane.b32.xlu0 %v950, 20
      %v998 = vpop.permute.xlu0 %997
      %vm1015 = vcmask 195744
      %1016 = vst.msk [vmem:[#allocation3] sm:$0xff] %vm1015, %v968
      %1017 = vst.msk [vmem:[#allocation3 + $0x8] sm:$0xff] %vm1015, %v970
      %1018 = vst.msk [vmem:[#allocation3 + $0x10] sm:$0xff] %vm1015, %v972
      %1019 = vst.msk [vmem:[#allocation3 + $0x18] sm:$0xff] %vm1015, %v974
      %1020 = vst.msk [vmem:[#allocation3 + $0x20] sm:$0xff] %vm1015, %v976
      %1021 = vst.msk [vmem:[#allocation3 + $0x28] sm:$0xff] %vm1015, %v978
      %1022 = vst.msk [vmem:[#allocation3 + $0x30] sm:$0xff] %vm1015, %v980
      %1023 = vst.msk [vmem:[#allocation3 + $0x38] sm:$0xff] %vm1015, %v982
      %1024 = vst.msk [vmem:[#allocation3 + $0x40] sm:$0xff] %vm1015, %v984
      %1025 = vst.msk [vmem:[#allocation3 + $0x48] sm:$0xff] %vm1015, %v986
      %1026 = vst.msk [vmem:[#allocation3 + $0x50] sm:$0xff] %vm1015, %v988
      %1027 = vst.msk [vmem:[#allocation3 + $0x58] sm:$0xff] %vm1015, %v990
      %1028 = vst.msk [vmem:[#allocation3 + $0x60] sm:$0xff] %vm1015, %v992
      %1029 = vst.msk [vmem:[#allocation3 + $0x68] sm:$0xff] %vm1015, %v994
      %1030 = vst.msk [vmem:[#allocation3 + $0x70] sm:$0xff] %vm1015, %v996
      %1031 = vst.msk [vmem:[#allocation3 + $0x78] sm:$0xff] %vm1015, %v998
      %s1032 = scalar_lea.vmem [#allocation2], 64
      %v1033 = vld [vmem:[%s1032 + $0x7] sm:$0xff]
      %v1034 = vld [vmem:[%s1032 + $0xf] sm:$0xff]
      %v1035 = vld [vmem:[%s1032 + $0x27] sm:$0xff]
      %v1036 = vld [vmem:[%s1032 + $0x2f] sm:$0xff]
      %v1037 = vld [vmem:[%s1032 + $0x47] sm:$0xff]
      %v1038 = vld [vmem:[%s1032 + $0x4f] sm:$0xff]
      %v1039 = vld [vmem:[%s1032 + $0x67] sm:$0xff]
      %v1040 = vld [vmem:[%s1032 + $0x6f] sm:$0xff]
      %v1041 = vld [vmem:[%s1032 + $0x87] sm:$0xff]
      %v1042 = vld [vmem:[%s1032 + $0x8f] sm:$0xff]
      %v1043 = vld [vmem:[%s1032 + $0xa7] sm:$0xff]
      %v1044 = vld [vmem:[%s1032 + $0xaf] sm:$0xff]
      %v1045 = vld [vmem:[%s1032 + $0xc7] sm:$0xff]
      %v1046 = vld [vmem:[%s1032 + $0xcf] sm:$0xff]
      %v1047 = vld [vmem:[%s1032 + $0xe7] sm:$0xff]
      %v1048 = vld [vmem:[%s1032 + $0xef] sm:$0xff]
      %v1049 = vld [vmem:[%s1032 + $0x107] sm:$0xff]
      %v1050 = vld [vmem:[%s1032 + $0x10f] sm:$0xff]
      %v1051 = vld [vmem:[%s1032 + $0x127] sm:$0xff]
      %v1052 = vld [vmem:[%s1032 + $0x12f] sm:$0xff]
      %v1053 = vld [vmem:[%s1032 + $0x147] sm:$0xff]
      %v1054 = vld [vmem:[%s1032 + $0x14f] sm:$0xff]
      %v1055 = vld [vmem:[%s1032 + $0x167] sm:$0xff]
      %v1056 = vld [vmem:[%s1032 + $0x16f] sm:$0xff]
      %v1057 = vld [vmem:[%s1032 + $0x187] sm:$0xff]
      %v1058 = vld [vmem:[%s1032 + $0x18f] sm:$0xff]
      %v1059 = vld [vmem:[%s1032 + $0x1a7] sm:$0xff]
      %v1060 = vld [vmem:[%s1032 + $0x1af] sm:$0xff]
      %v1061 = vld [vmem:[%s1032 + $0x1c7] sm:$0xff]
      %v1062 = vld [vmem:[%s1032 + $0x1cf] sm:$0xff]
      %v1063 = vld [vmem:[%s1032 + $0x1e7] sm:$0xff]
      %v1064 = vld [vmem:[%s1032 + $0x1ef] sm:$0xff]
      %v1065 = vpack.c.bf16 %v1034, %v1033
      %v1066 = vpack.c.bf16 %v1036, %v1035
      %v1067 = vpack.c.bf16 %v1038, %v1037
      %v1068 = vpack.c.bf16 %v1040, %v1039
      %v1069 = vpack.c.bf16 %v1042, %v1041
      %v1070 = vpack.c.bf16 %v1044, %v1043
      %v1071 = vpack.c.bf16 %v1046, %v1045
      %v1072 = vpack.c.bf16 %v1048, %v1047
      %v1073 = vpack.c.bf16 %v1050, %v1049
      %v1074 = vpack.c.bf16 %v1052, %v1051
      %v1075 = vpack.c.bf16 %v1054, %v1053
      %v1076 = vpack.c.bf16 %v1056, %v1055
      %v1077 = vpack.c.bf16 %v1058, %v1057
      %v1078 = vpack.c.bf16 %v1060, %v1059
      %v1079 = vpack.c.bf16 %v1062, %v1061
      %v1080 = vpack.c.bf16 %v1064, %v1063
      %1097 = vrot.lane.b32.xlu0 %v1065, 24
      %v1098 = vpop.permute.xlu0 %1097
      %1099 = vrot.lane.b32.xlu0 %v1066, 24
      %v1100 = vpop.permute.xlu0 %1099
      %1101 = vrot.lane.b32.xlu0 %v1067, 24
      %v1102 = vpop.permute.xlu0 %1101
      %1103 = vrot.lane.b32.xlu0 %v1068, 24
      %v1104 = vpop.permute.xlu0 %1103
      %1105 = vrot.lane.b32.xlu0 %v1069, 24
      %v1106 = vpop.permute.xlu0 %1105
      %1107 = vrot.lane.b32.xlu0 %v1070, 24
      %v1108 = vpop.permute.xlu0 %1107
      %1109 = vrot.lane.b32.xlu0 %v1071, 24
      %v1110 = vpop.permute.xlu0 %1109
      %1111 = vrot.lane.b32.xlu0 %v1072, 24
      %v1112 = vpop.permute.xlu0 %1111
      %1113 = vrot.lane.b32.xlu0 %v1073, 24
      %v1114 = vpop.permute.xlu0 %1113
      %1115 = vrot.lane.b32.xlu0 %v1074, 24
      %v1116 = vpop.permute.xlu0 %1115
      %1117 = vrot.lane.b32.xlu0 %v1075, 24
      %v1118 = vpop.permute.xlu0 %1117
      %1119 = vrot.lane.b32.xlu0 %v1076, 24
      %v1120 = vpop.permute.xlu0 %1119
      %1121 = vrot.lane.b32.xlu0 %v1077, 24
      %v1122 = vpop.permute.xlu0 %1121
      %1123 = vrot.lane.b32.xlu0 %v1078, 24
      %v1124 = vpop.permute.xlu0 %1123
      %1125 = vrot.lane.b32.xlu0 %v1079, 24
      %v1126 = vpop.permute.xlu0 %1125
      %1127 = vrot.lane.b32.xlu0 %v1080, 24
      %v1128 = vpop.permute.xlu0 %1127
      %vm1145 = vcmask 228544
      %1146 = vst.msk [vmem:[#allocation3] sm:$0xff] %vm1145, %v1098
      %1147 = vst.msk [vmem:[#allocation3 + $0x8] sm:$0xff] %vm1145, %v1100
      %1148 = vst.msk [vmem:[#allocation3 + $0x10] sm:$0xff] %vm1145, %v1102
      %1149 = vst.msk [vmem:[#allocation3 + $0x18] sm:$0xff] %vm1145, %v1104
      %1150 = vst.msk [vmem:[#allocation3 + $0x20] sm:$0xff] %vm1145, %v1106
      %1151 = vst.msk [vmem:[#allocation3 + $0x28] sm:$0xff] %vm1145, %v1108
      %1152 = vst.msk [vmem:[#allocation3 + $0x30] sm:$0xff] %vm1145, %v1110
      %1153 = vst.msk [vmem:[#allocation3 + $0x38] sm:$0xff] %vm1145, %v1112
      %1154 = vst.msk [vmem:[#allocation3 + $0x40] sm:$0xff] %vm1145, %v1114
      %1155 = vst.msk [vmem:[#allocation3 + $0x48] sm:$0xff] %vm1145, %v1116
      %1156 = vst.msk [vmem:[#allocation3 + $0x50] sm:$0xff] %vm1145, %v1118
      %1157 = vst.msk [vmem:[#allocation3 + $0x58] sm:$0xff] %vm1145, %v1120
      %1158 = vst.msk [vmem:[#allocation3 + $0x60] sm:$0xff] %vm1145, %v1122
      %1159 = vst.msk [vmem:[#allocation3 + $0x68] sm:$0xff] %vm1145, %v1124
      %1160 = vst.msk [vmem:[#allocation3 + $0x70] sm:$0xff] %vm1145, %v1126
      %1161 = vst.msk [vmem:[#allocation3 + $0x78] sm:$0xff] %vm1145, %v1128
      %v1162 = vld [vmem:[%s1032 + $0x8] sm:$0xff]
      %v1163 = vld [vmem:[%s1032 + $0x10] sm:$0xff]
      %v1164 = vld [vmem:[%s1032 + $0x28] sm:$0xff]
      %v1165 = vld [vmem:[%s1032 + $0x30] sm:$0xff]
      %v1166 = vld [vmem:[%s1032 + $0x48] sm:$0xff]
      %v1167 = vld [vmem:[%s1032 + $0x50] sm:$0xff]
      %v1168 = vld [vmem:[%s1032 + $0x68] sm:$0xff]
      %v1169 = vld [vmem:[%s1032 + $0x70] sm:$0xff]
      %v1170 = vld [vmem:[%s1032 + $0x88] sm:$0xff]
      %v1171 = vld [vmem:[%s1032 + $0x90] sm:$0xff]
      %v1172 = vld [vmem:[%s1032 + $0xa8] sm:$0xff]
      %v1173 = vld [vmem:[%s1032 + $0xb0] sm:$0xff]
      %v1174 = vld [vmem:[%s1032 + $0xc8] sm:$0xff]
      %v1175 = vld [vmem:[%s1032 + $0xd0] sm:$0xff]
      %v1176 = vld [vmem:[%s1032 + $0xe8] sm:$0xff]
      %v1177 = vld [vmem:[%s1032 + $0xf0] sm:$0xff]
      %v1178 = vld [vmem:[%s1032 + $0x108] sm:$0xff]
      %v1179 = vld [vmem:[%s1032 + $0x110] sm:$0xff]
      %v1180 = vld [vmem:[%s1032 + $0x128] sm:$0xff]
      %v1181 = vld [vmem:[%s1032 + $0x130] sm:$0xff]
      %v1182 = vld [vmem:[%s1032 + $0x148] sm:$0xff]
      %v1183 = vld [vmem:[%s1032 + $0x150] sm:$0xff]
      %v1184 = vld [vmem:[%s1032 + $0x168] sm:$0xff]
      %v1185 = vld [vmem:[%s1032 + $0x170] sm:$0xff]
      %v1186 = vld [vmem:[%s1032 + $0x188] sm:$0xff]
      %v1187 = vld [vmem:[%s1032 + $0x190] sm:$0xff]
      %v1188 = vld [vmem:[%s1032 + $0x1a8] sm:$0xff]
      %v1189 = vld [vmem:[%s1032 + $0x1b0] sm:$0xff]
      %v1190 = vld [vmem:[%s1032 + $0x1c8] sm:$0xff]
      %v1191 = vld [vmem:[%s1032 + $0x1d0] sm:$0xff]
      %v1192 = vld [vmem:[%s1032 + $0x1e8] sm:$0xff]
      %v1193 = vld [vmem:[%s1032 + $0x1f0] sm:$0xff]
      %v1194 = vpack.c.bf16 %v1163, %v1162
      %v1195 = vpack.c.bf16 %v1165, %v1164
      %v1196 = vpack.c.bf16 %v1167, %v1166
      %v1197 = vpack.c.bf16 %v1169, %v1168
      %v1198 = vpack.c.bf16 %v1171, %v1170
      %v1199 = vpack.c.bf16 %v1173, %v1172
      %v1200 = vpack.c.bf16 %v1175, %v1174
      %v1201 = vpack.c.bf16 %v1177, %v1176
      %v1202 = vpack.c.bf16 %v1179, %v1178
      %v1203 = vpack.c.bf16 %v1181, %v1180
      %v1204 = vpack.c.bf16 %v1183, %v1182
      %v1205 = vpack.c.bf16 %v1185, %v1184
      %v1206 = vpack.c.bf16 %v1187, %v1186
      %v1207 = vpack.c.bf16 %v1189, %v1188
      %v1208 = vpack.c.bf16 %v1191, %v1190
      %v1209 = vpack.c.bf16 %v1193, %v1192
      %1226 = vrot.lane.b32.xlu0 %v1194, 28
      %v1227 = vpop.permute.xlu0 %1226
      %1228 = vrot.lane.b32.xlu0 %v1195, 28
      %v1229 = vpop.permute.xlu0 %1228
      %1230 = vrot.lane.b32.xlu0 %v1196, 28
      %v1231 = vpop.permute.xlu0 %1230
      %1232 = vrot.lane.b32.xlu0 %v1197, 28
      %v1233 = vpop.permute.xlu0 %1232
      %1234 = vrot.lane.b32.xlu0 %v1198, 28
      %v1235 = vpop.permute.xlu0 %1234
      %1236 = vrot.lane.b32.xlu0 %v1199, 28
      %v1237 = vpop.permute.xlu0 %1236
      %1238 = vrot.lane.b32.xlu0 %v1200, 28
      %v1239 = vpop.permute.xlu0 %1238
      %1240 = vrot.lane.b32.xlu0 %v1201, 28
      %v1241 = vpop.permute.xlu0 %1240
      %1242 = vrot.lane.b32.xlu0 %v1202, 28
      %v1243 = vpop.permute.xlu0 %1242
      %1244 = vrot.lane.b32.xlu0 %v1203, 28
      %v1245 = vpop.permute.xlu0 %1244
      %1246 = vrot.lane.b32.xlu0 %v1204, 28
      %v1247 = vpop.permute.xlu0 %1246
      %1248 = vrot.lane.b32.xlu0 %v1205, 28
      %v1249 = vpop.permute.xlu0 %1248
      %1250 = vrot.lane.b32.xlu0 %v1206, 28
      %v1251 = vpop.permute.xlu0 %1250
      %1252 = vrot.lane.b32.xlu0 %v1207, 28
      %v1253 = vpop.permute.xlu0 %1252
      %1254 = vrot.lane.b32.xlu0 %v1208, 28
      %v1255 = vpop.permute.xlu0 %1254
      %1256 = vrot.lane.b32.xlu0 %v1209, 28
      %v1257 = vpop.permute.xlu0 %1256
      %vm1274 = vcmask 261344
      %1275 = vst.msk [vmem:[#allocation3] sm:$0xff] %vm1274, %v1227
      %1276 = vst.msk [vmem:[#allocation3 + $0x8] sm:$0xff] %vm1274, %v1229
      %1277 = vst.msk [vmem:[#allocation3 + $0x10] sm:$0xff] %vm1274, %v1231
      %1278 = vst.msk [vmem:[#allocation3 + $0x18] sm:$0xff] %vm1274, %v1233
      %1279 = vst.msk [vmem:[#allocation3 + $0x20] sm:$0xff] %vm1274, %v1235
      %1280 = vst.msk [vmem:[#allocation3 + $0x28] sm:$0xff] %vm1274, %v1237
      %1281 = vst.msk [vmem:[#allocation3 + $0x30] sm:$0xff] %vm1274, %v1239
      %1282 = vst.msk [vmem:[#allocation3 + $0x38] sm:$0xff] %vm1274, %v1241
      %1283 = vst.msk [vmem:[#allocation3 + $0x40] sm:$0xff] %vm1274, %v1243
      %1284 = vst.msk [vmem:[#allocation3 + $0x48] sm:$0xff] %vm1274, %v1245
      %1285 = vst.msk [vmem:[#allocation3 + $0x50] sm:$0xff] %vm1274, %v1247
      %1286 = vst.msk [vmem:[#allocation3 + $0x58] sm:$0xff] %vm1274, %v1249
      %1287 = vst.msk [vmem:[#allocation3 + $0x60] sm:$0xff] %vm1274, %v1251
      %1288 = vst.msk [vmem:[#allocation3 + $0x68] sm:$0xff] %vm1274, %v1253
      %1289 = vst.msk [vmem:[#allocation3 + $0x70] sm:$0xff] %vm1274, %v1255
      %1290 = vst.msk [vmem:[#allocation3 + $0x78] sm:$0xff] %vm1274, %v1257
      %v1291 = vld [vmem:[%s1032 + $0x9] sm:$0xff]
      %v1292 = vld [vmem:[%s1032 + $0x11] sm:$0xff]
      %v1293 = vld [vmem:[%s1032 + $0x29] sm:$0xff]
      %v1294 = vld [vmem:[%s1032 + $0x31] sm:$0xff]
      %v1295 = vld [vmem:[%s1032 + $0x49] sm:$0xff]
      %v1296 = vld [vmem:[%s1032 + $0x51] sm:$0xff]
      %v1297 = vld [vmem:[%s1032 + $0x69] sm:$0xff]
      %v1298 = vld [vmem:[%s1032 + $0x71] sm:$0xff]
      %v1299 = vld [vmem:[%s1032 + $0x89] sm:$0xff]
      %v1300 = vld [vmem:[%s1032 + $0x91] sm:$0xff]
      %v1301 = vld [vmem:[%s1032 + $0xa9] sm:$0xff]
      %v1302 = vld [vmem:[%s1032 + $0xb1] sm:$0xff]
      %v1303 = vld [vmem:[%s1032 + $0xc9] sm:$0xff]
      %v1304 = vld [vmem:[%s1032 + $0xd1] sm:$0xff]
      %v1305 = vld [vmem:[%s1032 + $0xe9] sm:$0xff]
      %v1306 = vld [vmem:[%s1032 + $0xf1] sm:$0xff]
      %v1307 = vld [vmem:[%s1032 + $0x109] sm:$0xff]
      %v1308 = vld [vmem:[%s1032 + $0x111] sm:$0xff]
      %v1309 = vld [vmem:[%s1032 + $0x129] sm:$0xff]
      %v1310 = vld [vmem:[%s1032 + $0x131] sm:$0xff]
      %v1311 = vld [vmem:[%s1032 + $0x149] sm:$0xff]
      %v1312 = vld [vmem:[%s1032 + $0x151] sm:$0xff]
      %v1313 = vld [vmem:[%s1032 + $0x169] sm:$0xff]
      %v1314 = vld [vmem:[%s1032 + $0x171] sm:$0xff]
      %v1315 = vld [vmem:[%s1032 + $0x189] sm:$0xff]
      %v1316 = vld [vmem:[%s1032 + $0x191] sm:$0xff]
      %v1317 = vld [vmem:[%s1032 + $0x1a9] sm:$0xff]
      %v1318 = vld [vmem:[%s1032 + $0x1b1] sm:$0xff]
      %v1319 = vld [vmem:[%s1032 + $0x1c9] sm:$0xff]
      %v1320 = vld [vmem:[%s1032 + $0x1d1] sm:$0xff]
      %v1321 = vld [vmem:[%s1032 + $0x1e9] sm:$0xff]
      %v1322 = vld [vmem:[%s1032 + $0x1f1] sm:$0xff]
      %v1323 = vpack.c.bf16 %v1292, %v1291
      %v1324 = vpack.c.bf16 %v1294, %v1293
      %v1325 = vpack.c.bf16 %v1296, %v1295
      %v1326 = vpack.c.bf16 %v1298, %v1297
      %v1327 = vpack.c.bf16 %v1300, %v1299
      %v1328 = vpack.c.bf16 %v1302, %v1301
      %v1329 = vpack.c.bf16 %v1304, %v1303
      %v1330 = vpack.c.bf16 %v1306, %v1305
      %v1331 = vpack.c.bf16 %v1308, %v1307
      %v1332 = vpack.c.bf16 %v1310, %v1309
      %v1333 = vpack.c.bf16 %v1312, %v1311
      %v1334 = vpack.c.bf16 %v1314, %v1313
      %v1335 = vpack.c.bf16 %v1316, %v1315
      %v1336 = vpack.c.bf16 %v1318, %v1317
      %v1337 = vpack.c.bf16 %v1320, %v1319
      %v1338 = vpack.c.bf16 %v1322, %v1321
      %1355 = vrot.lane.b32.xlu0 %v1323, 32
      %v1356 = vpop.permute.xlu0 %1355
      %1357 = vrot.lane.b32.xlu0 %v1324, 32
      %v1358 = vpop.permute.xlu0 %1357
      %1359 = vrot.lane.b32.xlu0 %v1325, 32
      %v1360 = vpop.permute.xlu0 %1359
      %1361 = vrot.lane.b32.xlu0 %v1326, 32
      %v1362 = vpop.permute.xlu0 %1361
      %1363 = vrot.lane.b32.xlu0 %v1327, 32
      %v1364 = vpop.permute.xlu0 %1363
      %1365 = vrot.lane.b32.xlu0 %v1328, 32
      %v1366 = vpop.permute.xlu0 %1365
      %1367 = vrot.lane.b32.xlu0 %v1329, 32
      %v1368 = vpop.permute.xlu0 %1367
      %1369 = vrot.lane.b32.xlu0 %v1330, 32
      %v1370 = vpop.permute.xlu0 %1369
      %1371 = vrot.lane.b32.xlu0 %v1331, 32
      %v1372 = vpop.permute.xlu0 %1371
      %1373 = vrot.lane.b32.xlu0 %v1332, 32
      %v1374 = vpop.permute.xlu0 %1373
      %1375 = vrot.lane.b32.xlu0 %v1333, 32
      %v1376 = vpop.permute.xlu0 %1375
      %1377 = vrot.lane.b32.xlu0 %v1334, 32
      %v1378 = vpop.permute.xlu0 %1377
      %1379 = vrot.lane.b32.xlu0 %v1335, 32
      %v1380 = vpop.permute.xlu0 %1379
      %1381 = vrot.lane.b32.xlu0 %v1336, 32
      %v1382 = vpop.permute.xlu0 %1381
      %1383 = vrot.lane.b32.xlu0 %v1337, 32
      %v1384 = vpop.permute.xlu0 %1383
      %1385 = vrot.lane.b32.xlu0 %v1338, 32
      %v1386 = vpop.permute.xlu0 %1385
      %vm1403 = vcmask 294144
      %1404 = vst.msk [vmem:[#allocation3] sm:$0xff] %vm1403, %v1356
      %1405 = vst.msk [vmem:[#allocation3 + $0x8] sm:$0xff] %vm1403, %v1358
      %1406 = vst.msk [vmem:[#allocation3 + $0x10] sm:$0xff] %vm1403, %v1360
      %1407 = vst.msk [vmem:[#allocation3 + $0x18] sm:$0xff] %vm1403, %v1362
      %1408 = vst.msk [vmem:[#allocation3 + $0x20] sm:$0xff] %vm1403, %v1364
      %1409 = vst.msk [vmem:[#allocation3 + $0x28] sm:$0xff] %vm1403, %v1366
      %1410 = vst.msk [vmem:[#allocation3 + $0x30] sm:$0xff] %vm1403, %v1368
      %1411 = vst.msk [vmem:[#allocation3 + $0x38] sm:$0xff] %vm1403, %v1370
      %1412 = vst.msk [vmem:[#allocation3 + $0x40] sm:$0xff] %vm1403, %v1372
      %1413 = vst.msk [vmem:[#allocation3 + $0x48] sm:$0xff] %vm1403, %v1374
      %1414 = vst.msk [vmem:[#allocation3 + $0x50] sm:$0xff] %vm1403, %v1376
      %1415 = vst.msk [vmem:[#allocation3 + $0x58] sm:$0xff] %vm1403, %v1378
      %1416 = vst.msk [vmem:[#allocation3 + $0x60] sm:$0xff] %vm1403, %v1380
      %1417 = vst.msk [vmem:[#allocation3 + $0x68] sm:$0xff] %vm1403, %v1382
      %1418 = vst.msk [vmem:[#allocation3 + $0x70] sm:$0xff] %vm1403, %v1384
      %1419 = vst.msk [vmem:[#allocation3 + $0x78] sm:$0xff] %vm1403, %v1386
      %v1420 = vld [vmem:[#allocation3] sm:$0xff]
      %v1421 = vld [vmem:[#allocation3 + $0x8] sm:$0xff]
      %v1422 = vld [vmem:[#allocation3 + $0x10] sm:$0xff]
      %v1423 = vld [vmem:[#allocation3 + $0x18] sm:$0xff]
      %v1424 = vld [vmem:[#allocation3 + $0x20] sm:$0xff]
      %v1425 = vld [vmem:[#allocation3 + $0x28] sm:$0xff]
      %v1426 = vld [vmem:[#allocation3 + $0x30] sm:$0xff]
      %v1427 = vld [vmem:[#allocation3 + $0x38] sm:$0xff]
      %v1428 = vld [vmem:[#allocation3 + $0x40] sm:$0xff]
      %v1429 = vld [vmem:[#allocation3 + $0x48] sm:$0xff]
      %v1430 = vld [vmem:[#allocation3 + $0x50] sm:$0xff]
      %v1431 = vld [vmem:[#allocation3 + $0x58] sm:$0xff]
      %v1432 = vld [vmem:[#allocation3 + $0x60] sm:$0xff]
      %v1433 = vld [vmem:[#allocation3 + $0x68] sm:$0xff]
      %v1434 = vld [vmem:[#allocation3 + $0x70] sm:$0xff]
      %v1435 = vld [vmem:[#allocation3 + $0x78] sm:$0xff]
      %v1436 = vld [vmem:[%s1] sm:$0xf]
      %v1437 = vld [vmem:[%s1 + $0x4] sm:$0xf]
      %v1438 = vld [vmem:[%s1 + $0x8] sm:$0xf]
      %v1439 = vld [vmem:[%s1 + $0xc] sm:$0xf]
      %v1440 = vld [vmem:[%s1 + $0x10] sm:$0x3]
      %v1446 = vunpack.c.l.b16 %v1436
      %v1447 = vunpack.c.l.b16 %v1437
      %v1448 = vunpack.c.l.b16 %v1438
      %v1449 = vunpack.c.l.b16 %v1439
      %v1450 = vunpack.c.l.b16 %v1440
      %v1451 = vpack.c.b16 %v1447, %v1446
      %v1452 = vpack.c.b16 %v1449, %v1448
      %v1453 = vpack.c.b16 %v1450, %v1450
      %vm1456 = vcmask 293888
      %v1458 = vsel %vm1456, %v1420, 0
      %v1461 = vsel %vm1456, %v1421, 0
      %v1464 = vsel %vm1456, %v1422, 0
      %v1467 = vsel %vm1456, %v1423, 0
      %v1470 = vsel %vm1456, %v1424, 0
      %v1473 = vsel %vm1456, %v1425, 0
      %v1476 = vsel %vm1456, %v1426, 0
      %v1479 = vsel %vm1456, %v1427, 0
      %v1482 = vsel %vm1456, %v1428, 0
      %v1485 = vsel %vm1456, %v1429, 0
      %v1488 = vsel %vm1456, %v1430, 0
      %v1491 = vsel %vm1456, %v1431, 0
      %v1494 = vsel %vm1456, %v1432, 0
      %v1497 = vsel %vm1456, %v1433, 0
      %v1500 = vsel %vm1456, %v1434, 0
      %v1503 = vsel %vm1456, %v1435, 0
      %vm1505 = vcmask 1041408
      %v1507 = vsel %vm1505, %v1453, 0
      %1509 = vmatprep.subr.bf16.mxu0 0
      %1510 = vmatpush1.bf16.msra.mxu0 %v1451
      %1511 = vmatprep.subr.bf16.mxu0 0
      %1512 = vmatpush1.bf16.msra.mxu0 %v1452
      %1513 = vmatprep.subr.bf16.mxu0 0
      %1514 = vmatpush1.bf16.msra.mxu0 %v1507
      %1515 = vmatprep.subr.bf16.mxu0 0
      %1516 = vmatpush1.bf16.msra.mxu0 0
      %1517 = vmatprep.subr.bf16.mxu0 0
      %1518 = vmatpush1.bf16.msra.mxu0 0
      %1519 = vmatprep.subr.bf16.mxu0 0
      %1520 = vmatpush1.bf16.msra.mxu0 0
      %1521 = vmatprep.subr.bf16.mxu0 0
      %1522 = vmatpush1.bf16.msra.mxu0 0
      %1523 = vmatprep.subr.bf16.mxu0 0
      %1524 = vmatpush1.bf16.msra.mxu0 0
      %1525 = vmatprep.subr.bf16.mxu0 0
      %1526 = vmatpush1.bf16.msra.mxu0 0
      %1527 = vmatprep.subr.bf16.mxu0 0
      %1528 = vmatpush1.bf16.msra.mxu0 0
      %1529 = vmatprep.subr.bf16.mxu0 0
      %1530 = vmatpush1.bf16.msra.mxu0 0
      %1531 = vmatprep.subr.bf16.mxu0 0
      %1532 = vmatpush1.bf16.msra.mxu0 0
      %1533 = vmatprep.subr.bf16.mxu0 0
      %1534 = vmatpush1.bf16.msra.mxu0 0
      %1535 = vmatprep.subr.bf16.mxu0 0
      %1536 = vmatpush1.bf16.msra.mxu0 0
      %1537 = vmatprep.subr.bf16.mxu0 0
      %1538 = vmatpush1.bf16.msra.mxu0 0
      %1539 = vmatprep.subr.bf16.mxu0 0
      %1540 = vmatpush1.bf16.msra.mxu0 0
      %1541 = vmatprep.mubr.bf16.mxu0 0
      %1542 = vmatmul.mubr.bf16.gmra.mrb[0].mxu0 %v1458
      %v1543 = vpop.f32.mrb[0].mxu0
      %v1544 = vadd.f32 0.0, %v1543
      %v1545 = vpop.f32.mrb[0].mxu0
      %v1546 = vpop.f32.mrb[0].mxu0
      %v1547 = vadd.f32 0.0, %v1546
      %v1548 = vpop.f32.mrb[0].mxu0
      %1549 = vmatprep.mubr.bf16.mxu0 0
      %1550 = vmatmul.mubr.bf16.gmra.mrb[0].mxu0 %v1461
      %v1551 = vpop.f32.mrb[0].mxu0
      %v1552 = vadd.f32 0.0, %v1551
      %v1553 = vpop.f32.mrb[0].mxu0
      %v1554 = vpop.f32.mrb[0].mxu0
      %v1555 = vadd.f32 0.0, %v1554
      %v1556 = vpop.f32.mrb[0].mxu0
      %1557 = vmatprep.mubr.bf16.mxu0 0
      %1558 = vmatmul.mubr.bf16.gmra.mrb[0].mxu0 %v1464
      %v1559 = vpop.f32.mrb[0].mxu0
      %v1560 = vadd.f32 0.0, %v1559
      %v1561 = vpop.f32.mrb[0].mxu0
      %v1562 = vpop.f32.mrb[0].mxu0
      %v1563 = vadd.f32 0.0, %v1562
      %v1564 = vpop.f32.mrb[0].mxu0
      %1565 = vmatprep.mubr.bf16.mxu0 0
      %1566 = vmatmul.mubr.bf16.gmra.mrb[0].mxu0 %v1467
      %v1567 = vpop.f32.mrb[0].mxu0
      %v1568 = vadd.f32 0.0, %v1567
      %v1569 = vpop.f32.mrb[0].mxu0
      %v1570 = vpop.f32.mrb[0].mxu0
      %v1571 = vadd.f32 0.0, %v1570
      %v1572 = vpop.f32.mrb[0].mxu0
      %1573 = vmatprep.mubr.bf16.mxu0 0
      %1574 = vmatmul.mubr.bf16.gmra.mrb[0].mxu0 %v1470
      %v1575 = vpop.f32.mrb[0].mxu0
      %v1576 = vadd.f32 0.0, %v1575
      %v1577 = vpop.f32.mrb[0].mxu0
      %v1578 = vpop.f32.mrb[0].mxu0
      %v1579 = vadd.f32 0.0, %v1578
      %v1580 = vpop.f32.mrb[0].mxu0
      %1581 = vmatprep.mubr.bf16.mxu0 0
      %1582 = vmatmul.mubr.bf16.gmra.mrb[0].mxu0 %v1473
      %v1583 = vpop.f32.mrb[0].mxu0
      %v1584 = vadd.f32 0.0, %v1583
      %v1585 = vpop.f32.mrb[0].mxu0
      %v1586 = vpop.f32.mrb[0].mxu0
      %v1587 = vadd.f32 0.0, %v1586
      %v1588 = vpop.f32.mrb[0].mxu0
      %1589 = vmatprep.mubr.bf16.mxu0 0
      %1590 = vmatmul.mubr.bf16.gmra.mrb[0].mxu0 %v1476
      %v1591 = vpop.f32.mrb[0].mxu0
      %v1592 = vadd.f32 0.0, %v1591
      %v1593 = vpop.f32.mrb[0].mxu0
      %v1594 = vpop.f32.mrb[0].mxu0
      %v1595 = vadd.f32 0.0, %v1594
      %v1596 = vpop.f32.mrb[0].mxu0
      %1597 = vmatprep.mubr.bf16.mxu0 0
      %1598 = vmatmul.mubr.bf16.gmra.mrb[0].mxu0 %v1479
      %v1599 = vpop.f32.mrb[0].mxu0
      %v1600 = vadd.f32 0.0, %v1599
      %v1601 = vpop.f32.mrb[0].mxu0
      %v1602 = vpop.f32.mrb[0].mxu0
      %v1603 = vadd.f32 0.0, %v1602
      %v1604 = vpop.f32.mrb[0].mxu0
      %1605 = vmatprep.mubr.bf16.mxu0 0
      %1606 = vmatmul.mubr.bf16.gmra.mrb[0].mxu0 %v1482
      %v1607 = vpop.f32.mrb[0].mxu0
      %v1608 = vadd.f32 0.0, %v1607
      %v1609 = vpop.f32.mrb[0].mxu0
      %v1610 = vpop.f32.mrb[0].mxu0
      %v1611 = vadd.f32 0.0, %v1610
      %v1612 = vpop.f32.mrb[0].mxu0
      %1613 = vmatprep.mubr.bf16.mxu0 0
      %1614 = vmatmul.mubr.bf16.gmra.mrb[0].mxu0 %v1485
      %v1615 = vpop.f32.mrb[0].mxu0
      %v1616 = vadd.f32 0.0, %v1615
      %v1617 = vpop.f32.mrb[0].mxu0
      %v1618 = vpop.f32.mrb[0].mxu0
      %v1619 = vadd.f32 0.0, %v1618
      %v1620 = vpop.f32.mrb[0].mxu0
      %1621 = vmatprep.mubr.bf16.mxu0 0
      %1622 = vmatmul.mubr.bf16.gmra.mrb[0].mxu0 %v1488
      %v1623 = vpop.f32.mrb[0].mxu0
      %v1624 = vadd.f32 0.0, %v1623
      %v1625 = vpop.f32.mrb[0].mxu0
      %v1626 = vpop.f32.mrb[0].mxu0
      %v1627 = vadd.f32 0.0, %v1626
      %v1628 = vpop.f32.mrb[0].mxu0
      %1629 = vmatprep.mubr.bf16.mxu0 0
      %1630 = vmatmul.mubr.bf16.gmra.mrb[0].mxu0 %v1491
      %v1631 = vpop.f32.mrb[0].mxu0
      %v1632 = vadd.f32 0.0, %v1631
      %v1633 = vpop.f32.mrb[0].mxu0
      %v1634 = vpop.f32.mrb[0].mxu0
      %v1635 = vadd.f32 0.0, %v1634
      %v1636 = vpop.f32.mrb[0].mxu0
      %1637 = vmatprep.mubr.bf16.mxu0 0
      %1638 = vmatmul.mubr.bf16.gmra.mrb[0].mxu0 %v1494
      %v1639 = vpop.f32.mrb[0].mxu0
      %v1640 = vadd.f32 0.0, %v1639
      %v1641 = vpop.f32.mrb[0].mxu0
      %v1642 = vpop.f32.mrb[0].mxu0
      %v1643 = vadd.f32 0.0, %v1642
      %v1644 = vpop.f32.mrb[0].mxu0
      %1645 = vmatprep.mubr.bf16.mxu0 0
      %1646 = vmatmul.mubr.bf16.gmra.mrb[0].mxu0 %v1497
      %v1647 = vpop.f32.mrb[0].mxu0
      %v1648 = vadd.f32 0.0, %v1647
      %v1649 = vpop.f32.mrb[0].mxu0
      %v1650 = vpop.f32.mrb[0].mxu0
      %v1651 = vadd.f32 0.0, %v1650
      %v1652 = vpop.f32.mrb[0].mxu0
      %1653 = vmatprep.mubr.bf16.mxu0 0
      %1654 = vmatmul.mubr.bf16.gmra.mrb[0].mxu0 %v1500
      %v1655 = vpop.f32.mrb[0].mxu0
      %v1656 = vadd.f32 0.0, %v1655
      %v1657 = vpop.f32.mrb[0].mxu0
      %v1658 = vpop.f32.mrb[0].mxu0
      %v1659 = vadd.f32 0.0, %v1658
      %v1660 = vpop.f32.mrb[0].mxu0
      %1661 = vmatprep.mubr.bf16.mxu0 0
      %1662 = vmatmul.mubr.bf16.gmra.mrb[0].mxu0 %v1503
      %v1663 = vpop.f32.mrb[0].mxu0
      %v1664 = vadd.f32 0.0, %v1663
      %v1665 = vpop.f32.mrb[0].mxu0
      %v1666 = vpop.f32.mrb[0].mxu0
      %v1667 = vadd.f32 0.0, %v1666
      %v1668 = vpop.f32.mrb[0].mxu0
      %1669 = vdwg.mxu0
      %v1670 = vpack.c.bf16 %v1547, %v1544
      %v1671 = vpack.c.bf16 %v1555, %v1552
      %v1672 = vpack.c.bf16 %v1563, %v1560
      %v1673 = vpack.c.bf16 %v1571, %v1568
      %v1674 = vpack.c.bf16 %v1579, %v1576
      %v1675 = vpack.c.bf16 %v1587, %v1584
      %v1676 = vpack.c.bf16 %v1595, %v1592
      %v1677 = vpack.c.bf16 %v1603, %v1600
      %v1678 = vpack.c.bf16 %v1611, %v1608
      %v1679 = vpack.c.bf16 %v1619, %v1616
      %v1680 = vpack.c.bf16 %v1627, %v1624
      %v1681 = vpack.c.bf16 %v1635, %v1632
      %v1682 = vpack.c.bf16 %v1643, %v1640
      %v1683 = vpack.c.bf16 %v1651, %v1648
      %v1684 = vpack.c.bf16 %v1659, %v1656
      %v1685 = vpack.c.bf16 %v1667, %v1664
      %v1702 = vunpack.c.l.b16 %v1670
      %v1703 = vunpack.c.h.b16 %v1670
      %v1704 = vunpack.c.l.b16 %v1671
      %v1705 = vunpack.c.h.b16 %v1671
      %v1706 = vunpack.c.l.b16 %v1672
      %v1707 = vunpack.c.h.b16 %v1672
      %v1708 = vunpack.c.l.b16 %v1673
      %v1709 = vunpack.c.h.b16 %v1673
      %v1710 = vunpack.c.l.b16 %v1674
      %v1711 = vunpack.c.h.b16 %v1674
      %v1712 = vunpack.c.l.b16 %v1675
      %v1713 = vunpack.c.h.b16 %v1675
      %v1714 = vunpack.c.l.b16 %v1676
      %v1715 = vunpack.c.h.b16 %v1676
      %v1716 = vunpack.c.l.b16 %v1677
      %v1717 = vunpack.c.h.b16 %v1677
      %v1718 = vunpack.c.l.b16 %v1678
      %v1719 = vunpack.c.h.b16 %v1678
      %v1720 = vunpack.c.l.b16 %v1679
      %v1721 = vunpack.c.h.b16 %v1679
      %v1722 = vunpack.c.l.b16 %v1680
      %v1723 = vunpack.c.h.b16 %v1680
      %v1724 = vunpack.c.l.b16 %v1681
      %v1725 = vunpack.c.h.b16 %v1681
      %v1726 = vunpack.c.l.b16 %v1682
      %v1727 = vunpack.c.h.b16 %v1682
      %v1728 = vunpack.c.l.b16 %v1683
      %v1729 = vunpack.c.h.b16 %v1683
      %v1730 = vunpack.c.l.b16 %v1684
      %v1731 = vunpack.c.h.b16 %v1684
      %v1732 = vunpack.c.l.b16 %v1685
      %v1733 = vunpack.c.h.b16 %v1685
      %v1734 = vpack.c.b16 %v1702, %v1702
      %v1735 = vpack.c.b16 %v1703, %v1703
      %v1736 = vpack.c.b16 %v1704, %v1704
      %v1737 = vpack.c.b16 %v1705, %v1705
      %v1738 = vpack.c.b16 %v1706, %v1706
      %v1739 = vpack.c.b16 %v1707, %v1707
      %v1740 = vpack.c.b16 %v1708, %v1708
      %v1741 = vpack.c.b16 %v1709, %v1709
      %v1742 = vpack.c.b16 %v1710, %v1710
      %v1743 = vpack.c.b16 %v1711, %v1711
      %v1744 = vpack.c.b16 %v1712, %v1712
      %v1745 = vpack.c.b16 %v1713, %v1713
      %v1746 = vpack.c.b16 %v1714, %v1714
      %v1747 = vpack.c.b16 %v1715, %v1715
      %v1748 = vpack.c.b16 %v1716, %v1716
      %v1749 = vpack.c.b16 %v1717, %v1717
      %v1750 = vpack.c.b16 %v1718, %v1718
      %v1751 = vpack.c.b16 %v1719, %v1719
      %v1752 = vpack.c.b16 %v1720, %v1720
      %v1753 = vpack.c.b16 %v1721, %v1721
      %v1754 = vpack.c.b16 %v1722, %v1722
      %v1755 = vpack.c.b16 %v1723, %v1723
      %v1756 = vpack.c.b16 %v1724, %v1724
      %v1757 = vpack.c.b16 %v1725, %v1725
      %v1758 = vpack.c.b16 %v1726, %v1726
      %v1759 = vpack.c.b16 %v1727, %v1727
      %v1760 = vpack.c.b16 %v1728, %v1728
      %v1761 = vpack.c.b16 %v1729, %v1729
      %v1762 = vpack.c.b16 %v1730, %v1730
      %v1763 = vpack.c.b16 %v1731, %v1731
      %v1764 = vpack.c.b16 %v1732, %v1732
      %v1765 = vpack.c.b16 %v1733, %v1733
      %vm1798 = vcmask 27648
      %1799 = vst.msk [vmem:[%s208] sm:$0xf] %vm1798, %v1734
      %1800 = vst.msk [vmem:[%s208 + $0x4] sm:$0xf] %vm1798, %v1735
      %1801 = vst.msk [vmem:[%s208 + $0x8] sm:$0xf] %vm1798, %v1736
      %1802 = vst.msk [vmem:[%s208 + $0xc] sm:$0xf] %vm1798, %v1737
      %1803 = vst.msk [vmem:[%s208 + $0x10] sm:$0xf] %vm1798, %v1738
      %1804 = vst.msk [vmem:[%s208 + $0x14] sm:$0xf] %vm1798, %v1739
      %1805 = vst.msk [vmem:[%s208 + $0x18] sm:$0xf] %vm1798, %v1740
      %1806 = vst.msk [vmem:[%s208 + $0x1c] sm:$0xf] %vm1798, %v1741
      %1807 = vst.msk [vmem:[%s208 + $0x20] sm:$0xf] %vm1798, %v1742
      %1808 = vst.msk [vmem:[%s208 + $0x24] sm:$0xf] %vm1798, %v1743
      %1809 = vst.msk [vmem:[%s208 + $0x28] sm:$0xf] %vm1798, %v1744
      %1810 = vst.msk [vmem:[%s208 + $0x2c] sm:$0xf] %vm1798, %v1745
      %1811 = vst.msk [vmem:[%s208 + $0x30] sm:$0xf] %vm1798, %v1746
      %1812 = vst.msk [vmem:[%s208 + $0x34] sm:$0xf] %vm1798, %v1747
      %1813 = vst.msk [vmem:[%s208 + $0x38] sm:$0xf] %vm1798, %v1748
      %1814 = vst.msk [vmem:[%s208 + $0x3c] sm:$0xf] %vm1798, %v1749
      %1815 = vst.msk [vmem:[%s208 + $0x40] sm:$0xf] %vm1798, %v1750
      %1816 = vst.msk [vmem:[%s208 + $0x44] sm:$0xf] %vm1798, %v1751
      %1817 = vst.msk [vmem:[%s208 + $0x48] sm:$0xf] %vm1798, %v1752
      %1818 = vst.msk [vmem:[%s208 + $0x4c] sm:$0xf] %vm1798, %v1753
      %1819 = vst.msk [vmem:[%s208 + $0x50] sm:$0xf] %vm1798, %v1754
      %1820 = vst.msk [vmem:[%s208 + $0x54] sm:$0xf] %vm1798, %v1755
      %1821 = vst.msk [vmem:[%s208 + $0x58] sm:$0xf] %vm1798, %v1756
      %1822 = vst.msk [vmem:[%s208 + $0x5c] sm:$0xf] %vm1798, %v1757
      %1823 = vst.msk [vmem:[%s208 + $0x60] sm:$0xf] %vm1798, %v1758
      %1824 = vst.msk [vmem:[%s208 + $0x64] sm:$0xf] %vm1798, %v1759
      %1825 = vst.msk [vmem:[%s208 + $0x68] sm:$0xf] %vm1798, %v1760
      %1826 = vst.msk [vmem:[%s208 + $0x6c] sm:$0xf] %vm1798, %v1761
      %1827 = vst.msk [vmem:[%s208 + $0x70] sm:$0xf] %vm1798, %v1762
      %1828 = vst.msk [vmem:[%s208 + $0x74] sm:$0xf] %vm1798, %v1763
      %1829 = vst.msk [vmem:[%s208 + $0x78] sm:$0xf] %vm1798, %v1764
      %1830 = vst.msk [vmem:[%s208 + $0x7c] sm:$0xf] %vm1798, %v1765
      %v1831 = vsel %vm248, %v1544, 0.0
      %v1832 = vsel %vm248, %v1547, 0.0
      %v1833 = vadd.f32 %v1831, %v1832
      %v1834 = vsel %vm248, %v1552, 0.0
      %v1835 = vadd.f32 %v1833, %v1834
      %v1836 = vsel %vm248, %v1555, 0.0
      %v1837 = vadd.f32 %v1835, %v1836
      %v1838 = vsel %vm248, %v1560, 0.0
      %v1839 = vadd.f32 %v1837, %v1838
      %v1840 = vsel %vm248, %v1563, 0.0
      %v1841 = vadd.f32 %v1839, %v1840
      %v1842 = vsel %vm248, %v1568, 0.0
      %v1843 = vadd.f32 %v1841, %v1842
      %v1844 = vsel %vm248, %v1571, 0.0
      %v1845 = vadd.f32 %v1843, %v1844
      %v1846 = vsel %vm248, %v1576, 0.0
      %v1847 = vadd.f32 %v1845, %v1846
      %v1848 = vsel %vm248, %v1579, 0.0
      %v1849 = vadd.f32 %v1847, %v1848
      %v1850 = vsel %vm248, %v1584, 0.0
      %v1851 = vadd.f32 %v1849, %v1850
      %v1852 = vsel %vm248, %v1587, 0.0
      %v1853 = vadd.f32 %v1851, %v1852
      %v1854 = vsel %vm248, %v1592, 0.0
      %v1855 = vadd.f32 %v1853, %v1854
      %v1856 = vsel %vm248, %v1595, 0.0
      %v1857 = vadd.f32 %v1855, %v1856
      %v1858 = vsel %vm248, %v1600, 0.0
      %v1859 = vadd.f32 %v1857, %v1858
      %v1860 = vsel %vm248, %v1603, 0.0
      %v1861 = vadd.f32 %v1859, %v1860
      %v1862 = vsel %vm248, %v1608, 0.0
      %v1863 = vadd.f32 %v1861, %v1862
      %v1864 = vsel %vm248, %v1611, 0.0
      %v1865 = vadd.f32 %v1863, %v1864
      %v1866 = vsel %vm248, %v1616, 0.0
      %v1867 = vadd.f32 %v1865, %v1866
      %v1868 = vsel %vm248, %v1619, 0.0
      %v1869 = vadd.f32 %v1867, %v1868
      %v1870 = vsel %vm248, %v1624, 0.0
      %v1871 = vadd.f32 %v1869, %v1870
      %v1872 = vsel %vm248, %v1627, 0.0
      %v1873 = vadd.f32 %v1871, %v1872
      %v1874 = vsel %vm248, %v1632, 0.0
      %v1875 = vadd.f32 %v1873, %v1874
      %v1876 = vsel %vm248, %v1635, 0.0
      %v1877 = vadd.f32 %v1875, %v1876
      %v1878 = vsel %vm248, %v1640, 0.0
      %v1879 = vadd.f32 %v1877, %v1878
      %v1880 = vsel %vm248, %v1643, 0.0
      %v1881 = vadd.f32 %v1879, %v1880
      %v1882 = vsel %vm248, %v1648, 0.0
      %v1883 = vadd.f32 %v1881, %v1882
      %v1884 = vsel %vm248, %v1651, 0.0
      %v1885 = vadd.f32 %v1883, %v1884
      %v1886 = vsel %vm248, %v1656, 0.0
      %v1887 = vadd.f32 %v1885, %v1886
      %v1888 = vsel %vm248, %v1659, 0.0
      %v1889 = vadd.f32 %v1887, %v1888
      %v1890 = vsel %vm248, %v1664, 0.0
      %v1891 = vadd.f32 %v1889, %v1890
      %v1892 = vsel %vm248, %v1667, 0.0
      %v1893 = vadd.f32 %v1891, %v1892
      %v1894 = vrot.slane %v1893, 4
      %v1895 = vadd.f32 %v1893, %v1894
      %v1896 = vrot.slane %v1895, 2
      %v1897 = vadd.f32 %v1895, %v1896
      %v1898 = vrot.slane %v1897, 1
      %v1899 = vadd.f32 %v1897, %v1898
      %vm1900 = vcmask 24576
      %1901 = vst.msk [vmem:[%s211] sm:$0x1] %vm1900, %v1899
      %v1902 = vmul.f32 %v1544, %v1544
      %v1903 = vmul.f32 %v1547, %v1547
      %v1904 = vmul.f32 %v1552, %v1552
      %v1905 = vmul.f32 %v1555, %v1555
      %v1906 = vmul.f32 %v1560, %v1560
      %v1907 = vmul.f32 %v1563, %v1563
      %v1908 = vmul.f32 %v1568, %v1568
      %v1909 = vmul.f32 %v1571, %v1571
      %v1910 = vmul.f32 %v1576, %v1576
      %v1911 = vmul.f32 %v1579, %v1579
      %v1912 = vmul.f32 %v1584, %v1584
      %v1913 = vmul.f32 %v1587, %v1587
      %v1914 = vmul.f32 %v1592, %v1592
      %v1915 = vmul.f32 %v1595, %v1595
      %v1916 = vmul.f32 %v1600, %v1600
      %v1917 = vmul.f32 %v1603, %v1603
      %v1918 = vmul.f32 %v1608, %v1608
      %v1919 = vmul.f32 %v1611, %v1611
      %v1920 = vmul.f32 %v1616, %v1616
      %v1921 = vmul.f32 %v1619, %v1619
      %v1922 = vmul.f32 %v1624, %v1624
      %v1923 = vmul.f32 %v1627, %v1627
      %v1924 = vmul.f32 %v1632, %v1632
      %v1925 = vmul.f32 %v1635, %v1635
      %v1926 = vmul.f32 %v1640, %v1640
      %v1927 = vmul.f32 %v1643, %v1643
      %v1928 = vmul.f32 %v1648, %v1648
      %v1929 = vmul.f32 %v1651, %v1651
      %v1930 = vmul.f32 %v1656, %v1656
      %v1931 = vmul.f32 %v1659, %v1659
      %v1932 = vmul.f32 %v1664, %v1664
      %v1933 = vmul.f32 %v1667, %v1667
      %v1934 = vsel %vm248, %v1902, 0.0
      %v1935 = vsel %vm248, %v1903, 0.0
      %v1936 = vadd.f32 %v1934, %v1935
      %v1937 = vsel %vm248, %v1904, 0.0
      %v1938 = vadd.f32 %v1936, %v1937
      %v1939 = vsel %vm248, %v1905, 0.0
      %v1940 = vadd.f32 %v1938, %v1939
      %v1941 = vsel %vm248, %v1906, 0.0
      %v1942 = vadd.f32 %v1940, %v1941
      %v1943 = vsel %vm248, %v1907, 0.0
      %v1944 = vadd.f32 %v1942, %v1943
      %v1945 = vsel %vm248, %v1908, 0.0
      %v1946 = vadd.f32 %v1944, %v1945
      %v1947 = vsel %vm248, %v1909, 0.0
      %v1948 = vadd.f32 %v1946, %v1947
      %v1949 = vsel %vm248, %v1910, 0.0
      %v1950 = vadd.f32 %v1948, %v1949
      %v1951 = vsel %vm248, %v1911, 0.0
      %v1952 = vadd.f32 %v1950, %v1951
      %v1953 = vsel %vm248, %v1912, 0.0
      %v1954 = vadd.f32 %v1952, %v1953
      %v1955 = vsel %vm248, %v1913, 0.0
      %v1956 = vadd.f32 %v1954, %v1955
      %v1957 = vsel %vm248, %v1914, 0.0
      %v1958 = vadd.f32 %v1956, %v1957
      %v1959 = vsel %vm248, %v1915, 0.0
      %v1960 = vadd.f32 %v1958, %v1959
      %v1961 = vsel %vm248, %v1916, 0.0
      %v1962 = vadd.f32 %v1960, %v1961
      %v1963 = vsel %vm248, %v1917, 0.0
      %v1964 = vadd.f32 %v1962, %v1963
      %v1965 = vsel %vm248, %v1918, 0.0
      %v1966 = vadd.f32 %v1964, %v1965
      %v1967 = vsel %vm248, %v1919, 0.0
      %v1968 = vadd.f32 %v1966, %v1967
      %v1969 = vsel %vm248, %v1920, 0.0
      %v1970 = vadd.f32 %v1968, %v1969
      %v1971 = vsel %vm248, %v1921, 0.0
      %v1972 = vadd.f32 %v1970, %v1971
      %v1973 = vsel %vm248, %v1922, 0.0
      %v1974 = vadd.f32 %v1972, %v1973
      %v1975 = vsel %vm248, %v1923, 0.0
      %v1976 = vadd.f32 %v1974, %v1975
      %v1977 = vsel %vm248, %v1924, 0.0
      %v1978 = vadd.f32 %v1976, %v1977
      %v1979 = vsel %vm248, %v1925, 0.0
      %v1980 = vadd.f32 %v1978, %v1979
      %v1981 = vsel %vm248, %v1926, 0.0
      %v1982 = vadd.f32 %v1980, %v1981
      %v1983 = vsel %vm248, %v1927, 0.0
      %v1984 = vadd.f32 %v1982, %v1983
      %v1985 = vsel %vm248, %v1928, 0.0
      %v1986 = vadd.f32 %v1984, %v1985
      %v1987 = vsel %vm248, %v1929, 0.0
      %v1988 = vadd.f32 %v1986, %v1987
      %v1989 = vsel %vm248, %v1930, 0.0
      %v1990 = vadd.f32 %v1988, %v1989
      %v1991 = vsel %vm248, %v1931, 0.0
      %v1992 = vadd.f32 %v1990, %v1991
      %v1993 = vsel %vm248, %v1932, 0.0
      %v1994 = vadd.f32 %v1992, %v1993
      %v1995 = vsel %vm248, %v1933, 0.0
      %v1996 = vadd.f32 %v1994, %v1995
      %v1997 = vrot.slane %v1996, 4
      %v1998 = vadd.f32 %v1996, %v1997
      %v1999 = vrot.slane %v1998, 2
      %v2000 = vadd.f32 %v1998, %v1999
      %v2001 = vrot.slane %v2000, 1
      %v2002 = vadd.f32 %v2000, %v2001
      %2003 = vst.msk [vmem:[%s214] sm:$0x1] %vm1900, %v2002
      %p2004 = scmp.lt.s32.totalorder %s16, 1
      %s2005 = scalar_select %p2004, %s16, 1
      %s2006 = smul.addr %s2005, 32
      %s2007 = smul.addr %s2006, 4
      %s2008 = scalar_lea.vmem %s2, %s2007
      %p2009 = scmp.lt.s32.totalorder %s16, 1
      %s2010 = scalar_select %p2009, %s16, 1
      %s2011 = scalar_lea.vmem %s3, %s2010
      %p2012 = scmp.lt.s32.totalorder %s16, 1
      %s2013 = scalar_select %p2012, %s16, 1
      %s2014 = scalar_lea.vmem %s4, %s2013
      // Predicated region
      $region29: #{residual_block_forward.3} parent=27 // pred_check
        %p2015 = pneg %p81
      $region30: #{residual_block_forward.3} parent=27 // pred_check_branch
        %2017 = sbr.rel (%p2015) target = $region32
      $region31: #{residual_block_forward.3} parent=27 // pred_region
        _
      $region32: #{residual_block_forward.3} parent=27 // pred_fallthru
        _
      // Predicated region
      $region33: #{residual_block_forward.3} parent=27 // pred_check
        %p2018 = pneg %p107
      $region34: #{residual_block_forward.3} parent=27 // pred_check_branch
        %2020 = sbr.rel (%p2018) target = $region36
      $region35: #{residual_block_forward.3} parent=27 // pred_region
        _
      $region36: #{residual_block_forward.3} parent=27 // pred_fallthru
        _
      // Predicated region
      $region37: #{residual_block_forward.3} parent=27 // pred_check
        %p2021 = pneg %p133
      $region38: #{residual_block_forward.3} parent=27 // pred_check_branch
        %2023 = sbr.rel (%p2021) target = $region40
      $region39: #{residual_block_forward.3} parent=27 // pred_region
        _
      $region40: #{residual_block_forward.3} parent=27 // pred_fallthru
        _
    $region28: #{residual_block_forward.3} parent=5 // pred_fallthru
      _
    %p2024 = scmp.le.s32.totalorder 2, %s11
    // Predicated region
    $region41: #{residual_block_forward.3} parent=5 // pred_check
      %p2025 = pneg %p2024
    $region42: #{residual_block_forward.3} parent=5 // pred_check_branch
      %2027 = sbr.rel (%p2025) target = $region44
    $region43: #{residual_block_forward.3} parent=5 // pred_region
      %s2028 = ssub.s32 %s11, 2
      // Predicated region
      $region45: #{residual_block_forward.3} parent=43 // pred_check
        %p2029 = pneg %p87
      $region46: #{residual_block_forward.3} parent=43 // pred_check_branch
        %2031 = sbr.rel (%p2029) target = $region48
      $region47: #{residual_block_forward.3} parent=43 // pred_region
        %p2032 = scmp.lt.s32.totalorder %s17, 1
        %s2033 = scalar_select %p2032, %s17, 1
        %s2034 = smul.addr %s2033, 32
        %s2035 = smul.addr %s2034, 4
        %s2036 = scalar_lea.vmem %s2, %s2035
      $region48: #{residual_block_forward.3} parent=43 // pred_fallthru
        _
      // Predicated region
      $region49: #{residual_block_forward.3} parent=43 // pred_check
        %p2037 = pneg %p113
      $region50: #{residual_block_forward.3} parent=43 // pred_check_branch
        %2039 = sbr.rel (%p2037) target = $region52
      $region51: #{residual_block_forward.3} parent=43 // pred_region
        %p2040 = scmp.lt.s32.totalorder %s17, 1
        %s2041 = scalar_select %p2040, %s17, 1
        %s2042 = scalar_lea.vmem %s3, %s2041
      $region52: #{residual_block_forward.3} parent=43 // pred_fallthru
        _
      // Predicated region
      $region53: #{residual_block_forward.3} parent=43 // pred_check
        %p2043 = pneg %p139
      $region54: #{residual_block_forward.3} parent=43 // pred_check_branch
        %2045 = sbr.rel (%p2043) target = $region56
      $region55: #{residual_block_forward.3} parent=43 // pred_region
        %p2046 = scmp.lt.s32.totalorder %s17, 1
        %s2047 = scalar_select %p2046, %s17, 1
        %s2048 = scalar_lea.vmem %s4, %s2047
      $region56: #{residual_block_forward.3} parent=43 // pred_fallthru
        _
    $region44: #{residual_block_forward.3} parent=5 // pred_fallthru
      _
  $region6: #{residual_block_forward.3} parent=0 // loop_footer
    %s15 = sadd.s32 1, %s11
  $region7: #{residual_block_forward.3} parent=0 // loop_footer_branch
    %10 = sbr.rel target = $region3
  $region8: #{residual_block_forward.3} parent=0 // loop_exit
    _

// kernel: residual_block_forward.4
$region0: #{residual_block_forward.4}
  #allocation0 [shape = 'u32[]', space=smem, size = 0x4, offset = 0x4, fixed_abs, tag = 'smem constant byte address 0x4 - core index']
  #allocation1 [shape = 'u32[144,128]{1,0:T(1,128)}', space=vmem, size = 0x12000, scoped, tag = 'internal scratch']
  #allocation2 [shape = 'f32[18,32,4]{2,1,0:T(8,128)}', space=vmem, size = 0x48000, scoped, tag = 'scratch operand']
  #allocation3 [shape = 'bf16[16,16,36]{2,1,0:T(16,128)(2,1)}', space=vmem, size = 0x10000, scoped, tag = 'scratch operand']
  %s0 = inlined_call_operand.vmem [shape: bf16[2,16,16,4], index: 0, kind: input, shape index: {}]
  %s1 = inlined_call_operand.vmem [shape: f32[1,4], index: 1, kind: input, shape index: {}]
  %s2 = inlined_call_operand.vmem [shape: f32[1,4], index: 2, kind: input, shape index: {}]
  %s3 = inlined_call_operand.vmem [shape: bf16[36,4], index: 3, kind: input, shape index: {}]
  %s4 = inlined_call_operand.vmem [shape: bf16[2,16,16,4], index: 4, kind: output, shape index: {0}]
  %s5 = inlined_call_operand.vmem [shape: f32[2,1,4], index: 5, kind: output, shape index: {1}]
  %s6 = inlined_call_operand.vmem [shape: f32[2,1,4], index: 6, kind: output, shape index: {2}]
  %7 = xla_tuple %s4, %s5, %s6
  %s8 = sld [smem:[#allocation0]]
  $region65: #{residual_block_forward.4} parent=0
    _
  %s10 = ssub.s32 1, %s8
  %s11 = scalar_select 0, %s10, %s8
  loop: start=0, step=1, limit=4
  $region2: #{residual_block_forward.4} parent=0 // loop_pre_header
    _
  $region3: #{residual_block_forward.4} parent=0 // loop_header
    %s13 = sphi 0, %s17
    %p14 = scmp.ge.s32.totalorder %s13, 4
    %s23 = sphi 0, %s25
    %s26 = sphi 0, %s23
    %s27 = sphi 0, %s26
    %s43 = sphi 0, %s27
    %s47 = sphi 0, %s47
    %s49 = sphi 0, %s47
    %s50 = sphi 0, %s49
    %s64 = sphi 0, %s50
    %s68 = sphi 0, %s68
    %s70 = sphi 0, %s68
    %s71 = sphi 0, %s70
    %s85 = sphi 0, %s71
    %s89 = sphi 0, %s89
    %s91 = sphi 0, %s89
    %s92 = sphi 0, %s91
    %s106 = sphi 0, %s92
    %s112 = sphi 0, %s114
    %s115 = sphi 0, %s112
    %s116 = sphi 0, %s115
    %s132 = sphi 0, %s116
    %s138 = sphi 0, %s140
    %s141 = sphi 0, %s138
    %s142 = sphi 0, %s141
    %s158 = sphi 0, %s142
    %s164 = sphi 0, %s166
    %s167 = sphi 0, %s164
    %s168 = sphi 0, %s167
    %s184 = sphi 0, %s168
  $region4: #{residual_block_forward.4} parent=0 // loop_header_branch
    %16 = sbr.rel (%p14) target = $region8
  $region5: #{residual_block_forward.4} parent=0 // loop_body
    %s18 = ssub.s32 %s13, 1
    %s19 = ssub.s32 %s13, 2
    %s20 = sadd.s32 %s13, 1
    %s21 = ssub.s32 %s13, %s20
    %p22 = scmp.eq.s32.totalorder %s21, 0
    %s24 = sadd.s32 %s23, 1
    %s25 = scalar_select %p22, %s23, %s24
    %p28 = pneg %p22
    %p29 = scmp.eq.s32.totalorder %s13, 1
    %p30 = por %p28, %p29
    %p31 = scmp.ne.s32.totalorder %s23, %s26
    %p32 = scmp.eq.s32.totalorder %s13, 0
    %p33 = por %p31, %p32
    %p34 = scmp.ne.s32.totalorder %s23, %s26
    %p35 = scmp.eq.s32.totalorder %s18, 1
    %p36 = por %p34, %p35
    %p37 = scmp.ne.s32.totalorder %s26, %s27
    %p38 = scmp.eq.s32.totalorder %s18, 0
    %p39 = por %p37, %p38
    %p40 = scmp.ne.s32.totalorder %s26, %s27
    %p41 = scmp.eq.s32.totalorder %s19, 1
    %p42 = por %p40, %p41
    %p44 = scmp.ne.s32.totalorder %s27, %s43
    %p45 = scmp.eq.s32.totalorder %s19, 0
    %p46 = por %p44, %p45
    %s48 = sadd.s32 %s47, 1
    %p51 = scmp.eq.s32.totalorder %s13, 1
    %p52 = scmp.ne.s32.totalorder %s47, %s49
    %p53 = scmp.eq.s32.totalorder %s13, 0
    %p54 = por %p52, %p53
    %p55 = scmp.ne.s32.totalorder %s47, %s49
    %p56 = scmp.eq.s32.totalorder %s18, 1
    %p57 = por %p55, %p56
    %p58 = scmp.ne.s32.totalorder %s49, %s50
    %p59 = scmp.eq.s32.totalorder %s18, 0
    %p60 = por %p58, %p59
    %p61 = scmp.ne.s32.totalorder %s49, %s50
    %p62 = scmp.eq.s32.totalorder %s19, 1
    %p63 = por %p61, %p62
    %p65 = scmp.ne.s32.totalorder %s50, %s64
    %p66 = scmp.eq.s32.totalorder %s19, 0
    %p67 = por %p65, %p66
    %s69 = sadd.s32 %s68, 1
    %p72 = scmp.eq.s32.totalorder %s13, 1
    %p73 = scmp.ne.s32.totalorder %s68, %s70
    %p74 = scmp.eq.s32.totalorder %s13, 0
    %p75 = por %p73, %p74
    %p76 = scmp.ne.s32.totalorder %s68, %s70
    %p77 = scmp.eq.s32.totalorder %s18, 1
    %p78 = por %p76, %p77
    %p79 = scmp.ne.s32.totalorder %s70, %s71
    %p80 = scmp.eq.s32.totalorder %s18, 0
    %p81 = por %p79, %p80
    %p82 = scmp.ne.s32.totalorder %s70, %s71
    %p83 = scmp.eq.s32.totalorder %s19, 1
    %p84 = por %p82, %p83
    %p86 = scmp.ne.s32.totalorder %s71, %s85
    %p87 = scmp.eq.s32.totalorder %s19, 0
    %p88 = por %p86, %p87
    %s90 = sadd.s32 %s89, 1
    %p93 = scmp.eq.s32.totalorder %s13, 1
    %p94 = scmp.ne.s32.totalorder %s89, %s91
    %p95 = scmp.eq.s32.totalorder %s13, 0
    %p96 = por %p94, %p95
    %p97 = scmp.ne.s32.totalorder %s89, %s91
    %p98 = scmp.eq.s32.totalorder %s18, 1
    %p99 = por %p97, %p98
    %p100 = scmp.ne.s32.totalorder %s91, %s92
    %p101 = scmp.eq.s32.totalorder %s18, 0
    %p102 = por %p100, %p101
    %p103 = scmp.ne.s32.totalorder %s91, %s92
    %p104 = scmp.eq.s32.totalorder %s19, 1
    %p105 = por %p103, %p104
    %p107 = scmp.ne.s32.totalorder %s92, %s106
    %p108 = scmp.eq.s32.totalorder %s19, 0
    %p109 = por %p107, %p108
    %s110 = ssub.s32 %s13, %s20
    %p111 = scmp.eq.s32.totalorder %s110, 0
    %s113 = sadd.s32 %s112, 1
    %s114 = scalar_select %p111, %s112, %s113
    %p117 = pneg %p111
    %p118 = scmp.eq.s32.totalorder %s13, 1
    %p119 = por %p117, %p118
    %p120 = scmp.ne.s32.totalorder %s112, %s115
    %p121 = scmp.eq.s32.totalorder %s13, 0
    %p122 = por %p120, %p121
    %p123 = scmp.ne.s32.totalorder %s112, %s115
    %p124 = scmp.eq.s32.totalorder %s18, 1
    %p125 = por %p123, %p124
    %p126 = scmp.ne.s32.totalorder %s115, %s116
    %p127 = scmp.eq.s32.totalorder %s18, 0
    %p128 = por %p126, %p127
    %p129 = scmp.ne.s32.totalorder %s115, %s116
    %p130 = scmp.eq.s32.totalorder %s19, 1
    %p131 = por %p129, %p130
    %p133 = scmp.ne.s32.totalorder %s116, %s132
    %p134 = scmp.eq.s32.totalorder %s19, 0
    %p135 = por %p133, %p134
    %s136 = ssub.s32 %s13, %s20
    %p137 = scmp.eq.s32.totalorder %s136, 0
    %s139 = sadd.s32 %s138, 1
    %s140 = scalar_select %p137, %s138, %s139
    %p143 = pneg %p137
    %p144 = scmp.eq.s32.totalorder %s13, 1
    %p145 = por %p143, %p144
    %p146 = scmp.ne.s32.totalorder %s138, %s141
    %p147 = scmp.eq.s32.totalorder %s13, 0
    %p148 = por %p146, %p147
    %p149 = scmp.ne.s32.totalorder %s138, %s141
    %p150 = scmp.eq.s32.totalorder %s18, 1
    %p151 = por %p149, %p150
    %p152 = scmp.ne.s32.totalorder %s141, %s142
    %p153 = scmp.eq.s32.totalorder %s18, 0
    %p154 = por %p152, %p153
    %p155 = scmp.ne.s32.totalorder %s141, %s142
    %p156 = scmp.eq.s32.totalorder %s19, 1
    %p157 = por %p155, %p156
    %p159 = scmp.ne.s32.totalorder %s142, %s158
    %p160 = scmp.eq.s32.totalorder %s19, 0
    %p161 = por %p159, %p160
    %s162 = ssub.s32 %s13, %s20
    %p163 = scmp.eq.s32.totalorder %s162, 0
    %s165 = sadd.s32 %s164, 1
    %s166 = scalar_select %p163, %s164, %s165
    %p169 = pneg %p163
    %p170 = scmp.eq.s32.totalorder %s13, 1
    %p171 = por %p169, %p170
    %p172 = scmp.ne.s32.totalorder %s164, %s167
    %p173 = scmp.eq.s32.totalorder %s13, 0
    %p174 = por %p172, %p173
    %p175 = scmp.ne.s32.totalorder %s164, %s167
    %p176 = scmp.eq.s32.totalorder %s18, 1
    %p177 = por %p175, %p176
    %p178 = scmp.ne.s32.totalorder %s167, %s168
    %p179 = scmp.eq.s32.totalorder %s18, 0
    %p180 = por %p178, %p179
    %p181 = scmp.ne.s32.totalorder %s167, %s168
    %p182 = scmp.eq.s32.totalorder %s19, 1
    %p183 = por %p181, %p182
    %p185 = scmp.ne.s32.totalorder %s168, %s184
    %p186 = scmp.eq.s32.totalorder %s19, 0
    %p187 = por %p185, %p186
    %p188 = scmp.le.s32.totalorder 1, %s13
    %p189 = scmp.lt.s32.totalorder %s13, 3
    %p190 = pnand %p188, %p189
    %p191 = pneg %p190
    // Predicated region
    $region9: #{residual_block_forward.4} parent=5 // pred_check
      _
    $region10: #{residual_block_forward.4} parent=5 // pred_check_branch
      %193 = sbr.rel (%p190) target = $region12
    $region11: #{residual_block_forward.4} parent=5 // pred_region
      %s194 = ssub.s32 %s13, 1
      // Predicated region
      $region13: #{residual_block_forward.4} parent=11 // pred_check
        %p195 = pneg %p60
      $region14: #{residual_block_forward.4} parent=11 // pred_check_branch
        %197 = sbr.rel (%p195) target = $region16
      $region15: #{residual_block_forward.4} parent=11 // pred_region
        _
      $region16: #{residual_block_forward.4} parent=11 // pred_fallthru
        _
      // Predicated region
      $region17: #{residual_block_forward.4} parent=11 // pred_check
        %p198 = pneg %p81
      $region18: #{residual_block_forward.4} parent=11 // pred_check_branch
        %200 = sbr.rel (%p198) target = $region20
      $region19: #{residual_block_forward.4} parent=11 // pred_region
        _
      $region20: #{residual_block_forward.4} parent=11 // pred_fallthru
        _
      // Predicated region
      $region21: #{residual_block_forward.4} parent=11 // pred_check
        %p201 = pneg %p102
      $region22: #{residual_block_forward.4} parent=11 // pred_check_branch
        %203 = sbr.rel (%p201) target = $region24
      $region23: #{residual_block_forward.4} parent=11 // pred_region
        _
      $region24: #{residual_block_forward.4} parent=11 // pred_fallthru
        _
    $region12: #{residual_block_forward.4} parent=5 // pred_fallthru
      _
    %p204 = scmp.lt.s32.totalorder %s13, 2
    // Predicated region
    $region25: #{residual_block_forward.4} parent=5 // pred_check
      %p205 = pneg %p204
    $region26: #{residual_block_forward.4} parent=5 // pred_check_branch
      %207 = sbr.rel (%p205) target = $region28
    $region27: #{residual_block_forward.4} parent=5 // pred_region
      // Predicated region
      $region29: #{residual_block_forward.4} parent=27 // pred_check
        %p208 = pneg %p33
      $region30: #{residual_block_forward.4} parent=27 // pred_check_branch
        %210 = sbr.rel (%p208) target = $region32
      $region31: #{residual_block_forward.4} parent=27 // pred_region
        %p211 = scmp.lt.s32.totalorder %s13, 1
        %s212 = scalar_select %p211, %s13, 1
        %s213 = smul.addr %s212, 32
        %s214 = smul.addr %s213, 4
        %s215 = scalar_lea.vmem %s0, %s214
      $region32: #{residual_block_forward.4} parent=27 // pred_fallthru
        _
    $region28: #{residual_block_forward.4} parent=5 // pred_fallthru
      _
    %p216 = scmp.le.s32.totalorder 1, %s13
    %p217 = scmp.lt.s32.totalorder %s13, 3
    %p218 = pnand %p216, %p217
    %p219 = pneg %p218
    // Predicated region
    $region33: #{residual_block_forward.4} parent=5 // pred_check
      _
    $region34: #{residual_block_forward.4} parent=5 // pred_check_branch
      %221 = sbr.rel (%p218) target = $region36
    $region35: #{residual_block_forward.4} parent=5 // pred_region
      %s222 = ssub.s32 %s13, 1
      %p223 = scmp.lt.s32.totalorder %s18, 1
      %s224 = scalar_select %p223, %s18, 1
      %s225 = smul.addr %s224, 32
      %s226 = smul.addr %s225, 4
      %s227 = scalar_lea.vmem %s0, %s226
      %p228 = pneg %p39
      %p229 = pneg %p36
      %p230 = pneg %p60
      %p231 = pneg %p57
      %p232 = pneg %p81
      %p233 = pneg %p78
      %p234 = pneg %p102
      %p235 = pneg %p99
      %p236 = pneg %p128
      %p237 = pneg %p125
      %p238 = scmp.lt.s32.totalorder %s18, 1
      %s239 = scalar_select %p238, %s18, 1
      %s240 = smul.addr %s239, 32
      %s241 = smul.addr %s240, 4
      %s242 = scalar_lea.vmem %s4, %s241
      %p243 = pneg %p154
      %p244 = pneg %p151
      %p245 = scmp.lt.s32.totalorder %s18, 1
      %s246 = scalar_select %p245, %s18, 1
      %s247 = scalar_lea.vmem %s5, %s246
      %p248 = pneg %p180
      %p249 = pneg %p177
      %p250 = scmp.lt.s32.totalorder %s18, 1
      %s251 = scalar_select %p250, %s18, 1
      %s252 = scalar_lea.vmem %s6, %s251
      %p253 = scmp.lt.s32.totalorder %s18, 1
      %s254 = scalar_select %p253, %s18, 1
      %s255 = smul.addr %s254, 32
      %s256 = smul.addr %s255, 4
      %s257 = scalar_lea.vmem %s0, %s256
      %p258 = scmp.lt.s32.totalorder %s18, 1
      %s259 = scalar_select %p258, %s18, 1
      %s260 = smul.addr %s259, 32
      %s261 = smul.addr %s260, 4
      %s262 = scalar_lea.vmem %s4, %s261
      %p263 = scmp.lt.s32.totalorder %s18, 1
      %s264 = scalar_select %p263, %s18, 1
      %s265 = scalar_lea.vmem %s5, %s264
      %p266 = scmp.lt.s32.totalorder %s18, 1
      %s267 = scalar_select %p266, %s18, 1
      %s268 = scalar_lea.vmem %s6, %s267
      %v270 = vld [vmem:[%s257] sm:$0xf]
      %v271 = vld [vmem:[%s257 + $0x4] sm:$0xf]
      %v272 = vld [vmem:[%s257 + $0x8] sm:$0xf]
      %v273 = vld [vmem:[%s257 + $0xc] sm:$0xf]
      %v274 = vld [vmem:[%s257 + $0x10] sm:$0xf]
      %v275 = vld [vmem:[%s257 + $0x14] sm:$0xf]
      %v276 = vld [vmem:[%s257 + $0x18] sm:$0xf]
      %v277 = vld [vmem:[%s257 + $0x1c] sm:$0xf]
      %v278 = vld [vmem:[%s257 + $0x20] sm:$0xf]
      %v279 = vld [vmem:[%s257 + $0x24] sm:$0xf]
      %v280 = vld [vmem:[%s257 + $0x28] sm:$0xf]
      %v281 = vld [vmem:[%s257 + $0x2c] sm:$0xf]
      %v282 = vld [vmem:[%s257 + $0x30] sm:$0xf]
      %v283 = vld [vmem:[%s257 + $0x34] sm:$0xf]
      %v284 = vld [vmem:[%s257 + $0x38] sm:$0xf]
      %v285 = vld [vmem:[%s257 + $0x3c] sm:$0xf]
      %v286 = vld [vmem:[%s257 + $0x40] sm:$0xf]
      %v287 = vld [vmem:[%s257 + $0x44] sm:$0xf]
      %v288 = vld [vmem:[%s257 + $0x48] sm:$0xf]
      %v289 = vld [vmem:[%s257 + $0x4c] sm:$0xf]
      %v290 = vld [vmem:[%s257 + $0x50] sm:$0xf]
      %v291 = vld [vmem:[%s257 + $0x54] sm:$0xf]
      %v292 = vld [vmem:[%s257 + $0x58] sm:$0xf]
      %v293 = vld [vmem:[%s257 + $0x5c] sm:$0xf]
      %v294 = vld [vmem:[%s257 + $0x60] sm:$0xf]
      %v295 = vld [vmem:[%s257 + $0x64] sm:$0xf]
      %v296 = vld [vmem:[%s257 + $0x68] sm:$0xf]
      %v297 = vld [vmem:[%s257 + $0x6c] sm:$0xf]
      %v298 = vld [vmem:[%s257 + $0x70] sm:$0xf]
      %v299 = vld [vmem:[%s257 + $0x74] sm:$0xf]
      %v300 = vld [vmem:[%s257 + $0x78] sm:$0xf]
      %v301 = vld [vmem:[%s257 + $0x7c] sm:$0xf]
      %v302 = vunpack.c.l.bf16 %v270
      %v303 = vunpack.c.l.bf16 %v271
      %v304 = vunpack.c.l.bf16 %v272
      %v305 = vunpack.c.l.bf16 %v273
      %v306 = vunpack.c.l.bf16 %v274
      %v307 = vunpack.c.l.bf16 %v275
      %v308 = vunpack.c.l.bf16 %v276
      %v309 = vunpack.c.l.bf16 %v277
      %v310 = vunpack.c.l.bf16 %v278
      %v311 = vunpack.c.l.bf16 %v279
      %v312 = vunpack.c.l.bf16 %v280
      %v313 = vunpack.c.l.bf16 %v281
      %v314 = vunpack.c.l.bf16 %v282
      %v315 = vunpack.c.l.bf16 %v283
      %v316 = vunpack.c.l.bf16 %v284
      %v317 = vunpack.c.l.bf16 %v285
      %v318 = vunpack.c.l.bf16 %v286
      %v319 = vunpack.c.l.bf16 %v287
      %v320 = vunpack.c.l.bf16 %v288
      %v321 = vunpack.c.l.bf16 %v289
      %v322 = vunpack.c.l.bf16 %v290
      %v323 = vunpack.c.l.bf16 %v291
      %v324 = vunpack.c.l.bf16 %v292
      %v325 = vunpack.c.l.bf16 %v293
      %v326 = vunpack.c.l.bf16 %v294
      %v327 = vunpack.c.l.bf16 %v295
      %v328 = vunpack.c.l.bf16 %v296
      %v329 = vunpack.c.l.bf16 %v297
      %v330 = vunpack.c.l.bf16 %v298
      %v331 = vunpack.c.l.bf16 %v299
      %v332 = vunpack.c.l.bf16 %v300
      %v333 = vunpack.c.l.bf16 %v301
      %v334 = vld [vmem:[%s1] sm:$0x1]
      %v336 = vlaneseq
      %v337 = vshrl.u32 %v336, 7
      %v338 = vsub.s32 0, %v337
      %v339 = vrot.slane %v334, %v338
      %v341 = vmul.f32 %v302, %v339
      %v342 = vmul.f32 %v303, %v339
      %v343 = vmul.f32 %v304, %v339
      %v344 = vmul.f32 %v305, %v339
      %v345 = vmul.f32 %v306, %v339
      %v346 = vmul.f32 %v307, %v339
      %v347 = vmul.f32 %v308, %v339
      %v348 = vmul.f32 %v309, %v339
      %v349 = vmul.f32 %v310, %v339
      %v350 = vmul.f32 %v311, %v339
      %v351 = vmul.f32 %v312, %v339
      %v352 = vmul.f32 %v313, %v339
      %v353 = vmul.f32 %v314, %v339
      %v354 = vmul.f32 %v315, %v339
      %v355 = vmul.f32 %v316, %v339
      %v356 = vmul.f32 %v317, %v339
      %v357 = vmul.f32 %v318, %v339
      %v358 = vmul.f32 %v319, %v339
      %v359 = vmul.f32 %v320, %v339
      %v360 = vmul.f32 %v321, %v339
      %v361 = vmul.f32 %v322, %v339
      %v362 = vmul.f32 %v323, %v339
      %v363 = vmul.f32 %v324, %v339
      %v364 = vmul.f32 %v325, %v339
      %v365 = vmul.f32 %v326, %v339
      %v366 = vmul.f32 %v327, %v339
      %v367 = vmul.f32 %v328, %v339
      %v368 = vmul.f32 %v329, %v339
      %v369 = vmul.f32 %v330, %v339
      %v370 = vmul.f32 %v331, %v339
      %v371 = vmul.f32 %v332, %v339
      %v372 = vmul.f32 %v333, %v339
      %v373 = vld [vmem:[%s2] sm:$0x1]
      %v375 = vlaneseq
      %v376 = vshrl.u32 %v375, 7
      %v377 = vsub.s32 0, %v376
      %v378 = vrot.slane %v373, %v377
      %v380 = vadd.f32 %v341, %v378
      %v381 = vadd.f32 %v342, %v378
      %v382 = vadd.f32 %v343, %v378
      %v383 = vadd.f32 %v344, %v378
      %v384 = vadd.f32 %v345, %v378
      %v385 = vadd.f32 %v346, %v378
      %v386 = vadd.f32 %v347, %v378
      %v387 = vadd.f32 %v348, %v378
      %v388 = vadd.f32 %v349, %v378
      %v389 = vadd.f32 %v350, %v378
      %v390 = vadd.f32 %v351, %v378
      %v391 = vadd.f32 %v352, %v378
      %v392 = vadd.f32 %v353, %v378
      %v393 = vadd.f32 %v354, %v378
      %v394 = vadd.f32 %v355, %v378
      %v395 = vadd.f32 %v356, %v378
      %v396 = vadd.f32 %v357, %v378
      %v397 = vadd.f32 %v358, %v378
      %v398 = vadd.f32 %v359, %v378
      %v399 = vadd.f32 %v360, %v378
      %v400 = vadd.f32 %v361, %v378
      %v401 = vadd.f32 %v362, %v378
      %v402 = vadd.f32 %v363, %v378
      %v403 = vadd.f32 %v364, %v378
      %v404 = vadd.f32 %v365, %v378
      %v405 = vadd.f32 %v366, %v378
      %v406 = vadd.f32 %v367, %v378
      %v407 = vadd.f32 %v368, %v378
      %v408 = vadd.f32 %v369, %v378
      %v409 = vadd.f32 %v370, %v378
      %v410 = vadd.f32 %v371, %v378
      %v411 = vadd.f32 %v372, %v378
      %v412 = vmax.f32 %v380, 0.0
      %v413 = vmax.f32 %v381, 0.0
      %v414 = vmax.f32 %v382, 0.0
      %v415 = vmax.f32 %v383, 0.0
      %v416 = vmax.f32 %v384, 0.0
      %v417 = vmax.f32 %v385, 0.0
      %v418 = vmax.f32 %v386, 0.0
      %v419 = vmax.f32 %v387, 0.0
      %v420 = vmax.f32 %v388, 0.0
      %v421 = vmax.f32 %v389, 0.0
      %v422 = vmax.f32 %v390, 0.0
      %v423 = vmax.f32 %v391, 0.0
      %v424 = vmax.f32 %v392, 0.0
      %v425 = vmax.f32 %v393, 0.0
      %v426 = vmax.f32 %v394, 0.0
      %v427 = vmax.f32 %v395, 0.0
      %v428 = vmax.f32 %v396, 0.0
      %v429 = vmax.f32 %v397, 0.0
      %v430 = vmax.f32 %v398, 0.0
      %v431 = vmax.f32 %v399, 0.0
      %v432 = vmax.f32 %v400, 0.0
      %v433 = vmax.f32 %v401, 0.0
      %v434 = vmax.f32 %v402, 0.0
      %v435 = vmax.f32 %v403, 0.0
      %v436 = vmax.f32 %v404, 0.0
      %v437 = vmax.f32 %v405, 0.0
      %v438 = vmax.f32 %v406, 0.0
      %v439 = vmax.f32 %v407, 0.0
      %v440 = vmax.f32 %v408, 0.0
      %v441 = vmax.f32 %v409, 0.0
      %v442 = vmax.f32 %v410, 0.0
      %v443 = vmax.f32 %v411, 0.0
      %vm444 = vcmask 31744
      %445 = vst.msk [vmem:[#allocation2] sm:$0xff] %vm444, 0.0
      %446 = vst.msk [vmem:[#allocation2 + $0x8] sm:$0xff] %vm444, 0.0
      %447 = vst.msk [vmem:[#allocation2 + $0x10] sm:$0xff] %vm444, 0.0
      %448 = vst.msk [vmem:[#allocation2 + $0x18] sm:$0xff] %vm444, 0.0
      %s449 = scalar_lea.vmem [#allocation2], 544
      %450 = vst.msk [vmem:[%s449] sm:$0xff] %vm444, 0.0
      %451 = vst.msk [vmem:[%s449 + $0x8] sm:$0xff] %vm444, 0.0
      %452 = vst.msk [vmem:[%s449 + $0x10] sm:$0xff] %vm444, 0.0
      %453 = vst.msk [vmem:[%s449 + $0x18] sm:$0xff] %vm444, 0.0
      %s454 = scalar_lea.vmem [#allocation2], 32
      %455 = vst.msk [vmem:[%s454] sm:$0xff] %vm444, 0.0
      %456 = vst.msk [vmem:[%s454 + $0x20] sm:$0xff] %vm444, 0.0
      %457 = vst.msk [vmem:[%s454 + $0x40] sm:$0xff] %vm444, 0.0
      %458 = vst.msk [vmem:[%s454 + $0x60] sm:$0xff] %vm444, 0.0
      %459 = vst.msk [vmem:[%s454 + $0x80] sm:$0xff] %vm444, 0.0
      %460 = vst.msk [vmem:[%s454 + $0xa0] sm:$0xff] %vm444, 0.0
      %461 = vst.msk [vmem:[%s454 + $0xc0] sm:$0xff] %vm444, 0.0
      %462 = vst.msk [vmem:[%s454 + $0xe0] sm:$0xff] %vm444, 0.0
      %463 = vst.msk [vmem:[%s454 + $0x100] sm:$0xff] %vm444, 0.0
      %464 = vst.msk [vmem:[%s454 + $0x120] sm:$0xff] %vm444, 0.0
      %465 = vst.msk [vmem:[%s454 + $0x140] sm:$0xff] %vm444, 0.0
      %466 = vst.msk [vmem:[%s454 + $0x160] sm:$0xff] %vm444, 0.0
      %467 = vst.msk [vmem:[%s454 + $0x180] sm:$0xff] %vm444, 0.0
      %468 = vst.msk [vmem:[%s454 + $0x1a0] sm:$0xff] %vm444, 0.0
      %469 = vst.msk [vmem:[%s454 + $0x1c0] sm:$0xff] %vm444, 0.0
      %470 = vst.msk [vmem:[%s454 + $0x1e0] sm:$0xff] %vm444, 0.0
      %471 = vst.msk [vmem:[%s454 + $0x18] sm:$0xff] %vm444, 0.0
      %472 = vst.msk [vmem:[%s454 + $0x38] sm:$0xff] %vm444, 0.0
      %473 = vst.msk [vmem:[%s454 + $0x58] sm:$0xff] %vm444, 0.0
      %474 = vst.msk [vmem:[%s454 + $0x78] sm:$0xff] %vm444, 0.0
      %475 = vst.msk [vmem:[%s454 + $0x98] sm:$0xff] %vm444, 0.0
      %476 = vst.msk [vmem:[%s454 + $0xb8] sm:$0xff] %vm444, 0.0
      %477 = vst.msk [vmem:[%s454 + $0xd8] sm:$0xff] %vm444, 0.0
      %478 = vst.msk [vmem:[%s454 + $0xf8] sm:$0xff] %vm444, 0.0
      %479 = vst.msk [vmem:[%s454 + $0x118] sm:$0xff] %vm444, 0.0
      %480 = vst.msk [vmem:[%s454 + $0x138] sm:$0xff] %vm444, 0.0
      %481 = vst.msk [vmem:[%s454 + $0x158] sm:$0xff] %vm444, 0.0
      %482 = vst.msk [vmem:[%s454 + $0x178] sm:$0xff] %vm444, 0.0
      %483 = vst.msk [vmem:[%s454 + $0x198] sm:$0xff] %vm444, 0.0
      %484 = vst.msk [vmem:[%s454 + $0x1b8] sm:$0xff] %vm444, 0.0
      %485 = vst.msk [vmem:[%s454 + $0x1d8] sm:$0xff] %vm444, 0.0
      %486 = vst.msk [vmem:[%s454 + $0x1f8] sm:$0xff] %vm444, 0.0
      %487 = vst.msk [vmem:[%s454 + $0x8] sm:$0xff] %vm444, %v412
      %488 = vst.msk [vmem:[%s454 + $0x10] sm:$0xff] %vm444, %v413
      %489 = vst.msk [vmem:[%s454 + $0x28] sm:$0xff] %vm444, %v414
      %490 = vst.msk [vmem:[%s454 + $0x30] sm:$0xff] %vm444, %v415
      %491 = vst.msk [vmem:[%s454 + $0x48] sm:$0xff] %vm444, %v416
      %492 = vst.msk [vmem:[%s454 + $0x50] sm:$0xff] %vm444, %v417
      %493 = vst.msk [vmem:[%s454 + $0x68] sm:$0xff] %vm444, %v418
      %494 = vst.msk [vmem:[%s454 + $0x70] sm:$0xff] %vm444, %v419
      %495 = vst.msk [vmem:[%s454 + $0x88] sm:$0xff] %vm444, %v420
      %496 = vst.msk [vmem:[%s454 + $0x90] sm:$0xff] %vm444, %v421
      %497 = vst.msk [vmem:[%s454 + $0xa8] sm:$0xff] %vm444, %v422
      %498 = vst.msk [vmem:[%s454 + $0xb0] sm:$0xff] %vm444, %v423
      %499 = vst.msk [vmem:[%s454 + $0xc8] sm:$0xff] %vm444, %v424
      %500 = vst.msk [vmem:[%s454 + $0xd0] sm:$0xff] %vm444, %v425
      %501 = vst.msk [vmem:[%s454 + $0xe8] sm:$0xff] %vm444, %v426
      %502 = vst.msk [vmem:[%s454 + $0xf0] sm:$0xff] %vm444, %v427
      %503 = vst.msk [vmem:[%s454 + $0x108] sm:$0xff] %vm444, %v428
      %504 = vst.msk [vmem:[%s454 + $0x110] sm:$0xff] %vm444, %v429
      %505 = vst.msk [vmem:[%s454 + $0x128] sm:$0xff] %vm444, %v430
      %506 = vst.msk [vmem:[%s454 + $0x130] sm:$0xff] %vm444, %v431
      %507 = vst.msk [vmem:[%s454 + $0x148] sm:$0xff] %vm444, %v432
      %508 = vst.msk [vmem:[%s454 + $0x150] sm:$0xff] %vm444, %v433
      %509 = vst.msk [vmem:[%s454 + $0x168] sm:$0xff] %vm444, %v434
      %510 = vst.msk [vmem:[%s454 + $0x170] sm:$0xff] %vm444, %v435
      %511 = vst.msk [vmem:[%s454 + $0x188] sm:$0xff] %vm444, %v436
      %512 = vst.msk [vmem:[%s454 + $0x190] sm:$0xff] %vm444, %v437
      %513 = vst.msk [vmem:[%s454 + $0x1a8] sm:$0xff] %vm444, %v438
      %514 = vst.msk [vmem:[%s454 + $0x1b0] sm:$0xff] %vm444, %v439
      %515 = vst.msk [vmem:[%s454 + $0x1c8] sm:$0xff] %vm444, %v440
      %516 = vst.msk [vmem:[%s454 + $0x1d0] sm:$0xff] %vm444, %v441
      %517 = vst.msk [vmem:[%s454 + $0x1e8] sm:$0xff] %vm444, %v442
      %518 = vst.msk [vmem:[%s454 + $0x1f0] sm:$0xff] %vm444, %v443
      %v519 = vld [vmem:[#allocation2 + $0x7] sm:$0xff]
      %v520 = vld [vmem:[#allocation2 + $0xf] sm:$0xff]
      %v521 = vld [vmem:[#allocation2 + $0x27] sm:$0xff]
      %v522 = vld [vmem:[#allocation2 + $0x2f] sm:$0xff]
      %v523 = vld [vmem:[#allocation2 + $0x47] sm:$0xff]
      %v524 = vld [vmem:[#allocation2 + $0x4f] sm:$0xff]
      %v525 = vld [vmem:[#allocation2 + $0x67] sm:$0xff]
      %v526 = vld [vmem:[#allocation2 + $0x6f] sm:$0xff]
      %v527 = vld [vmem:[#allocation2 + $0x87] sm:$0xff]
      %v528 = vld [vmem:[#allocation2 + $0x8f] sm:$0xff]
      %v529 = vld [vmem:[#allocation2 + $0xa7] sm:$0xff]
      %v530 = vld [vmem:[#allocation2 + $0xaf] sm:$0xff]
      %v531 = vld [vmem:[#allocation2 + $0xc7] sm:$0xff]
      %v532 = vld [vmem:[#allocation2 + $0xcf] sm:$0xff]
      %v533 = vld [vmem:[#allocation2 + $0xe7] sm:$0xff]
      %v534 = vld [vmem:[#allocation2 + $0xef] sm:$0xff]
      %v535 = vld [vmem:[#allocation2 + $0x107] sm:$0xff]
      %v536 = vld [vmem:[#allocation2 + $0x10f] sm:$0xff]
      %v537 = vld [vmem:[#allocation2 + $0x127] sm:$0xff]
      %v538 = vld [vmem:[#allocation2 + $0x12f] sm:$0xff]
      %v539 = vld [vmem:[#allocation2 + $0x147] sm:$0xff]
      %v540 = vld [vmem:[#allocation2 + $0x14f] sm:$0xff]
      %v541 = vld [vmem:[#allocation2 + $0x167] sm:$0xff]
      %v542 = vld [vmem:[#allocation2 + $0x16f] sm:$0xff]
      %v543 = vld [vmem:[#allocation2 + $0x187] sm:$0xff]
      %v544 = vld [vmem:[#allocation2 + $0x18f] sm:$0xff]
      %v545 = vld [vmem:[#allocation2 + $0x1a7] sm:$0xff]
      %v546 = vld [vmem:[#allocation2 + $0x1af] sm:$0xff]
      %v547 = vld [vmem:[#allocation2 + $0x1c7] sm:$0xff]
      %v548 = vld [vmem:[#allocation2 + $0x1cf] sm:$0xff]
      %v549 = vld [vmem:[#allocation2 + $0x1e7] sm:$0xff]
      %v550 = vld [vmem:[#allocation2 + $0x1ef] sm:$0xff]
      %v551 = vpack.c.bf16 %v520, %v519
      %v552 = vpack.c.bf16 %v522, %v521
      %v553 = vpack.c.bf16 %v524, %v523
      %v554 = vpack.c.bf16 %v526, %v525
      %v555 = vpack.c.bf16 %v528, %v527
      %v556 = vpack.c.bf16 %v530, %v529
      %v557 = vpack.c.bf16 %v532, %v531
      %v558 = vpack.c.bf16 %v534, %v533
      %v559 = vpack.c.bf16 %v536, %v535
      %v560 = vpack.c.bf16 %v538, %v537
      %v561 = vpack.c.bf16 %v540, %v539
      %v562 = vpack.c.bf16 %v542, %v541
      %v563 = vpack.c.bf16 %v544, %v543
      %v564 = vpack.c.bf16 %v546, %v545
      %v565 = vpack.c.bf16 %v548, %v547
      %v566 = vpack.c.bf16 %v550, %v549
      %567 = vst.msk [vmem:[#allocation3] sm:$0xff] %vm444, %v551
      %568 = vst.msk [vmem:[#allocation3 + $0x8] sm:$0xff] %vm444, %v552
      %569 = vst.msk [vmem:[#allocation3 + $0x10] sm:$0xff] %vm444, %v553
      %570 = vst.msk [vmem:[#allocation3 + $0x18] sm:$0xff] %vm444, %v554
      %571 = vst.msk [vmem:[#allocation3 + $0x20] sm:$0xff] %vm444, %v555
      %572 = vst.msk [vmem:[#allocation3 + $0x28] sm:$0xff] %vm444, %v556
      %573 = vst.msk [vmem:[#allocation3 + $0x30] sm:$0xff] %vm444, %v557
      %574 = vst.msk [vmem:[#allocation3 + $0x38] sm:$0xff] %vm444, %v558
      %575 = vst.msk [vmem:[#allocation3 + $0x40] sm:$0xff] %vm444, %v559
      %576 = vst.msk [vmem:[#allocation3 + $0x48] sm:$0xff] %vm444, %v560
      %577 = vst.msk [vmem:[#allocation3 + $0x50] sm:$0xff] %vm444, %v561
      %578 = vst.msk [vmem:[#allocation3 + $0x58] sm:$0xff] %vm444, %v562
      %579 = vst.msk [vmem:[#allocation3 + $0x60] sm:$0xff] %vm444, %v563
      %580 = vst.msk [vmem:[#allocation3 + $0x68] sm:$0xff] %vm444, %v564
      %581 = vst.msk [vmem:[#allocation3 + $0x70] sm:$0xff] %vm444, %v565
      %582 = vst.msk [vmem:[#allocation3 + $0x78] sm:$0xff] %vm444, %v566
      %v583 = vld [vmem:[#allocation2 + $0x8] sm:$0xff]
      %v584 = vld [vmem:[#allocation2 + $0x10] sm:$0xff]
      %v585 = vld [vmem:[#allocation2 + $0x28] sm:$0xff]
      %v586 = vld [vmem:[#allocation2 + $0x30] sm:$0xff]
      %v587 = vld [vmem:[#allocation2 + $0x48] sm:$0xff]
      %v588 = vld [vmem:[#allocation2 + $0x50] sm:$0xff]
      %v589 = vld [vmem:[#allocation2 + $0x68] sm:$0xff]
      %v590 = vld [vmem:[#allocation2 + $0x70] sm:$0xff]
      %v591 = vld [vmem:[#allocation2 + $0x88] sm:$0xff]
      %v592 = vld [vmem:[#allocation2 + $0x90] sm:$0xff]
      %v593 = vld [vmem:[#allocation2 + $0xa8] sm:$0xff]
      %v594 = vld [vmem:[#allocation2 + $0xb0] sm:$0xff]
      %v595 = vld [vmem:[#allocation2 + $0xc8] sm:$0xff]
      %v596 = vld [vmem:[#allocation2 + $0xd0] sm:$0xff]
      %v597 = vld [vmem:[#allocation2 + $0xe8] sm:$0xff]
      %v598 = vld [vmem:[#allocation2 + $0xf0] sm:$0xff]
      %v599 = vld [vmem:[#allocation2 + $0x108] sm:$0xff]
      %v600 = vld [vmem:[#allocation2 + $0x110] sm:$0xff]
      %v601 = vld [vmem:[#allocation2 + $0x128] sm:$0xff]
      %v602 = vld [vmem:[#allocation2 + $0x130] sm:$0xff]
      %v603 = vld [vmem:[#allocation2 + $0x148] sm:$0xff]
      %v604 = vld [vmem:[#allocation2 + $0x150] sm:$0xff]
      %v605 = vld [vmem:[#allocation2 + $0x168] sm:$0xff]
      %v606 = vld [vmem:[#allocation2 + $0x170] sm:$0xff]
      %v607 = vld [vmem:[#allocation2 + $0x188] sm:$0xff]
      %v608 = vld [vmem:[#allocation2 + $0x190] sm:$0xff]
      %v609 = vld [vmem:[#allocation2 + $0x1a8] sm:$0xff]
      %v610 = vld [vmem:[#allocation2 + $0x1b0] sm:$0xff]
      %v611 = vld [vmem:[#allocation2 + $0x1c8] sm:$0xff]
      %v612 = vld [vmem:[#allocation2 + $0x1d0] sm:$0xff]
      %v613 = vld [vmem:[#allocation2 + $0x1e8] sm:$0xff]
      %v614 = vld [vmem:[#allocation2 + $0x1f0] sm:$0xff]
      %v615 = vpack.c.bf16 %v584, %v583
      %v616 = vpack.c.bf16 %v586, %v585
      %v617 = vpack.c.bf16 %v588, %v587
      %v618 = vpack.c.bf16 %v590, %v589
      %v619 = vpack.c.bf16 %v592, %v591
      %v620 = vpack.c.bf16 %v594, %v593
      %v621 = vpack.c.bf16 %v596, %v595
      %v622 = vpack.c.bf16 %v598, %v597
      %v623 = vpack.c.bf16 %v600, %v599
      %v624 = vpack.c.bf16 %v602, %v601
      %v625 = vpack.c.bf16 %v604, %v603
      %v626 = vpack.c.bf16 %v606, %v605
      %v627 = vpack.c.bf16 %v608, %v607
      %v628 = vpack.c.bf16 %v610, %v609
      %v629 = vpack.c.bf16 %v612, %v611
      %v630 = vpack.c.bf16 %v614, %v613
      %647 = vrot.lane.b32.xlu0 %v615, 4
      %v648 = vpop.permute.xlu0 %647
      %649 = vrot.lane.b32.xlu0 %v616, 4
      %v650 = vpop.permute.xlu0 %649
      %651 = vrot.lane.b32.xlu0 %v617, 4
      %v652 = vpop.permute.xlu0 %651
      %653 = vrot.lane.b32.xlu0 %v618, 4
      %v654 = vpop.permute.xlu0 %653
      %655 = vrot.lane.b32.xlu0 %v619, 4
      %v656 = vpop.permute.xlu0 %655
      %657 = vrot.lane.b32.xlu0 %v620, 4
      %v658 = vpop.permute.xlu0 %657
      %659 = vrot.lane.b32.xlu0 %v621, 4
      %v660 = vpop.permute.xlu0 %659
      %661 = vrot.lane.b32.xlu0 %v622, 4
      %v662 = vpop.permute.xlu0 %661
      %663 = vrot.lane.b32.xlu0 %v623, 4
      %v664 = vpop.permute.xlu0 %663
      %665 = vrot.lane.b32.xlu0 %v624, 4
      %v666 = vpop.permute.xlu0 %665
      %667 = vrot.lane.b32.xlu0 %v625, 4
      %v668 = vpop.permute.xlu0 %667
      %669 = vrot.lane.b32.xlu0 %v626, 4
      %v670 = vpop.permute.xlu0 %669
      %671 = vrot.lane.b32.xlu0 %v627, 4
      %v672 = vpop.permute.xlu0 %671
      %673 = vrot.lane.b32.xlu0 %v628, 4
      %v674 = vpop.permute.xlu0 %673
      %675 = vrot.lane.b32.xlu0 %v629, 4
      %v676 = vpop.permute.xlu0 %675
      %677 = vrot.lane.b32.xlu0 %v630, 4
      %v678 = vpop.permute.xlu0 %677
      %vm695 = vcmask 64544
      %696 = vst.msk [vmem:[#allocation3] sm:$0xff] %vm695, %v648
      %697 = vst.msk [vmem:[#allocation3 + $0x8] sm:$0xff] %vm695, %v650
      %698 = vst.msk [vmem:[#allocation3 + $0x10] sm:$0xff] %vm695, %v652
      %699 = vst.msk [vmem:[#allocation3 + $0x18] sm:$0xff] %vm695, %v654
      %700 = vst.msk [vmem:[#allocation3 + $0x20] sm:$0xff] %vm695, %v656
      %701 = vst.msk [vmem:[#allocation3 + $0x28] sm:$0xff] %vm695, %v658
      %702 = vst.msk [vmem:[#allocation3 + $0x30] sm:$0xff] %vm695, %v660
      %703 = vst.msk [vmem:[#allocation3 + $0x38] sm:$0xff] %vm695, %v662
      %704 = vst.msk [vmem:[#allocation3 + $0x40] sm:$0xff] %vm695, %v664
      %705 = vst.msk [vmem:[#allocation3 + $0x48] sm:$0xff] %vm695, %v666
      %706 = vst.msk [vmem:[#allocation3 + $0x50] sm:$0xff] %vm695, %v668
      %707 = vst.msk [vmem:[#allocation3 + $0x58] sm:$0xff] %vm695, %v670
      %708 = vst.msk [vmem:[#allocation3 + $0x60] sm:$0xff] %vm695, %v672
      %709 = vst.msk [vmem:[#allocation3 + $0x68] sm:$0xff] %vm695, %v674
      %710 = vst.msk [vmem:[#allocation3 + $0x70] sm:$0xff] %vm695, %v676
      %711 = vst.msk [vmem:[#allocation3 + $0x78] sm:$0xff] %vm695, %v678
      %v712 = vld [vmem:[#allocation2 + $0x9] sm:$0xff]
      %v713 = vld [vmem:[#allocation2 + $0x11] sm:$0xff]
      %v714 = vld [vmem:[#allocation2 + $0x29] sm:$0xff]
      %v715 = vld [vmem:[#allocation2 + $0x31] sm:$0xff]
      %v716 = vld [vmem:[#allocation2 + $0x49] sm:$0xff]
      %v717 = vld [vmem:[#allocation2 + $0x51] sm:$0xff]
      %v718 = vld [vmem:[#allocation2 + $0x69] sm:$0xff]
      %v719 = vld [vmem:[#allocation2 + $0x71] sm:$0xff]
      %v720 = vld [vmem:[#allocation2 + $0x89] sm:$0xff]
      %v721 = vld [vmem:[#allocation2 + $0x91] sm:$0xff]
      %v722 = vld [vmem:[#allocation2 + $0xa9] sm:$0xff]
      %v723 = vld [vmem:[#allocation2 + $0xb1] sm:$0xff]
      %v724 = vld [vmem:[#allocation2 + $0xc9] sm:$0xff]
      %v725 = vld [vmem:[#allocation2 + $0xd1] sm:$0xff]
      %v726 = vld [vmem:[#allocation2 + $0xe9] sm:$0xff]
      %v727 = vld [vmem:[#allocation2 + $0xf1] sm:$0xff]
      %v728 = vld [vmem:[#allocation2 + $0x109] sm:$0xff]
      %v729 = vld [vmem:[#allocation2 + $0x111] sm:$0xff]
      %v730 = vld [vmem:[#allocation2 + $0x129] sm:$0xff]
      %v731 = vld [vmem:[#allocation2 + $0x131] sm:$0xff]
      %v732 = vld [vmem:[#allocation2 + $0x149] sm:$0xff]
      %v733 = vld [vmem:[#allocation2 + $0x151] sm:$0xff]
      %v734 = vld [vmem:[#allocation2 + $0x169] sm:$0xff]
      %v735 = vld [vmem:[#allocation2 + $0x171] sm:$0xff]
      %v736 = vld [vmem:[#allocation2 + $0x189] sm:$0xff]
      %v737 = vld [vmem:[#allocation2 + $0x191] sm:$0xff]
      %v738 = vld [vmem:[#allocation2 + $0x1a9] sm:$0xff]
      %v739 = vld [vmem:[#allocation2 + $0x1b1] sm:$0xff]
      %v740 = vld [vmem:[#allocation2 + $0x1c9] sm:$0xff]
      %v741 = vld [vmem:[#allocation2 + $0x1d1] sm:$0xff]
      %v742 = vld [vmem:[#allocation2 + $0x1e9] sm:$0xff]
      %v743 = vld [vmem:[#allocation2 + $0x1f1] sm:$0xff]
      %v744 = vpack.c.bf16 %v713, %v712
      %v745 = vpack.c.bf16 %v715, %v714
      %v746 = vpack.c.bf16 %v717, %v716
      %v747 = vpack.c.bf16 %v719, %v718
      %v748 = vpack.c.bf16 %v721, %v720
      %v749 = vpack.c.bf16 %v723, %v722
      %v750 = vpack.c.bf16 %v725, %v724
      %v751 = vpack.c.bf16 %v727, %v726
      %v752 = vpack.c.bf16 %v729, %v728
      %v753 = vpack.c.bf16 %v731, %v730
      %v754 = vpack.c.bf16 %v733, %v732
      %v755 = vpack.c.bf16 %v735, %v734
      %v756 = vpack.c.bf16 %v737, %v736
      %v757 = vpack.c.bf16 %v739, %v738
      %v758 = vpack.c.bf16 %v741, %v740
      %v759 = vpack.c.bf16 %v743, %v742
      %776 = vrot.lane.b32.xlu0 %v744, 8
      %v777 = vpop.permute.xlu0 %776
      %778 = vrot.lane.b32.xlu0 %v745, 8
      %v779 = vpop.permute.xlu0 %778
      %780 = vrot.lane.b32.xlu0 %v746, 8
      %v781 = vpop.permute.xlu0 %780
      %782 = vrot.lane.b32.xlu0 %v747, 8
      %v783 = vpop.permute.xlu0 %782
      %784 = vrot.lane.b32.xlu0 %v748, 8
      %v785 = vpop.permute.xlu0 %784
      %786 = vrot.lane.b32.xlu0 %v749, 8
      %v787 = vpop.permute.xlu0 %786
      %788 = vrot.lane.b32.xlu0 %v750, 8
      %v789 = vpop.permute.xlu0 %788
      %790 = vrot.lane.b32.xlu0 %v751, 8
      %v791 = vpop.permute.xlu0 %790
      %792 = vrot.lane.b32.xlu0 %v752, 8
      %v793 = vpop.permute.xlu0 %792
      %794 = vrot.lane.b32.xlu0 %v753, 8
      %v795 = vpop.permute.xlu0 %794
      %796 = vrot.lane.b32.xlu0 %v754, 8
      %v797 = vpop.permute.xlu0 %796
      %798 = vrot.lane.b32.xlu0 %v755, 8
      %v799 = vpop.permute.xlu0 %798
      %800 = vrot.lane.b32.xlu0 %v756, 8
      %v801 = vpop.permute.xlu0 %800
      %802 = vrot.lane.b32.xlu0 %v757, 8
      %v803 = vpop.permute.xlu0 %802
      %804 = vrot.lane.b32.xlu0 %v758, 8
      %v805 = vpop.permute.xlu0 %804
      %806 = vrot.lane.b32.xlu0 %v759, 8
      %v807 = vpop.permute.xlu0 %806
      %vm824 = vcmask 97344
      %825 = vst.msk [vmem:[#allocation3] sm:$0xff] %vm824, %v777
      %826 = vst.msk [vmem:[#allocation3 + $0x8] sm:$0xff] %vm824, %v779
      %827 = vst.msk [vmem:[#allocation3 + $0x10] sm:$0xff] %vm824, %v781
      %828 = vst.msk [vmem:[#allocation3 + $0x18] sm:$0xff] %vm824, %v783
      %829 = vst.msk [vmem:[#allocation3 + $0x20] sm:$0xff] %vm824, %v785
      %830 = vst.msk [vmem:[#allocation3 + $0x28] sm:$0xff] %vm824, %v787
      %831 = vst.msk [vmem:[#allocation3 + $0x30] sm:$0xff] %vm824, %v789
      %832 = vst.msk [vmem:[#allocation3 + $0x38] sm:$0xff] %vm824, %v791
      %833 = vst.msk [vmem:[#allocation3 + $0x40] sm:$0xff] %vm824, %v793
      %834 = vst.msk [vmem:[#allocation3 + $0x48] sm:$0xff] %vm824, %v795
      %835 = vst.msk [vmem:[#allocation3 + $0x50] sm:$0xff] %vm824, %v797
      %836 = vst.msk [vmem:[#allocation3 + $0x58] sm:$0xff] %vm824, %v799
      %837 = vst.msk [vmem:[#allocation3 + $0x60] sm:$0xff] %vm824, %v801
      %838 = vst.msk [vmem:[#allocation3 + $0x68] sm:$0xff] %vm824, %v803
      %839 = vst.msk [vmem:[#allocation3 + $0x70] sm:$0xff] %vm824, %v805
      %840 = vst.msk [vmem:[#allocation3 + $0x78] sm:$0xff] %vm824, %v807
      %v841 = vld [vmem:[%s454 + $0x7] sm:$0xff]
      %v842 = vld [vmem:[%s454 + $0xf] sm:$0xff]
      %v843 = vld [vmem:[%s454 + $0x27] sm:$0xff]
      %v844 = vld [vmem:[%s454 + $0x2f] sm:$0xff]
      %v845 = vld [vmem:[%s454 + $0x47] sm:$0xff]
      %v846 = vld [vmem:[%s454 + $0x4f] sm:$0xff]
      %v847 = vld [vmem:[%s454 + $0x67] sm:$0xff]
      %v848 = vld [vmem:[%s454 + $0x6f] sm:$0xff]
      %v849 = vld [vmem:[%s454 + $0x87] sm:$0xff]
      %v850 = vld [vmem:[%s454 + $0x8f] sm:$0xff]
      %v851 = vld [vmem:[%s454 + $0xa7] sm:$0xff]
      %v852 = vld [vmem:[%s454 + $0xaf] sm:$0xff]
      %v853 = vld [vmem:[%s454 + $0xc7] sm:$0xff]
      %v854 = vld [vmem:[%s454 + $0xcf] sm:$0xff]
      %v855 = vld [vmem:[%s454 + $0xe7] sm:$0xff]
      %v856 = vld [vmem:[%s454 + $0xef] sm:$0xff]
      %v857 = vld [vmem:[%s454 + $0x107] sm:$0xff]
      %v858 = vld [vmem:[%s454 + $0x10f] sm:$0xff]
      %v859 = vld [vmem:[%s454 + $0x127] sm:$0xff]
      %v860 = vld [vmem:[%s454 + $0x12f] sm:$0xff]
      %v861 = vld [vmem:[%s454 + $0x147] sm:$0xff]
      %v862 = vld [vmem:[%s454 + $0x14f] sm:$0xff]
      %v863 = vld [vmem:[%s454 + $0x167] sm:$0xff]
      %v864 = vld [vmem:[%s454 + $0x16f] sm:$0xff]
      %v865 = vld [vmem:[%s454 + $0x187] sm:$0xff]
      %v866 = vld [vmem:[%s454 + $0x18f] sm:$0xff]
      %v867 = vld [vmem:[%s454 + $0x1a7] sm:$0xff]
      %v868 = vld [vmem:[%s454 + $0x1af] sm:$0xff]
      %v869 = vld [vmem:[%s454 + $0x1c7] sm:$0xff]
      %v870 = vld [vmem:[%s454 + $0x1cf] sm:$0xff]
      %v871 = vld [vmem:[%s454 + $0x1e7] sm:$0xff]
      %v872 = vld [vmem:[%s454 + $0x1ef] sm:$0xff]
      %v873 = vpack.c.bf16 %v842, %v841
      %v874 = vpack.c.bf16 %v844, %v843
      %v875 = vpack.c.bf16 %v846, %v845
      %v876 = vpack.c.bf16 %v848, %v847
      %v877 = vpack.c.bf16 %v850, %v849
      %v878 = vpack.c.bf16 %v852, %v851
      %v879 = vpack.c.bf16 %v854, %v853
      %v880 = vpack.c.bf16 %v856, %v855
      %v881 = vpack.c.bf16 %v858, %v857
      %v882 = vpack.c.bf16 %v860, %v859
      %v883 = vpack.c.bf16 %v862, %v861
      %v884 = vpack.c.bf16 %v864, %v863
      %v885 = vpack.c.bf16 %v866, %v865
      %v886 = vpack.c.bf16 %v868, %v867
      %v887 = vpack.c.bf16 %v870, %v869
      %v888 = vpack.c.bf16 %v872, %v871
      %905 = vrot.lane.b32.xlu0 %v873, 12
      %v906 = vpop.permute.xlu0 %905
      %907 = vrot.lane.b32.xlu0 %v874, 12
      %v908 = vpop.permute.xlu0 %907
      %909 = vrot.lane.b32.xlu0 %v875, 12
      %v910 = vpop.permute.xlu0 %909
      %911 = vrot.lane.b32.xlu0 %v876, 12
      %v912 = vpop.permute.xlu0 %911
      %913 = vrot.lane.b32.xlu0 %v877, 12
      %v914 = vpop.permute.xlu0 %913
      %915 = vrot.lane.b32.xlu0 %v878, 12
      %v916 = vpop.permute.xlu0 %915
      %917 = vrot.lane.b32.xlu0 %v879, 12
      %v918 = vpop.permute.xlu0 %917
      %919 = vrot.lane.b32.xlu0 %v880, 12
      %v920 = vpop.permute.xlu0 %919
      %921 = vrot.lane.b32.xlu0 %v881, 12
      %v922 = vpop.permute.xlu0 %921
      %923 = vrot.lane.b32.xlu0 %v882, 12
      %v924 = vpop.permute.xlu0 %923
      %925 = vrot.lane.b32.xlu0 %v883, 12
      %v926 = vpop.permute.xlu0 %925
      %927 = vrot.lane.b32.xlu0 %v884, 12
      %v928 = vpop.permute.xlu0 %927
      %929 = vrot.lane.b32.xlu0 %v885, 12
      %v930 = vpop.permute.xlu0 %929
      %931 = vrot.lane.b32.xlu0 %v886, 12
      %v932 = vpop.permute.xlu0 %931
      %933 = vrot.lane.b32.xlu0 %v887, 12
      %v934 = vpop.permute.xlu0 %933
      %935 = vrot.lane.b32.xlu0 %v888, 12
      %v936 = vpop.permute.xlu0 %935
      %vm953 = vcmask 130144
      %954 = vst.msk [vmem:[#allocation3] sm:$0xff] %vm953, %v906
      %955 = vst.msk [vmem:[#allocation3 + $0x8] sm:$0xff] %vm953, %v908
      %956 = vst.msk [vmem:[#allocation3 + $0x10] sm:$0xff] %vm953, %v910
      %957 = vst.msk [vmem:[#allocation3 + $0x18] sm:$0xff] %vm953, %v912
      %958 = vst.msk [vmem:[#allocation3 + $0x20] sm:$0xff] %vm953, %v914
      %959 = vst.msk [vmem:[#allocation3 + $0x28] sm:$0xff] %vm953, %v916
      %960 = vst.msk [vmem:[#allocation3 + $0x30] sm:$0xff] %vm953, %v918
      %961 = vst.msk [vmem:[#allocation3 + $0x38] sm:$0xff] %vm953, %v920
      %962 = vst.msk [vmem:[#allocation3 + $0x40] sm:$0xff] %vm953, %v922
      %963 = vst.msk [vmem:[#allocation3 + $0x48] sm:$0xff] %vm953, %v924
      %964 = vst.msk [vmem:[#allocation3 + $0x50] sm:$0xff] %vm953, %v926
      %965 = vst.msk [vmem:[#allocation3 + $0x58] sm:$0xff] %vm953, %v928
      %966 = vst.msk [vmem:[#allocation3 + $0x60] sm:$0xff] %vm953, %v930
      %967 = vst.msk [vmem:[#allocation3 + $0x68] sm:$0xff] %vm953, %v932
      %968 = vst.msk [vmem:[#allocation3 + $0x70] sm:$0xff] %vm953, %v934
      %969 = vst.msk [vmem:[#allocation3 + $0x78] sm:$0xff] %vm953, %v936
      %v970 = vld [vmem:[%s454 + $0x8] sm:$0xff]
      %v971 = vld [vmem:[%s454 + $0x10] sm:$0xff]
      %v972 = vld [vmem:[%s454 + $0x28] sm:$0xff]
      %v973 = vld [vmem:[%s454 + $0x30] sm:$0xff]
      %v974 = vld [vmem:[%s454 + $0x48] sm:$0xff]
      %v975 = vld [vmem:[%s454 + $0x50] sm:$0xff]
      %v976 = vld [vmem:[%s454 + $0x68] sm:$0xff]
      %v977 = vld [vmem:[%s454 + $0x70] sm:$0xff]
      %v978 = vld [vmem:[%s454 + $0x88] sm:$0xff]
      %v979 = vld [vmem:[%s454 + $0x90] sm:$0xff]
      %v980 = vld [vmem:[%s454 + $0xa8] sm:$0xff]
      %v981 = vld [vmem:[%s454 + $0xb0] sm:$0xff]
      %v982 = vld [vmem:[%s454 + $0xc8] sm:$0xff]
      %v983 = vld [vmem:[%s454 + $0xd0] sm:$0xff]
      %v984 = vld [vmem:[%s454 + $0xe8] sm:$0xff]
      %v985 = vld [vmem:[%s454 + $0xf0] sm:$0xff]
      %v986 = vld [vmem:[%s454 + $0x108] sm:$0xff]
      %v987 = vld [vmem:[%s454 + $0x110] sm:$0xff]
      %v988 = vld [vmem:[%s454 + $0x128] sm:$0xff]
      %v989 = vld [vmem:[%s454 + $0x130] sm:$0xff]
      %v990 = vld [vmem:[%s454 + $0x148] sm:$0xff]
      %v991 = vld [vmem:[%s454 + $0x150] sm:$0xff]
      %v992 = vld [vmem:[%s454 + $0x168] sm:$0xff]
      %v993 = vld [vmem:[%s454 + $0x170] sm:$0xff]
      %v994 = vld [vmem:[%s454 + $0x188] sm:$0xff]
      %v995 = vld [vmem:[%s454 + $0x190] sm:$0xff]
      %v996 = vld [vmem:[%s454 + $0x1a8] sm:$0xff]
      %v997 = vld [vmem:[%s454 + $0x1b0] sm:$0xff]
      %v998 = vld [vmem:[%s454 + $0x1c8] sm:$0xff]
      %v999 = vld [vmem:[%s454 + $0x1d0] sm:$0xff]
      %v1000 = vld [vmem:[%s454 + $0x1e8] sm:$0xff]
      %v1001 = vld [vmem:[%s454 + $0x1f0] sm:$0xff]
      %v1002 = vpack.c.bf16 %v971, %v970
      %v1003 = vpack.c.bf16 %v973, %v972
      %v1004 = vpack.c.bf16 %v975, %v974
      %v1005 = vpack.c.bf16 %v977, %v976
      %v1006 = vpack.c.bf16 %v979, %v978
      %v1007 = vpack.c.bf16 %v981, %v980
      %v1008 = vpack.c.bf16 %v983, %v982
      %v1009 = vpack.c.bf16 %v985, %v984
      %v1010 = vpack.c.bf16 %v987, %v986
      %v1011 = vpack.c.bf16 %v989, %v988
      %v1012 = vpack.c.bf16 %v991, %v990
      %v1013 = vpack.c.bf16 %v993, %v992
      %v1014 = vpack.c.bf16 %v995, %v994
      %v1015 = vpack.c.bf16 %v997, %v996
      %v1016 = vpack.c.bf16 %v999, %v998
      %v1017 = vpack.c.bf16 %v1001, %v1000
      %1034 = vrot.lane.b32.xlu0 %v1002, 16
      %v1035 = vpop.permute.xlu0 %1034
      %1036 = vrot.lane.b32.xlu0 %v1003, 16
      %v1037 = vpop.permute.xlu0 %1036
      %1038 = vrot.lane.b32.xlu0 %v1004, 16
      %v1039 = vpop.permute.xlu0 %1038
      %1040 = vrot.lane.b32.xlu0 %v1005, 16
      %v1041 = vpop.permute.xlu0 %1040
      %1042 = vrot.lane.b32.xlu0 %v1006, 16
      %v1043 = vpop.permute.xlu0 %1042
      %1044 = vrot.lane.b32.xlu0 %v1007, 16
      %v1045 = vpop.permute.xlu0 %1044
      %1046 = vrot.lane.b32.xlu0 %v1008, 16
      %v1047 = vpop.permute.xlu0 %1046
      %1048 = vrot.lane.b32.xlu0 %v1009, 16
      %v1049 = vpop.permute.xlu0 %1048
      %1050 = vrot.lane.b32.xlu0 %v1010, 16
      %v1051 = vpop.permute.xlu0 %1050
      %1052 = vrot.lane.b32.xlu0 %v1011, 16
      %v1053 = vpop.permute.xlu0 %1052
      %1054 = vrot.lane.b32.xlu0 %v1012, 16
      %v1055 = vpop.permute.xlu0 %1054
      %1056 = vrot.lane.b32.xlu0 %v1013, 16
      %v1057 = vpop.permute.xlu0 %1056
      %1058 = vrot.lane.b32.xlu0 %v1014, 16
      %v1059 = vpop.permute.xlu0 %1058
      %1060 = vrot.lane.b32.xlu0 %v1015, 16
      %v1061 = vpop.permute.xlu0 %1060
      %1062 = vrot.lane.b32.xlu0 %v1016, 16
      %v1063 = vpop.permute.xlu0 %1062
      %1064 = vrot.lane.b32.xlu0 %v1017, 16
      %v1065 = vpop.permute.xlu0 %1064
      %vm1082 = vcmask 162944
      %1083 = vst.msk [vmem:[#allocation3] sm:$0xff] %vm1082, %v1035
      %1084 = vst.msk [vmem:[#allocation3 + $0x8] sm:$0xff] %vm1082, %v1037
      %1085 = vst.msk [vmem:[#allocation3 + $0x10] sm:$0xff] %vm1082, %v1039
      %1086 = vst.msk [vmem:[#allocation3 + $0x18] sm:$0xff] %vm1082, %v1041
      %1087 = vst.msk [vmem:[#allocation3 + $0x20] sm:$0xff] %vm1082, %v1043
      %1088 = vst.msk [vmem:[#allocation3 + $0x28] sm:$0xff] %vm1082, %v1045
      %1089 = vst.msk [vmem:[#allocation3 + $0x30] sm:$0xff] %vm1082, %v1047
      %1090 = vst.msk [vmem:[#allocation3 + $0x38] sm:$0xff] %vm1082, %v1049
      %1091 = vst.msk [vmem:[#allocation3 + $0x40] sm:$0xff] %vm1082, %v1051
      %1092 = vst.msk [vmem:[#allocation3 + $0x48] sm:$0xff] %vm1082, %v1053
      %1093 = vst.msk [vmem:[#allocation3 + $0x50] sm:$0xff] %vm1082, %v1055
      %1094 = vst.msk [vmem:[#allocation3 + $0x58] sm:$0xff] %vm1082, %v1057
      %1095 = vst.msk [vmem:[#allocation3 + $0x60] sm:$0xff] %vm1082, %v1059
      %1096 = vst.msk [vmem:[#allocation3 + $0x68] sm:$0xff] %vm1082, %v1061
      %1097 = vst.msk [vmem:[#allocation3 + $0x70] sm:$0xff] %vm1082, %v1063
      %1098 = vst.msk [vmem:[#allocation3 + $0x78] sm:$0xff] %vm1082, %v1065
      %v1099 = vld [vmem:[%s454 + $0x9] sm:$0xff]
      %v1100 = vld [vmem:[%s454 + $0x11] sm:$0xff]
      %v1101 = vld [vmem:[%s454 + $0x29] sm:$0xff]
      %v1102 = vld [vmem:[%s454 + $0x31] sm:$0xff]
      %v1103 = vld [vmem:[%s454 + $0x49] sm:$0xff]
      %v1104 = vld [vmem:[%s454 + $0x51] sm:$0xff]
      %v1105 = vld [vmem:[%s454 + $0x69] sm:$0xff]
      %v1106 = vld [vmem:[%s454 + $0x71] sm:$0xff]
      %v1107 = vld [vmem:[%s454 + $0x89] sm:$0xff]
      %v1108 = vld [vmem:[%s454 + $0x91] sm:$0xff]
      %v1109 = vld [vmem:[%s454 + $0xa9] sm:$0xff]
      %v1110 = vld [vmem:[%s454 + $0xb1] sm:$0xff]
      %v1111 = vld [vmem:[%s454 + $0xc9] sm:$0xff]
      %v1112 = vld [vmem:[%s454 + $0xd1] sm:$0xff]
      %v1113 = vld [vmem:[%s454 + $0xe9] sm:$0xff]
      %v1114 = vld [vmem:[%s454 + $0xf1] sm:$0xff]
      %v1115 = vld [vmem:[%s454 + $0x109] sm:$0xff]
      %v1116 = vld [vmem:[%s454 + $0x111] sm:$0xff]
      %v1117 = vld [vmem:[%s454 + $0x129] sm:$0xff]
      %v1118 = vld [vmem:[%s454 + $0x131] sm:$0xff]
      %v1119 = vld [vmem:[%s454 + $0x149] sm:$0xff]
      %v1120 = vld [vmem:[%s454 + $0x151] sm:$0xff]
      %v1121 = vld [vmem:[%s454 + $0x169] sm:$0xff]
      %v1122 = vld [vmem:[%s454 + $0x171] sm:$0xff]
      %v1123 = vld [vmem:[%s454 + $0x189] sm:$0xff]
      %v1124 = vld [vmem:[%s454 + $0x191] sm:$0xff]
      %v1125 = vld [vmem:[%s454 + $0x1a9] sm:$0xff]
      %v1126 = vld [vmem:[%s454 + $0x1b1] sm:$0xff]
      %v1127 = vld [vmem:[%s454 + $0x1c9] sm:$0xff]
      %v1128 = vld [vmem:[%s454 + $0x1d1] sm:$0xff]
      %v1129 = vld [vmem:[%s454 + $0x1e9] sm:$0xff]
      %v1130 = vld [vmem:[%s454 + $0x1f1] sm:$0xff]
      %v1131 = vpack.c.bf16 %v1100, %v1099
      %v1132 = vpack.c.bf16 %v1102, %v1101
      %v1133 = vpack.c.bf16 %v1104, %v1103
      %v1134 = vpack.c.bf16 %v1106, %v1105
      %v1135 = vpack.c.bf16 %v1108, %v1107
      %v1136 = vpack.c.bf16 %v1110, %v1109
      %v1137 = vpack.c.bf16 %v1112, %v1111
      %v1138 = vpack.c.bf16 %v1114, %v1113
      %v1139 = vpack.c.bf16 %v1116, %v1115
      %v1140 = vpack.c.bf16 %v1118, %v1117
      %v1141 = vpack.c.bf16 %v1120, %v1119
      %v1142 = vpack.c.bf16 %v1122, %v1121
      %v1143 = vpack.c.bf16 %v1124, %v1123
      %v1144 = vpack.c.bf16 %v1126, %v1125
      %v1145 = vpack.c.bf16 %v1128, %v1127
      %v1146 = vpack.c.bf16 %v1130, %v1129
      %1163 = vrot.lane.b32.xlu0 %v1131, 20
      %v1164 = vpop.permute.xlu0 %1163
      %1165 = vrot.lane.b32.xlu0 %v1132, 20
      %v1166 = vpop.permute.xlu0 %1165
      %1167 = vrot.lane.b32.xlu0 %v1133, 20
      %v1168 = vpop.permute.xlu0 %1167
      %1169 = vrot.lane.b32.xlu0 %v1134, 20
      %v1170 = vpop.permute.xlu0 %1169
      %1171 = vrot.lane.b32.xlu0 %v1135, 20
      %v1172 = vpop.permute.xlu0 %1171
      %1173 = vrot.lane.b32.xlu0 %v1136, 20
      %v1174 = vpop.permute.xlu0 %1173
      %1175 = vrot.lane.b32.xlu0 %v1137, 20
      %v1176 = vpop.permute.xlu0 %1175
      %1177 = vrot.lane.b32.xlu0 %v1138, 20
      %v1178 = vpop.permute.xlu0 %1177
      %1179 = vrot.lane.b32.xlu0 %v1139, 20
      %v1180 = vpop.permute.xlu0 %1179
      %1181 = vrot.lane.b32.xlu0 %v1140, 20
      %v1182 = vpop.permute.xlu0 %1181
      %1183 = vrot.lane.b32.xlu0 %v1141, 20
      %v1184 = vpop.permute.xlu0 %1183
      %1185 = vrot.lane.b32.xlu0 %v1142, 20
      %v1186 = vpop.permute.xlu0 %1185
      %1187 = vrot.lane.b32.xlu0 %v1143, 20
      %v1188 = vpop.permute.xlu0 %1187
      %1189 = vrot.lane.b32.xlu0 %v1144, 20
      %v1190 = vpop.permute.xlu0 %1189
      %1191 = vrot.lane.b32.xlu0 %v1145, 20
      %v1192 = vpop.permute.xlu0 %1191
      %1193 = vrot.lane.b32.xlu0 %v1146, 20
      %v1194 = vpop.permute.xlu0 %1193
      %vm1211 = vcmask 195744
      %1212 = vst.msk [vmem:[#allocation3] sm:$0xff] %vm1211, %v1164
      %1213 = vst.msk [vmem:[#allocation3 + $0x8] sm:$0xff] %vm1211, %v1166
      %1214 = vst.msk [vmem:[#allocation3 + $0x10] sm:$0xff] %vm1211, %v1168
      %1215 = vst.msk [vmem:[#allocation3 + $0x18] sm:$0xff] %vm1211, %v1170
      %1216 = vst.msk [vmem:[#allocation3 + $0x20] sm:$0xff] %vm1211, %v1172
      %1217 = vst.msk [vmem:[#allocation3 + $0x28] sm:$0xff] %vm1211, %v1174
      %1218 = vst.msk [vmem:[#allocation3 + $0x30] sm:$0xff] %vm1211, %v1176
      %1219 = vst.msk [vmem:[#allocation3 + $0x38] sm:$0xff] %vm1211, %v1178
      %1220 = vst.msk [vmem:[#allocation3 + $0x40] sm:$0xff] %vm1211, %v1180
      %1221 = vst.msk [vmem:[#allocation3 + $0x48] sm:$0xff] %vm1211, %v1182
      %1222 = vst.msk [vmem:[#allocation3 + $0x50] sm:$0xff] %vm1211, %v1184
      %1223 = vst.msk [vmem:[#allocation3 + $0x58] sm:$0xff] %vm1211, %v1186
      %1224 = vst.msk [vmem:[#allocation3 + $0x60] sm:$0xff] %vm1211, %v1188
      %1225 = vst.msk [vmem:[#allocation3 + $0x68] sm:$0xff] %vm1211, %v1190
      %1226 = vst.msk [vmem:[#allocation3 + $0x70] sm:$0xff] %vm1211, %v1192
      %1227 = vst.msk [vmem:[#allocation3 + $0x78] sm:$0xff] %vm1211, %v1194
      %s1228 = scalar_lea.vmem [#allocation2], 64
      %v1229 = vld [vmem:[%s1228 + $0x7] sm:$0xff]
      %v1230 = vld [vmem:[%s1228 + $0xf] sm:$0xff]
      %v1231 = vld [vmem:[%s1228 + $0x27] sm:$0xff]
      %v1232 = vld [vmem:[%s1228 + $0x2f] sm:$0xff]
      %v1233 = vld [vmem:[%s1228 + $0x47] sm:$0xff]
      %v1234 = vld [vmem:[%s1228 + $0x4f] sm:$0xff]
      %v1235 = vld [vmem:[%s1228 + $0x67] sm:$0xff]
      %v1236 = vld [vmem:[%s1228 + $0x6f] sm:$0xff]
      %v1237 = vld [vmem:[%s1228 + $0x87] sm:$0xff]
      %v1238 = vld [vmem:[%s1228 + $0x8f] sm:$0xff]
      %v1239 = vld [vmem:[%s1228 + $0xa7] sm:$0xff]
      %v1240 = vld [vmem:[%s1228 + $0xaf] sm:$0xff]
      %v1241 = vld [vmem:[%s1228 + $0xc7] sm:$0xff]
      %v1242 = vld [vmem:[%s1228 + $0xcf] sm:$0xff]
      %v1243 = vld [vmem:[%s1228 + $0xe7] sm:$0xff]
      %v1244 = vld [vmem:[%s1228 + $0xef] sm:$0xff]
      %v1245 = vld [vmem:[%s1228 + $0x107] sm:$0xff]
      %v1246 = vld [vmem:[%s1228 + $0x10f] sm:$0xff]
      %v1247 = vld [vmem:[%s1228 + $0x127] sm:$0xff]
      %v1248 = vld [vmem:[%s1228 + $0x12f] sm:$0xff]
      %v1249 = vld [vmem:[%s1228 + $0x147] sm:$0xff]
      %v1250 = vld [vmem:[%s1228 + $0x14f] sm:$0xff]
      %v1251 = vld [vmem:[%s1228 + $0x167] sm:$0xff]
      %v1252 = vld [vmem:[%s1228 + $0x16f] sm:$0xff]
      %v1253 = vld [vmem:[%s1228 + $0x187] sm:$0xff]
      %v1254 = vld [vmem:[%s1228 + $0x18f] sm:$0xff]
      %v1255 = vld [vmem:[%s1228 + $0x1a7] sm:$0xff]
      %v1256 = vld [vmem:[%s1228 + $0x1af] sm:$0xff]
      %v1257 = vld [vmem:[%s1228 + $0x1c7] sm:$0xff]
      %v1258 = vld [vmem:[%s1228 + $0x1cf] sm:$0xff]
      %v1259 = vld [vmem:[%s1228 + $0x1e7] sm:$0xff]
      %v1260 = vld [vmem:[%s1228 + $0x1ef] sm:$0xff]
      %v1261 = vpack.c.bf16 %v1230, %v1229
      %v1262 = vpack.c.bf16 %v1232, %v1231
      %v1263 = vpack.c.bf16 %v1234, %v1233
      %v1264 = vpack.c.bf16 %v1236, %v1235
      %v1265 = vpack.c.bf16 %v1238, %v1237
      %v1266 = vpack.c.bf16 %v1240, %v1239
      %v1267 = vpack.c.bf16 %v1242, %v1241
      %v1268 = vpack.c.bf16 %v1244, %v1243
      %v1269 = vpack.c.bf16 %v1246, %v1245
      %v1270 = vpack.c.bf16 %v1248, %v1247
      %v1271 = vpack.c.bf16 %v1250, %v1249
      %v1272 = vpack.c.bf16 %v1252, %v1251
      %v1273 = vpack.c.bf16 %v1254, %v1253
      %v1274 = vpack.c.bf16 %v1256, %v1255
      %v1275 = vpack.c.bf16 %v1258, %v1257
      %v1276 = vpack.c.bf16 %v1260, %v1259
      %1293 = vrot.lane.b32.xlu0 %v1261, 24
      %v1294 = vpop.permute.xlu0 %1293
      %1295 = vrot.lane.b32.xlu0 %v1262, 24
      %v1296 = vpop.permute.xlu0 %1295
      %1297 = vrot.lane.b32.xlu0 %v1263, 24
      %v1298 = vpop.permute.xlu0 %1297
      %1299 = vrot.lane.b32.xlu0 %v1264, 24
      %v1300 = vpop.permute.xlu0 %1299
      %1301 = vrot.lane.b32.xlu0 %v1265, 24
      %v1302 = vpop.permute.xlu0 %1301
      %1303 = vrot.lane.b32.xlu0 %v1266, 24
      %v1304 = vpop.permute.xlu0 %1303
      %1305 = vrot.lane.b32.xlu0 %v1267, 24
      %v1306 = vpop.permute.xlu0 %1305
      %1307 = vrot.lane.b32.xlu0 %v1268, 24
      %v1308 = vpop.permute.xlu0 %1307
      %1309 = vrot.lane.b32.xlu0 %v1269, 24
      %v1310 = vpop.permute.xlu0 %1309
      %1311 = vrot.lane.b32.xlu0 %v1270, 24
      %v1312 = vpop.permute.xlu0 %1311
      %1313 = vrot.lane.b32.xlu0 %v1271, 24
      %v1314 = vpop.permute.xlu0 %1313
      %1315 = vrot.lane.b32.xlu0 %v1272, 24
      %v1316 = vpop.permute.xlu0 %1315
      %1317 = vrot.lane.b32.xlu0 %v1273, 24
      %v1318 = vpop.permute.xlu0 %1317
      %1319 = vrot.lane.b32.xlu0 %v1274, 24
      %v1320 = vpop.permute.xlu0 %1319
      %1321 = vrot.lane.b32.xlu0 %v1275, 24
      %v1322 = vpop.permute.xlu0 %1321
      %1323 = vrot.lane.b32.xlu0 %v1276, 24
      %v1324 = vpop.permute.xlu0 %1323
      %vm1341 = vcmask 228544
      %1342 = vst.msk [vmem:[#allocation3] sm:$0xff] %vm1341, %v1294
      %1343 = vst.msk [vmem:[#allocation3 + $0x8] sm:$0xff] %vm1341, %v1296
      %1344 = vst.msk [vmem:[#allocation3 + $0x10] sm:$0xff] %vm1341, %v1298
      %1345 = vst.msk [vmem:[#allocation3 + $0x18] sm:$0xff] %vm1341, %v1300
      %1346 = vst.msk [vmem:[#allocation3 + $0x20] sm:$0xff] %vm1341, %v1302
      %1347 = vst.msk [vmem:[#allocation3 + $0x28] sm:$0xff] %vm1341, %v1304
      %1348 = vst.msk [vmem:[#allocation3 + $0x30] sm:$0xff] %vm1341, %v1306
      %1349 = vst.msk [vmem:[#allocation3 + $0x38] sm:$0xff] %vm1341, %v1308
      %1350 = vst.msk [vmem:[#allocation3 + $0x40] sm:$0xff] %vm1341, %v1310
      %1351 = vst.msk [vmem:[#allocation3 + $0x48] sm:$0xff] %vm1341, %v1312
      %1352 = vst.msk [vmem:[#allocation3 + $0x50] sm:$0xff] %vm1341, %v1314
      %1353 = vst.msk [vmem:[#allocation3 + $0x58] sm:$0xff] %vm1341, %v1316
      %1354 = vst.msk [vmem:[#allocation3 + $0x60] sm:$0xff] %vm1341, %v1318
      %1355 = vst.msk [vmem:[#allocation3 + $0x68] sm:$0xff] %vm1341, %v1320
      %1356 = vst.msk [vmem:[#allocation3 + $0x70] sm:$0xff] %vm1341, %v1322
      %1357 = vst.msk [vmem:[#allocation3 + $0x78] sm:$0xff] %vm1341, %v1324
      %v1358 = vld [vmem:[%s1228 + $0x8] sm:$0xff]
      %v1359 = vld [vmem:[%s1228 + $0x10] sm:$0xff]
      %v1360 = vld [vmem:[%s1228 + $0x28] sm:$0xff]
      %v1361 = vld [vmem:[%s1228 + $0x30] sm:$0xff]
      %v1362 = vld [vmem:[%s1228 + $0x48] sm:$0xff]
      %v1363 = vld [vmem:[%s1228 + $0x50] sm:$0xff]
      %v1364 = vld [vmem:[%s1228 + $0x68] sm:$0xff]
      %v1365 = vld [vmem:[%s1228 + $0x70] sm:$0xff]
      %v1366 = vld [vmem:[%s1228 + $0x88] sm:$0xff]
      %v1367 = vld [vmem:[%s1228 + $0x90] sm:$0xff]
      %v1368 = vld [vmem:[%s1228 + $0xa8] sm:$0xff]
      %v1369 = vld [vmem:[%s1228 + $0xb0] sm:$0xff]
      %v1370 = vld [vmem:[%s1228 + $0xc8] sm:$0xff]
      %v1371 = vld [vmem:[%s1228 + $0xd0] sm:$0xff]
      %v1372 = vld [vmem:[%s1228 + $0xe8] sm:$0xff]
      %v1373 = vld [vmem:[%s1228 + $0xf0] sm:$0xff]
      %v1374 = vld [vmem:[%s1228 + $0x108] sm:$0xff]
      %v1375 = vld [vmem:[%s1228 + $0x110] sm:$0xff]
      %v1376 = vld [vmem:[%s1228 + $0x128] sm:$0xff]
      %v1377 = vld [vmem:[%s1228 + $0x130] sm:$0xff]
      %v1378 = vld [vmem:[%s1228 + $0x148] sm:$0xff]
      %v1379 = vld [vmem:[%s1228 + $0x150] sm:$0xff]
      %v1380 = vld [vmem:[%s1228 + $0x168] sm:$0xff]
      %v1381 = vld [vmem:[%s1228 + $0x170] sm:$0xff]
      %v1382 = vld [vmem:[%s1228 + $0x188] sm:$0xff]
      %v1383 = vld [vmem:[%s1228 + $0x190] sm:$0xff]
      %v1384 = vld [vmem:[%s1228 + $0x1a8] sm:$0xff]
      %v1385 = vld [vmem:[%s1228 + $0x1b0] sm:$0xff]
      %v1386 = vld [vmem:[%s1228 + $0x1c8] sm:$0xff]
      %v1387 = vld [vmem:[%s1228 + $0x1d0] sm:$0xff]
      %v1388 = vld [vmem:[%s1228 + $0x1e8] sm:$0xff]
      %v1389 = vld [vmem:[%s1228 + $0x1f0] sm:$0xff]
      %v1390 = vpack.c.bf16 %v1359, %v1358
      %v1391 = vpack.c.bf16 %v1361, %v1360
      %v1392 = vpack.c.bf16 %v1363, %v1362
      %v1393 = vpack.c.bf16 %v1365, %v1364
      %v1394 = vpack.c.bf16 %v1367, %v1366
      %v1395 = vpack.c.bf16 %v1369, %v1368
      %v1396 = vpack.c.bf16 %v1371, %v1370
      %v1397 = vpack.c.bf16 %v1373, %v1372
      %v1398 = vpack.c.bf16 %v1375, %v1374
      %v1399 = vpack.c.bf16 %v1377, %v1376
      %v1400 = vpack.c.bf16 %v1379, %v1378
      %v1401 = vpack.c.bf16 %v1381, %v1380
      %v1402 = vpack.c.bf16 %v1383, %v1382
      %v1403 = vpack.c.bf16 %v1385, %v1384
      %v1404 = vpack.c.bf16 %v1387, %v1386
      %v1405 = vpack.c.bf16 %v1389, %v1388
      %1422 = vrot.lane.b32.xlu0 %v1390, 28
      %v1423 = vpop.permute.xlu0 %1422
      %1424 = vrot.lane.b32.xlu0 %v1391, 28
      %v1425 = vpop.permute.xlu0 %1424
      %1426 = vrot.lane.b32.xlu0 %v1392, 28
      %v1427 = vpop.permute.xlu0 %1426
      %1428 = vrot.lane.b32.xlu0 %v1393, 28
      %v1429 = vpop.permute.xlu0 %1428
      %1430 = vrot.lane.b32.xlu0 %v1394, 28
      %v1431 = vpop.permute.xlu0 %1430
      %1432 = vrot.lane.b32.xlu0 %v1395, 28
      %v1433 = vpop.permute.xlu0 %1432
      %1434 = vrot.lane.b32.xlu0 %v1396, 28
      %v1435 = vpop.permute.xlu0 %1434
      %1436 = vrot.lane.b32.xlu0 %v1397, 28
      %v1437 = vpop.permute.xlu0 %1436
      %1438 = vrot.lane.b32.xlu0 %v1398, 28
      %v1439 = vpop.permute.xlu0 %1438
      %1440 = vrot.lane.b32.xlu0 %v1399, 28
      %v1441 = vpop.permute.xlu0 %1440
      %1442 = vrot.lane.b32.xlu0 %v1400, 28
      %v1443 = vpop.permute.xlu0 %1442
      %1444 = vrot.lane.b32.xlu0 %v1401, 28
      %v1445 = vpop.permute.xlu0 %1444
      %1446 = vrot.lane.b32.xlu0 %v1402, 28
      %v1447 = vpop.permute.xlu0 %1446
      %1448 = vrot.lane.b32.xlu0 %v1403, 28
      %v1449 = vpop.permute.xlu0 %1448
      %1450 = vrot.lane.b32.xlu0 %v1404, 28
      %v1451 = vpop.permute.xlu0 %1450
      %1452 = vrot.lane.b32.xlu0 %v1405, 28
      %v1453 = vpop.permute.xlu0 %1452
      %vm1470 = vcmask 261344
      %1471 = vst.msk [vmem:[#allocation3] sm:$0xff] %vm1470, %v1423
      %1472 = vst.msk [vmem:[#allocation3 + $0x8] sm:$0xff] %vm1470, %v1425
      %1473 = vst.msk [vmem:[#allocation3 + $0x10] sm:$0xff] %vm1470, %v1427
      %1474 = vst.msk [vmem:[#allocation3 + $0x18] sm:$0xff] %vm1470, %v1429
      %1475 = vst.msk [vmem:[#allocation3 + $0x20] sm:$0xff] %vm1470, %v1431
      %1476 = vst.msk [vmem:[#allocation3 + $0x28] sm:$0xff] %vm1470, %v1433
      %1477 = vst.msk [vmem:[#allocation3 + $0x30] sm:$0xff] %vm1470, %v1435
      %1478 = vst.msk [vmem:[#allocation3 + $0x38] sm:$0xff] %vm1470, %v1437
      %1479 = vst.msk [vmem:[#allocation3 + $0x40] sm:$0xff] %vm1470, %v1439
      %1480 = vst.msk [vmem:[#allocation3 + $0x48] sm:$0xff] %vm1470, %v1441
      %1481 = vst.msk [vmem:[#allocation3 + $0x50] sm:$0xff] %vm1470, %v1443
      %1482 = vst.msk [vmem:[#allocation3 + $0x58] sm:$0xff] %vm1470, %v1445
      %1483 = vst.msk [vmem:[#allocation3 + $0x60] sm:$0xff] %vm1470, %v1447
      %1484 = vst.msk [vmem:[#allocation3 + $0x68] sm:$0xff] %vm1470, %v1449
      %1485 = vst.msk [vmem:[#allocation3 + $0x70] sm:$0xff] %vm1470, %v1451
      %1486 = vst.msk [vmem:[#allocation3 + $0x78] sm:$0xff] %vm1470, %v1453
      %v1487 = vld [vmem:[%s1228 + $0x9] sm:$0xff]
      %v1488 = vld [vmem:[%s1228 + $0x11] sm:$0xff]
      %v1489 = vld [vmem:[%s1228 + $0x29] sm:$0xff]
      %v1490 = vld [vmem:[%s1228 + $0x31] sm:$0xff]
      %v1491 = vld [vmem:[%s1228 + $0x49] sm:$0xff]
      %v1492 = vld [vmem:[%s1228 + $0x51] sm:$0xff]
      %v1493 = vld [vmem:[%s1228 + $0x69] sm:$0xff]
      %v1494 = vld [vmem:[%s1228 + $0x71] sm:$0xff]
      %v1495 = vld [vmem:[%s1228 + $0x89] sm:$0xff]
      %v1496 = vld [vmem:[%s1228 + $0x91] sm:$0xff]
      %v1497 = vld [vmem:[%s1228 + $0xa9] sm:$0xff]
      %v1498 = vld [vmem:[%s1228 + $0xb1] sm:$0xff]
      %v1499 = vld [vmem:[%s1228 + $0xc9] sm:$0xff]
      %v1500 = vld [vmem:[%s1228 + $0xd1] sm:$0xff]
      %v1501 = vld [vmem:[%s1228 + $0xe9] sm:$0xff]
      %v1502 = vld [vmem:[%s1228 + $0xf1] sm:$0xff]
      %v1503 = vld [vmem:[%s1228 + $0x109] sm:$0xff]
      %v1504 = vld [vmem:[%s1228 + $0x111] sm:$0xff]
      %v1505 = vld [vmem:[%s1228 + $0x129] sm:$0xff]
      %v1506 = vld [vmem:[%s1228 + $0x131] sm:$0xff]
      %v1507 = vld [vmem:[%s1228 + $0x149] sm:$0xff]
      %v1508 = vld [vmem:[%s1228 + $0x151] sm:$0xff]
      %v1509 = vld [vmem:[%s1228 + $0x169] sm:$0xff]
      %v1510 = vld [vmem:[%s1228 + $0x171] sm:$0xff]
      %v1511 = vld [vmem:[%s1228 + $0x189] sm:$0xff]
      %v1512 = vld [vmem:[%s1228 + $0x191] sm:$0xff]
      %v1513 = vld [vmem:[%s1228 + $0x1a9] sm:$0xff]
      %v1514 = vld [vmem:[%s1228 + $0x1b1] sm:$0xff]
      %v1515 = vld [vmem:[%s1228 + $0x1c9] sm:$0xff]
      %v1516 = vld [vmem:[%s1228 + $0x1d1] sm:$0xff]
      %v1517 = vld [vmem:[%s1228 + $0x1e9] sm:$0xff]
      %v1518 = vld [vmem:[%s1228 + $0x1f1] sm:$0xff]
      %v1519 = vpack.c.bf16 %v1488, %v1487
      %v1520 = vpack.c.bf16 %v1490, %v1489
      %v1521 = vpack.c.bf16 %v1492, %v1491
      %v1522 = vpack.c.bf16 %v1494, %v1493
      %v1523 = vpack.c.bf16 %v1496, %v1495
      %v1524 = vpack.c.bf16 %v1498, %v1497
      %v1525 = vpack.c.bf16 %v1500, %v1499
      %v1526 = vpack.c.bf16 %v1502, %v1501
      %v1527 = vpack.c.bf16 %v1504, %v1503
      %v1528 = vpack.c.bf16 %v1506, %v1505
      %v1529 = vpack.c.bf16 %v1508, %v1507
      %v1530 = vpack.c.bf16 %v1510, %v1509
      %v1531 = vpack.c.bf16 %v1512, %v1511
      %v1532 = vpack.c.bf16 %v1514, %v1513
      %v1533 = vpack.c.bf16 %v1516, %v1515
      %v1534 = vpack.c.bf16 %v1518, %v1517
      %1551 = vrot.lane.b32.xlu0 %v1519, 32
      %v1552 = vpop.permute.xlu0 %1551
      %1553 = vrot.lane.b32.xlu0 %v1520, 32
      %v1554 = vpop.permute.xlu0 %1553
      %1555 = vrot.lane.b32.xlu0 %v1521, 32
      %v1556 = vpop.permute.xlu0 %1555
      %1557 = vrot.lane.b32.xlu0 %v1522, 32
      %v1558 = vpop.permute.xlu0 %1557
      %1559 = vrot.lane.b32.xlu0 %v1523, 32
      %v1560 = vpop.permute.xlu0 %1559
      %1561 = vrot.lane.b32.xlu0 %v1524, 32
      %v1562 = vpop.permute.xlu0 %1561
      %1563 = vrot.lane.b32.xlu0 %v1525, 32
      %v1564 = vpop.permute.xlu0 %1563
      %1565 = vrot.lane.b32.xlu0 %v1526, 32
      %v1566 = vpop.permute.xlu0 %1565
      %1567 = vrot.lane.b32.xlu0 %v1527, 32
      %v1568 = vpop.permute.xlu0 %1567
      %1569 = vrot.lane.b32.xlu0 %v1528, 32
      %v1570 = vpop.permute.xlu0 %1569
      %1571 = vrot.lane.b32.xlu0 %v1529, 32
      %v1572 = vpop.permute.xlu0 %1571
      %1573 = vrot.lane.b32.xlu0 %v1530, 32
      %v1574 = vpop.permute.xlu0 %1573
      %1575 = vrot.lane.b32.xlu0 %v1531, 32
      %v1576 = vpop.permute.xlu0 %1575
      %1577 = vrot.lane.b32.xlu0 %v1532, 32
      %v1578 = vpop.permute.xlu0 %1577
      %1579 = vrot.lane.b32.xlu0 %v1533, 32
      %v1580 = vpop.permute.xlu0 %1579
      %1581 = vrot.lane.b32.xlu0 %v1534, 32
      %v1582 = vpop.permute.xlu0 %1581
      %vm1599 = vcmask 294144
      %1600 = vst.msk [vmem:[#allocation3] sm:$0xff] %vm1599, %v1552
      %1601 = vst.msk [vmem:[#allocation3 + $0x8] sm:$0xff] %vm1599, %v1554
      %1602 = vst.msk [vmem:[#allocation3 + $0x10] sm:$0xff] %vm1599, %v1556
      %1603 = vst.msk [vmem:[#allocation3 + $0x18] sm:$0xff] %vm1599, %v1558
      %1604 = vst.msk [vmem:[#allocation3 + $0x20] sm:$0xff] %vm1599, %v1560
      %1605 = vst.msk [vmem:[#allocation3 + $0x28] sm:$0xff] %vm1599, %v1562
      %1606 = vst.msk [vmem:[#allocation3 + $0x30] sm:$0xff] %vm1599, %v1564
      %1607 = vst.msk [vmem:[#allocation3 + $0x38] sm:$0xff] %vm1599, %v1566
      %1608 = vst.msk [vmem:[#allocation3 + $0x40] sm:$0xff] %vm1599, %v1568
      %1609 = vst.msk [vmem:[#allocation3 + $0x48] sm:$0xff] %vm1599, %v1570
      %1610 = vst.msk [vmem:[#allocation3 + $0x50] sm:$0xff] %vm1599, %v1572
      %1611 = vst.msk [vmem:[#allocation3 + $0x58] sm:$0xff] %vm1599, %v1574
      %1612 = vst.msk [vmem:[#allocation3 + $0x60] sm:$0xff] %vm1599, %v1576
      %1613 = vst.msk [vmem:[#allocation3 + $0x68] sm:$0xff] %vm1599, %v1578
      %1614 = vst.msk [vmem:[#allocation3 + $0x70] sm:$0xff] %vm1599, %v1580
      %1615 = vst.msk [vmem:[#allocation3 + $0x78] sm:$0xff] %vm1599, %v1582
      %v1616 = vld [vmem:[#allocation3] sm:$0xff]
      %v1617 = vld [vmem:[#allocation3 + $0x8] sm:$0xff]
      %v1618 = vld [vmem:[#allocation3 + $0x10] sm:$0xff]
      %v1619 = vld [vmem:[#allocation3 + $0x18] sm:$0xff]
      %v1620 = vld [vmem:[#allocation3 + $0x20] sm:$0xff]
      %v1621 = vld [vmem:[#allocation3 + $0x28] sm:$0xff]
      %v1622 = vld [vmem:[#allocation3 + $0x30] sm:$0xff]
      %v1623 = vld [vmem:[#allocation3 + $0x38] sm:$0xff]
      %v1624 = vld [vmem:[#allocation3 + $0x40] sm:$0xff]
      %v1625 = vld [vmem:[#allocation3 + $0x48] sm:$0xff]
      %v1626 = vld [vmem:[#allocation3 + $0x50] sm:$0xff]
      %v1627 = vld [vmem:[#allocation3 + $0x58] sm:$0xff]
      %v1628 = vld [vmem:[#allocation3 + $0x60] sm:$0xff]
      %v1629 = vld [vmem:[#allocation3 + $0x68] sm:$0xff]
      %v1630 = vld [vmem:[#allocation3 + $0x70] sm:$0xff]
      %v1631 = vld [vmem:[#allocation3 + $0x78] sm:$0xff]
      %v1632 = vld [vmem:[%s3] sm:$0xf]
      %v1633 = vld [vmem:[%s3 + $0x4] sm:$0xf]
      %v1634 = vld [vmem:[%s3 + $0x8] sm:$0xf]
      %v1635 = vld [vmem:[%s3 + $0xc] sm:$0xf]
      %v1636 = vld [vmem:[%s3 + $0x10] sm:$0x3]
      %v1642 = vunpack.c.l.b16 %v1632
      %v1643 = vunpack.c.l.b16 %v1633
      %v1644 = vunpack.c.l.b16 %v1634
      %v1645 = vunpack.c.l.b16 %v1635
      %v1646 = vunpack.c.l.b16 %v1636
      %v1647 = vpack.c.b16 %v1643, %v1642
      %v1648 = vpack.c.b16 %v1645, %v1644
      %v1649 = vpack.c.b16 %v1646, %v1646
      %vm1652 = vcmask 293888
      %v1654 = vsel %vm1652, %v1616, 0
      %v1657 = vsel %vm1652, %v1617, 0
      %v1660 = vsel %vm1652, %v1618, 0
      %v1663 = vsel %vm1652, %v1619, 0
      %v1666 = vsel %vm1652, %v1620, 0
      %v1669 = vsel %vm1652, %v1621, 0
      %v1672 = vsel %vm1652, %v1622, 0
      %v1675 = vsel %vm1652, %v1623, 0
      %v1678 = vsel %vm1652, %v1624, 0
      %v1681 = vsel %vm1652, %v1625, 0
      %v1684 = vsel %vm1652, %v1626, 0
      %v1687 = vsel %vm1652, %v1627, 0
      %v1690 = vsel %vm1652, %v1628, 0
      %v1693 = vsel %vm1652, %v1629, 0
      %v1696 = vsel %vm1652, %v1630, 0
      %v1699 = vsel %vm1652, %v1631, 0
      %vm1701 = vcmask 1041408
      %v1703 = vsel %vm1701, %v1649, 0
      %1705 = vmatprep.subr.bf16.mxu0 0
      %1706 = vmatpush1.bf16.msra.mxu0 %v1647
      %1707 = vmatprep.subr.bf16.mxu0 0
      %1708 = vmatpush1.bf16.msra.mxu0 %v1648
      %1709 = vmatprep.subr.bf16.mxu0 0
      %1710 = vmatpush1.bf16.msra.mxu0 %v1703
      %1711 = vmatprep.subr.bf16.mxu0 0
      %1712 = vmatpush1.bf16.msra.mxu0 0
      %1713 = vmatprep.subr.bf16.mxu0 0
      %1714 = vmatpush1.bf16.msra.mxu0 0
      %1715 = vmatprep.subr.bf16.mxu0 0
      %1716 = vmatpush1.bf16.msra.mxu0 0
      %1717 = vmatprep.subr.bf16.mxu0 0
      %1718 = vmatpush1.bf16.msra.mxu0 0
      %1719 = vmatprep.subr.bf16.mxu0 0
      %1720 = vmatpush1.bf16.msra.mxu0 0
      %1721 = vmatprep.subr.bf16.mxu0 0
      %1722 = vmatpush1.bf16.msra.mxu0 0
      %1723 = vmatprep.subr.bf16.mxu0 0
      %1724 = vmatpush1.bf16.msra.mxu0 0
      %1725 = vmatprep.subr.bf16.mxu0 0
      %1726 = vmatpush1.bf16.msra.mxu0 0
      %1727 = vmatprep.subr.bf16.mxu0 0
      %1728 = vmatpush1.bf16.msra.mxu0 0
      %1729 = vmatprep.subr.bf16.mxu0 0
      %1730 = vmatpush1.bf16.msra.mxu0 0
      %1731 = vmatprep.subr.bf16.mxu0 0
      %1732 = vmatpush1.bf16.msra.mxu0 0
      %1733 = vmatprep.subr.bf16.mxu0 0
      %1734 = vmatpush1.bf16.msra.mxu0 0
      %1735 = vmatprep.subr.bf16.mxu0 0
      %1736 = vmatpush1.bf16.msra.mxu0 0
      %1737 = vmatprep.mubr.bf16.mxu0 0
      %1738 = vmatmul.mubr.bf16.gmra.mrb[0].mxu0 %v1654
      %v1739 = vpop.f32.mrb[0].mxu0
      %v1740 = vadd.f32 0.0, %v1739
      %v1741 = vpop.f32.mrb[0].mxu0
      %v1742 = vpop.f32.mrb[0].mxu0
      %v1743 = vadd.f32 0.0, %v1742
      %v1744 = vpop.f32.mrb[0].mxu0
      %1745 = vmatprep.mubr.bf16.mxu0 0
      %1746 = vmatmul.mubr.bf16.gmra.mrb[0].mxu0 %v1657
      %v1747 = vpop.f32.mrb[0].mxu0
      %v1748 = vadd.f32 0.0, %v1747
      %v1749 = vpop.f32.mrb[0].mxu0
      %v1750 = vpop.f32.mrb[0].mxu0
      %v1751 = vadd.f32 0.0, %v1750
      %v1752 = vpop.f32.mrb[0].mxu0
      %1753 = vmatprep.mubr.bf16.mxu0 0
      %1754 = vmatmul.mubr.bf16.gmra.mrb[0].mxu0 %v1660
      %v1755 = vpop.f32.mrb[0].mxu0
      %v1756 = vadd.f32 0.0, %v1755
      %v1757 = vpop.f32.mrb[0].mxu0
      %v1758 = vpop.f32.mrb[0].mxu0
      %v1759 = vadd.f32 0.0, %v1758
      %v1760 = vpop.f32.mrb[0].mxu0
      %1761 = vmatprep.mubr.bf16.mxu0 0
      %1762 = vmatmul.mubr.bf16.gmra.mrb[0].mxu0 %v1663
      %v1763 = vpop.f32.mrb[0].mxu0
      %v1764 = vadd.f32 0.0, %v1763
      %v1765 = vpop.f32.mrb[0].mxu0
      %v1766 = vpop.f32.mrb[0].mxu0
      %v1767 = vadd.f32 0.0, %v1766
      %v1768 = vpop.f32.mrb[0].mxu0
      %1769 = vmatprep.mubr.bf16.mxu0 0
      %1770 = vmatmul.mubr.bf16.gmra.mrb[0].mxu0 %v1666
      %v1771 = vpop.f32.mrb[0].mxu0
      %v1772 = vadd.f32 0.0, %v1771
      %v1773 = vpop.f32.mrb[0].mxu0
      %v1774 = vpop.f32.mrb[0].mxu0
      %v1775 = vadd.f32 0.0, %v1774
      %v1776 = vpop.f32.mrb[0].mxu0
      %1777 = vmatprep.mubr.bf16.mxu0 0
      %1778 = vmatmul.mubr.bf16.gmra.mrb[0].mxu0 %v1669
      %v1779 = vpop.f32.mrb[0].mxu0
      %v1780 = vadd.f32 0.0, %v1779
      %v1781 = vpop.f32.mrb[0].mxu0
      %v1782 = vpop.f32.mrb[0].mxu0
      %v1783 = vadd.f32 0.0, %v1782
      %v1784 = vpop.f32.mrb[0].mxu0
      %1785 = vmatprep.mubr.bf16.mxu0 0
      %1786 = vmatmul.mubr.bf16.gmra.mrb[0].mxu0 %v1672
      %v1787 = vpop.f32.mrb[0].mxu0
      %v1788 = vadd.f32 0.0, %v1787
      %v1789 = vpop.f32.mrb[0].mxu0
      %v1790 = vpop.f32.mrb[0].mxu0
      %v1791 = vadd.f32 0.0, %v1790
      %v1792 = vpop.f32.mrb[0].mxu0
      %1793 = vmatprep.mubr.bf16.mxu0 0
      %1794 = vmatmul.mubr.bf16.gmra.mrb[0].mxu0 %v1675
      %v1795 = vpop.f32.mrb[0].mxu0
      %v1796 = vadd.f32 0.0, %v1795
      %v1797 = vpop.f32.mrb[0].mxu0
      %v1798 = vpop.f32.mrb[0].mxu0
      %v1799 = vadd.f32 0.0, %v1798
      %v1800 = vpop.f32.mrb[0].mxu0
      %1801 = vmatprep.mubr.bf16.mxu0 0
      %1802 = vmatmul.mubr.bf16.gmra.mrb[0].mxu0 %v1678
      %v1803 = vpop.f32.mrb[0].mxu0
      %v1804 = vadd.f32 0.0, %v1803
      %v1805 = vpop.f32.mrb[0].mxu0
      %v1806 = vpop.f32.mrb[0].mxu0
      %v1807 = vadd.f32 0.0, %v1806
      %v1808 = vpop.f32.mrb[0].mxu0
      %1809 = vmatprep.mubr.bf16.mxu0 0
      %1810 = vmatmul.mubr.bf16.gmra.mrb[0].mxu0 %v1681
      %v1811 = vpop.f32.mrb[0].mxu0
      %v1812 = vadd.f32 0.0, %v1811
      %v1813 = vpop.f32.mrb[0].mxu0
      %v1814 = vpop.f32.mrb[0].mxu0
      %v1815 = vadd.f32 0.0, %v1814
      %v1816 = vpop.f32.mrb[0].mxu0
      %1817 = vmatprep.mubr.bf16.mxu0 0
      %1818 = vmatmul.mubr.bf16.gmra.mrb[0].mxu0 %v1684
      %v1819 = vpop.f32.mrb[0].mxu0
      %v1820 = vadd.f32 0.0, %v1819
      %v1821 = vpop.f32.mrb[0].mxu0
      %v1822 = vpop.f32.mrb[0].mxu0
      %v1823 = vadd.f32 0.0, %v1822
      %v1824 = vpop.f32.mrb[0].mxu0
      %1825 = vmatprep.mubr.bf16.mxu0 0
      %1826 = vmatmul.mubr.bf16.gmra.mrb[0].mxu0 %v1687
      %v1827 = vpop.f32.mrb[0].mxu0
      %v1828 = vadd.f32 0.0, %v1827
      %v1829 = vpop.f32.mrb[0].mxu0
      %v1830 = vpop.f32.mrb[0].mxu0
      %v1831 = vadd.f32 0.0, %v1830
      %v1832 = vpop.f32.mrb[0].mxu0
      %1833 = vmatprep.mubr.bf16.mxu0 0
      %1834 = vmatmul.mubr.bf16.gmra.mrb[0].mxu0 %v1690
      %v1835 = vpop.f32.mrb[0].mxu0
      %v1836 = vadd.f32 0.0, %v1835
      %v1837 = vpop.f32.mrb[0].mxu0
      %v1838 = vpop.f32.mrb[0].mxu0
      %v1839 = vadd.f32 0.0, %v1838
      %v1840 = vpop.f32.mrb[0].mxu0
      %1841 = vmatprep.mubr.bf16.mxu0 0
      %1842 = vmatmul.mubr.bf16.gmra.mrb[0].mxu0 %v1693
      %v1843 = vpop.f32.mrb[0].mxu0
      %v1844 = vadd.f32 0.0, %v1843
      %v1845 = vpop.f32.mrb[0].mxu0
      %v1846 = vpop.f32.mrb[0].mxu0
      %v1847 = vadd.f32 0.0, %v1846
      %v1848 = vpop.f32.mrb[0].mxu0
      %1849 = vmatprep.mubr.bf16.mxu0 0
      %1850 = vmatmul.mubr.bf16.gmra.mrb[0].mxu0 %v1696
      %v1851 = vpop.f32.mrb[0].mxu0
      %v1852 = vadd.f32 0.0, %v1851
      %v1853 = vpop.f32.mrb[0].mxu0
      %v1854 = vpop.f32.mrb[0].mxu0
      %v1855 = vadd.f32 0.0, %v1854
      %v1856 = vpop.f32.mrb[0].mxu0
      %1857 = vmatprep.mubr.bf16.mxu0 0
      %1858 = vmatmul.mubr.bf16.gmra.mrb[0].mxu0 %v1699
      %v1859 = vpop.f32.mrb[0].mxu0
      %v1860 = vadd.f32 0.0, %v1859
      %v1861 = vpop.f32.mrb[0].mxu0
      %v1862 = vpop.f32.mrb[0].mxu0
      %v1863 = vadd.f32 0.0, %v1862
      %v1864 = vpop.f32.mrb[0].mxu0
      %1865 = vdwg.mxu0
      %v1866 = vpack.c.bf16 %v1743, %v1740
      %v1867 = vpack.c.bf16 %v1751, %v1748
      %v1868 = vpack.c.bf16 %v1759, %v1756
      %v1869 = vpack.c.bf16 %v1767, %v1764
      %v1870 = vpack.c.bf16 %v1775, %v1772
      %v1871 = vpack.c.bf16 %v1783, %v1780
      %v1872 = vpack.c.bf16 %v1791, %v1788
      %v1873 = vpack.c.bf16 %v1799, %v1796
      %v1874 = vpack.c.bf16 %v1807, %v1804
      %v1875 = vpack.c.bf16 %v1815, %v1812
      %v1876 = vpack.c.bf16 %v1823, %v1820
      %v1877 = vpack.c.bf16 %v1831, %v1828
      %v1878 = vpack.c.bf16 %v1839, %v1836
      %v1879 = vpack.c.bf16 %v1847, %v1844
      %v1880 = vpack.c.bf16 %v1855, %v1852
      %v1881 = vpack.c.bf16 %v1863, %v1860
      %v1898 = vunpack.c.l.b16 %v1866
      %v1899 = vunpack.c.h.b16 %v1866
      %v1900 = vunpack.c.l.b16 %v1867
      %v1901 = vunpack.c.h.b16 %v1867
      %v1902 = vunpack.c.l.b16 %v1868
      %v1903 = vunpack.c.h.b16 %v1868
      %v1904 = vunpack.c.l.b16 %v1869
      %v1905 = vunpack.c.h.b16 %v1869
      %v1906 = vunpack.c.l.b16 %v1870
      %v1907 = vunpack.c.h.b16 %v1870
      %v1908 = vunpack.c.l.b16 %v1871
      %v1909 = vunpack.c.h.b16 %v1871
      %v1910 = vunpack.c.l.b16 %v1872
      %v1911 = vunpack.c.h.b16 %v1872
      %v1912 = vunpack.c.l.b16 %v1873
      %v1913 = vunpack.c.h.b16 %v1873
      %v1914 = vunpack.c.l.b16 %v1874
      %v1915 = vunpack.c.h.b16 %v1874
      %v1916 = vunpack.c.l.b16 %v1875
      %v1917 = vunpack.c.h.b16 %v1875
      %v1918 = vunpack.c.l.b16 %v1876
      %v1919 = vunpack.c.h.b16 %v1876
      %v1920 = vunpack.c.l.b16 %v1877
      %v1921 = vunpack.c.h.b16 %v1877
      %v1922 = vunpack.c.l.b16 %v1878
      %v1923 = vunpack.c.h.b16 %v1878
      %v1924 = vunpack.c.l.b16 %v1879
      %v1925 = vunpack.c.h.b16 %v1879
      %v1926 = vunpack.c.l.b16 %v1880
      %v1927 = vunpack.c.h.b16 %v1880
      %v1928 = vunpack.c.l.b16 %v1881
      %v1929 = vunpack.c.h.b16 %v1881
      %v1930 = vpack.c.b16 %v1898, %v1898
      %v1931 = vpack.c.b16 %v1899, %v1899
      %v1932 = vpack.c.b16 %v1900, %v1900
      %v1933 = vpack.c.b16 %v1901, %v1901
      %v1934 = vpack.c.b16 %v1902, %v1902
      %v1935 = vpack.c.b16 %v1903, %v1903
      %v1936 = vpack.c.b16 %v1904, %v1904
      %v1937 = vpack.c.b16 %v1905, %v1905
      %v1938 = vpack.c.b16 %v1906, %v1906
      %v1939 = vpack.c.b16 %v1907, %v1907
      %v1940 = vpack.c.b16 %v1908, %v1908
      %v1941 = vpack.c.b16 %v1909, %v1909
      %v1942 = vpack.c.b16 %v1910, %v1910
      %v1943 = vpack.c.b16 %v1911, %v1911
      %v1944 = vpack.c.b16 %v1912, %v1912
      %v1945 = vpack.c.b16 %v1913, %v1913
      %v1946 = vpack.c.b16 %v1914, %v1914
      %v1947 = vpack.c.b16 %v1915, %v1915
      %v1948 = vpack.c.b16 %v1916, %v1916
      %v1949 = vpack.c.b16 %v1917, %v1917
      %v1950 = vpack.c.b16 %v1918, %v1918
      %v1951 = vpack.c.b16 %v1919, %v1919
      %v1952 = vpack.c.b16 %v1920, %v1920
      %v1953 = vpack.c.b16 %v1921, %v1921
      %v1954 = vpack.c.b16 %v1922, %v1922
      %v1955 = vpack.c.b16 %v1923, %v1923
      %v1956 = vpack.c.b16 %v1924, %v1924
      %v1957 = vpack.c.b16 %v1925, %v1925
      %v1958 = vpack.c.b16 %v1926, %v1926
      %v1959 = vpack.c.b16 %v1927, %v1927
      %v1960 = vpack.c.b16 %v1928, %v1928
      %v1961 = vpack.c.b16 %v1929, %v1929
      %vm1994 = vcmask 27648
      %1995 = vst.msk [vmem:[%s262] sm:$0xf] %vm1994, %v1930
      %1996 = vst.msk [vmem:[%s262 + $0x4] sm:$0xf] %vm1994, %v1931
      %1997 = vst.msk [vmem:[%s262 + $0x8] sm:$0xf] %vm1994, %v1932
      %1998 = vst.msk [vmem:[%s262 + $0xc] sm:$0xf] %vm1994, %v1933
      %1999 = vst.msk [vmem:[%s262 + $0x10] sm:$0xf] %vm1994, %v1934
      %2000 = vst.msk [vmem:[%s262 + $0x14] sm:$0xf] %vm1994, %v1935
      %2001 = vst.msk [vmem:[%s262 + $0x18] sm:$0xf] %vm1994, %v1936
      %2002 = vst.msk [vmem:[%s262 + $0x1c] sm:$0xf] %vm1994, %v1937
      %2003 = vst.msk [vmem:[%s262 + $0x20] sm:$0xf] %vm1994, %v1938
      %2004 = vst.msk [vmem:[%s262 + $0x24] sm:$0xf] %vm1994, %v1939
      %2005 = vst.msk [vmem:[%s262 + $0x28] sm:$0xf] %vm1994, %v1940
      %2006 = vst.msk [vmem:[%s262 + $0x2c] sm:$0xf] %vm1994, %v1941
      %2007 = vst.msk [vmem:[%s262 + $0x30] sm:$0xf] %vm1994, %v1942
      %2008 = vst.msk [vmem:[%s262 + $0x34] sm:$0xf] %vm1994, %v1943
      %2009 = vst.msk [vmem:[%s262 + $0x38] sm:$0xf] %vm1994, %v1944
      %2010 = vst.msk [vmem:[%s262 + $0x3c] sm:$0xf] %vm1994, %v1945
      %2011 = vst.msk [vmem:[%s262 + $0x40] sm:$0xf] %vm1994, %v1946
      %2012 = vst.msk [vmem:[%s262 + $0x44] sm:$0xf] %vm1994, %v1947
      %2013 = vst.msk [vmem:[%s262 + $0x48] sm:$0xf] %vm1994, %v1948
      %2014 = vst.msk [vmem:[%s262 + $0x4c] sm:$0xf] %vm1994, %v1949
      %2015 = vst.msk [vmem:[%s262 + $0x50] sm:$0xf] %vm1994, %v1950
      %2016 = vst.msk [vmem:[%s262 + $0x54] sm:$0xf] %vm1994, %v1951
      %2017 = vst.msk [vmem:[%s262 + $0x58] sm:$0xf] %vm1994, %v1952
      %2018 = vst.msk [vmem:[%s262 + $0x5c] sm:$0xf] %vm1994, %v1953
      %2019 = vst.msk [vmem:[%s262 + $0x60] sm:$0xf] %vm1994, %v1954
      %2020 = vst.msk [vmem:[%s262 + $0x64] sm:$0xf] %vm1994, %v1955
      %2021 = vst.msk [vmem:[%s262 + $0x68] sm:$0xf] %vm1994, %v1956
      %2022 = vst.msk [vmem:[%s262 + $0x6c] sm:$0xf] %vm1994, %v1957
      %2023 = vst.msk [vmem:[%s262 + $0x70] sm:$0xf] %vm1994, %v1958
      %2024 = vst.msk [vmem:[%s262 + $0x74] sm:$0xf] %vm1994, %v1959
      %2025 = vst.msk [vmem:[%s262 + $0x78] sm:$0xf] %vm1994, %v1960
      %2026 = vst.msk [vmem:[%s262 + $0x7c] sm:$0xf] %vm1994, %v1961
      %v2027 = vsel %vm444, %v1740, 0.0
      %v2028 = vsel %vm444, %v1743, 0.0
      %v2029 = vadd.f32 %v2027, %v2028
      %v2030 = vsel %vm444, %v1748, 0.0
      %v2031 = vadd.f32 %v2029, %v2030
      %v2032 = vsel %vm444, %v1751, 0.0
      %v2033 = vadd.f32 %v2031, %v2032
      %v2034 = vsel %vm444, %v1756, 0.0
      %v2035 = vadd.f32 %v2033, %v2034
      %v2036 = vsel %vm444, %v1759, 0.0
      %v2037 = vadd.f32 %v2035, %v2036
      %v2038 = vsel %vm444, %v1764, 0.0
      %v2039 = vadd.f32 %v2037, %v2038
      %v2040 = vsel %vm444, %v1767, 0.0
      %v2041 = vadd.f32 %v2039, %v2040
      %v2042 = vsel %vm444, %v1772, 0.0
      %v2043 = vadd.f32 %v2041, %v2042
      %v2044 = vsel %vm444, %v1775, 0.0
      %v2045 = vadd.f32 %v2043, %v2044
      %v2046 = vsel %vm444, %v1780, 0.0
      %v2047 = vadd.f32 %v2045, %v2046
      %v2048 = vsel %vm444, %v1783, 0.0
      %v2049 = vadd.f32 %v2047, %v2048
      %v2050 = vsel %vm444, %v1788, 0.0
      %v2051 = vadd.f32 %v2049, %v2050
      %v2052 = vsel %vm444, %v1791, 0.0
      %v2053 = vadd.f32 %v2051, %v2052
      %v2054 = vsel %vm444, %v1796, 0.0
      %v2055 = vadd.f32 %v2053, %v2054
      %v2056 = vsel %vm444, %v1799, 0.0
      %v2057 = vadd.f32 %v2055, %v2056
      %v2058 = vsel %vm444, %v1804, 0.0
      %v2059 = vadd.f32 %v2057, %v2058
      %v2060 = vsel %vm444, %v1807, 0.0
      %v2061 = vadd.f32 %v2059, %v2060
      %v2062 = vsel %vm444, %v1812, 0.0
      %v2063 = vadd.f32 %v2061, %v2062
      %v2064 = vsel %vm444, %v1815, 0.0
      %v2065 = vadd.f32 %v2063, %v2064
      %v2066 = vsel %vm444, %v1820, 0.0
      %v2067 = vadd.f32 %v2065, %v2066
      %v2068 = vsel %vm444, %v1823, 0.0
      %v2069 = vadd.f32 %v2067, %v2068
      %v2070 = vsel %vm444, %v1828, 0.0
      %v2071 = vadd.f32 %v2069, %v2070
      %v2072 = vsel %vm444, %v1831, 0.0
      %v2073 = vadd.f32 %v2071, %v2072
      %v2074 = vsel %vm444, %v1836, 0.0
      %v2075 = vadd.f32 %v2073, %v2074
      %v2076 = vsel %vm444, %v1839, 0.0
      %v2077 = vadd.f32 %v2075, %v2076
      %v2078 = vsel %vm444, %v1844, 0.0
      %v2079 = vadd.f32 %v2077, %v2078
      %v2080 = vsel %vm444, %v1847, 0.0
      %v2081 = vadd.f32 %v2079, %v2080
      %v2082 = vsel %vm444, %v1852, 0.0
      %v2083 = vadd.f32 %v2081, %v2082
      %v2084 = vsel %vm444, %v1855, 0.0
      %v2085 = vadd.f32 %v2083, %v2084
      %v2086 = vsel %vm444, %v1860, 0.0
      %v2087 = vadd.f32 %v2085, %v2086
      %v2088 = vsel %vm444, %v1863, 0.0
      %v2089 = vadd.f32 %v2087, %v2088
      %v2090 = vrot.slane %v2089, 4
      %v2091 = vadd.f32 %v2089, %v2090
      %v2092 = vrot.slane %v2091, 2
      %v2093 = vadd.f32 %v2091, %v2092
      %v2094 = vrot.slane %v2093, 1
      %v2095 = vadd.f32 %v2093, %v2094
      %vm2096 = vcmask 24576
      %2097 = vst.msk [vmem:[%s265] sm:$0x1] %vm2096, %v2095
      %v2098 = vmul.f32 %v1740, %v1740
      %v2099 = vmul.f32 %v1743, %v1743
      %v2100 = vmul.f32 %v1748, %v1748
      %v2101 = vmul.f32 %v1751, %v1751
      %v2102 = vmul.f32 %v1756, %v1756
      %v2103 = vmul.f32 %v1759, %v1759
      %v2104 = vmul.f32 %v1764, %v1764
      %v2105 = vmul.f32 %v1767, %v1767
      %v2106 = vmul.f32 %v1772, %v1772
      %v2107 = vmul.f32 %v1775, %v1775
      %v2108 = vmul.f32 %v1780, %v1780
      %v2109 = vmul.f32 %v1783, %v1783
      %v2110 = vmul.f32 %v1788, %v1788
      %v2111 = vmul.f32 %v1791, %v1791
      %v2112 = vmul.f32 %v1796, %v1796
      %v2113 = vmul.f32 %v1799, %v1799
      %v2114 = vmul.f32 %v1804, %v1804
      %v2115 = vmul.f32 %v1807, %v1807
      %v2116 = vmul.f32 %v1812, %v1812
      %v2117 = vmul.f32 %v1815, %v1815
      %v2118 = vmul.f32 %v1820, %v1820
      %v2119 = vmul.f32 %v1823, %v1823
      %v2120 = vmul.f32 %v1828, %v1828
      %v2121 = vmul.f32 %v1831, %v1831
      %v2122 = vmul.f32 %v1836, %v1836
      %v2123 = vmul.f32 %v1839, %v1839
      %v2124 = vmul.f32 %v1844, %v1844
      %v2125 = vmul.f32 %v1847, %v1847
      %v2126 = vmul.f32 %v1852, %v1852
      %v2127 = vmul.f32 %v1855, %v1855
      %v2128 = vmul.f32 %v1860, %v1860
      %v2129 = vmul.f32 %v1863, %v1863
      %v2130 = vsel %vm444, %v2098, 0.0
      %v2131 = vsel %vm444, %v2099, 0.0
      %v2132 = vadd.f32 %v2130, %v2131
      %v2133 = vsel %vm444, %v2100, 0.0
      %v2134 = vadd.f32 %v2132, %v2133
      %v2135 = vsel %vm444, %v2101, 0.0
      %v2136 = vadd.f32 %v2134, %v2135
      %v2137 = vsel %vm444, %v2102, 0.0
      %v2138 = vadd.f32 %v2136, %v2137
      %v2139 = vsel %vm444, %v2103, 0.0
      %v2140 = vadd.f32 %v2138, %v2139
      %v2141 = vsel %vm444, %v2104, 0.0
      %v2142 = vadd.f32 %v2140, %v2141
      %v2143 = vsel %vm444, %v2105, 0.0
      %v2144 = vadd.f32 %v2142, %v2143
      %v2145 = vsel %vm444, %v2106, 0.0
      %v2146 = vadd.f32 %v2144, %v2145
      %v2147 = vsel %vm444, %v2107, 0.0
      %v2148 = vadd.f32 %v2146, %v2147
      %v2149 = vsel %vm444, %v2108, 0.0
      %v2150 = vadd.f32 %v2148, %v2149
      %v2151 = vsel %vm444, %v2109, 0.0
      %v2152 = vadd.f32 %v2150, %v2151
      %v2153 = vsel %vm444, %v2110, 0.0
      %v2154 = vadd.f32 %v2152, %v2153
      %v2155 = vsel %vm444, %v2111, 0.0
      %v2156 = vadd.f32 %v2154, %v2155
      %v2157 = vsel %vm444, %v2112, 0.0
      %v2158 = vadd.f32 %v2156, %v2157
      %v2159 = vsel %vm444, %v2113, 0.0
      %v2160 = vadd.f32 %v2158, %v2159
      %v2161 = vsel %vm444, %v2114, 0.0
      %v2162 = vadd.f32 %v2160, %v2161
      %v2163 = vsel %vm444, %v2115, 0.0
      %v2164 = vadd.f32 %v2162, %v2163
      %v2165 = vsel %vm444, %v2116, 0.0
      %v2166 = vadd.f32 %v2164, %v2165
      %v2167 = vsel %vm444, %v2117, 0.0
      %v2168 = vadd.f32 %v2166, %v2167
      %v2169 = vsel %vm444, %v2118, 0.0
      %v2170 = vadd.f32 %v2168, %v2169
      %v2171 = vsel %vm444, %v2119, 0.0
      %v2172 = vadd.f32 %v2170, %v2171
      %v2173 = vsel %vm444, %v2120, 0.0
      %v2174 = vadd.f32 %v2172, %v2173
      %v2175 = vsel %vm444, %v2121, 0.0
      %v2176 = vadd.f32 %v2174, %v2175
      %v2177 = vsel %vm444, %v2122, 0.0
      %v2178 = vadd.f32 %v2176, %v2177
      %v2179 = vsel %vm444, %v2123, 0.0
      %v2180 = vadd.f32 %v2178, %v2179
      %v2181 = vsel %vm444, %v2124, 0.0
      %v2182 = vadd.f32 %v2180, %v2181
      %v2183 = vsel %vm444, %v2125, 0.0
      %v2184 = vadd.f32 %v2182, %v2183
      %v2185 = vsel %vm444, %v2126, 0.0
      %v2186 = vadd.f32 %v2184, %v2185
      %v2187 = vsel %vm444, %v2127, 0.0
      %v2188 = vadd.f32 %v2186, %v2187
      %v2189 = vsel %vm444, %v2128, 0.0
      %v2190 = vadd.f32 %v2188, %v2189
      %v2191 = vsel %vm444, %v2129, 0.0
      %v2192 = vadd.f32 %v2190, %v2191
      %v2193 = vrot.slane %v2192, 4
      %v2194 = vadd.f32 %v2192, %v2193
      %v2195 = vrot.slane %v2194, 2
      %v2196 = vadd.f32 %v2194, %v2195
      %v2197 = vrot.slane %v2196, 1
      %v2198 = vadd.f32 %v2196, %v2197
      %2199 = vst.msk [vmem:[%s268] sm:$0x1] %vm2096, %v2198
      %p2200 = scmp.lt.s32.totalorder %s18, 1
      %s2201 = scalar_select %p2200, %s18, 1
      %s2202 = smul.addr %s2201, 32
      %s2203 = smul.addr %s2202, 4
      %s2204 = scalar_lea.vmem %s4, %s2203
      %p2205 = scmp.lt.s32.totalorder %s18, 1
      %s2206 = scalar_select %p2205, %s18, 1
      %s2207 = scalar_lea.vmem %s5, %s2206
      %p2208 = scmp.lt.s32.totalorder %s18, 1
      %s2209 = scalar_select %p2208, %s18, 1
      %s2210 = scalar_lea.vmem %s6, %s2209
      // Predicated region
      $region37: #{residual_block_forward.4} parent=35 // pred_check
        %p2211 = pneg %p125
      $region38: #{residual_block_forward.4} parent=35 // pred_check_branch
        %2213 = sbr.rel (%p2211) target = $region40
      $region39: #{residual_block_forward.4} parent=35 // pred_region
        _
      $region40: #{residual_block_forward.4} parent=35 // pred_fallthru
        _
      // Predicated region
      $region41: #{residual_block_forward.4} parent=35 // pred_check
        %p2214 = pneg %p151
      $region42: #{residual_block_forward.4} parent=35 // pred_check_branch
        %2216 = sbr.rel (%p2214) target = $region44
      $region43: #{residual_block_forward.4} parent=35 // pred_region
        _
      $region44: #{residual_block_forward.4} parent=35 // pred_fallthru
        _
      // Predicated region
      $region45: #{residual_block_forward.4} parent=35 // pred_check
        %p2217 = pneg %p177
      $region46: #{residual_block_forward.4} parent=35 // pred_check_branch
        %2219 = sbr.rel (%p2217) target = $region48
      $region47: #{residual_block_forward.4} parent=35 // pred_region
        _
      $region48: #{residual_block_forward.4} parent=35 // pred_fallthru
        _
    $region36: #{residual_block_forward.4} parent=5 // pred_fallthru
      _
    %p2220 = scmp.le.s32.totalorder 2, %s13
    // Predicated region
    $region49: #{residual_block_forward.4} parent=5 // pred_check
      %p2221 = pneg %p2220
    $region50: #{residual_block_forward.4} parent=5 // pred_check_branch
      %2223 = sbr.rel (%p2221) target = $region52
    $region51: #{residual_block_forward.4} parent=5 // pred_region
      %s2224 = ssub.s32 %s13, 2
      // Predicated region
      $region53: #{residual_block_forward.4} parent=51 // pred_check
        %p2225 = pneg %p131
      $region54: #{residual_block_forward.4} parent=51 // pred_check_branch
        %2227 = sbr.rel (%p2225) target = $region56
      $region55: #{residual_block_forward.4} parent=51 // pred_region
        %p2228 = scmp.lt.s32.totalorder %s19, 1
        %s2229 = scalar_select %p2228, %s19, 1
        %s2230 = smul.addr %s2229, 32
        %s2231 = smul.addr %s2230, 4
        %s2232 = scalar_lea.vmem %s4, %s2231
      $region56: #{residual_block_forward.4} parent=51 // pred_fallthru
        _
      // Predicated region
      $region57: #{residual_block_forward.4} parent=51 // pred_check
        %p2233 = pneg %p157
      $region58: #{residual_block_forward.4} parent=51 // pred_check_branch
        %2235 = sbr.rel (%p2233) target = $region60
      $region59: #{residual_block_forward.4} parent=51 // pred_region
        %p2236 = scmp.lt.s32.totalorder %s19, 1
        %s2237 = scalar_select %p2236, %s19, 1
        %s2238 = scalar_lea.vmem %s5, %s2237
      $region60: #{residual_block_forward.4} parent=51 // pred_fallthru
        _
      // Predicated region
      $region61: #{residual_block_forward.4} parent=51 // pred_check
        %p2239 = pneg %p183
      $region62: #{residual_block_forward.4} parent=51 // pred_check_branch
        %2241 = sbr.rel (%p2239) target = $region64
      $region63: #{residual_block_forward.4} parent=51 // pred_region
        %p2242 = scmp.lt.s32.totalorder %s19, 1
        %s2243 = scalar_select %p2242, %s19, 1
        %s2244 = scalar_lea.vmem %s6, %s2243
      $region64: #{residual_block_forward.4} parent=51 // pred_fallthru
        _
    $region52: #{residual_block_forward.4} parent=5 // pred_fallthru
      _
  $region6: #{residual_block_forward.4} parent=0 // loop_footer
    %s17 = sadd.s32 1, %s13
  $region7: #{residual_block_forward.4} parent=0 // loop_footer_branch
    %12 = sbr.rel target = $region3
  $region8: #{residual_block_forward.4} parent=0 // loop_exit
    _

</llo_original>
